<compile_context>
chip_gen: v7x
topology: tpu7x:2x2x1
jax: 0.10.0
libtpu: 0.0.40
codegen_flags: <defaults>
</compile_context>

<pallas_src>
import jax
import jax.numpy as jnp
import numpy as np
from jax import lax
from jax.experimental import pallas as pl
from jax.experimental.pallas import tpu as pltpu

TB_MAX = 128  # samples per grid step (batch lives in the sublane dimension)


def _round_up(a, m):
    return ((a + m - 1) // m) * m


# ------------------------------ fused kernel -------------------------------

def _net_kernel(x_ref, w1b_ref, b1_ref, w2b_ref, b2_ref,
                wf1_ref, bf1_ref, wf2_ref, bf2_ref, out_ref):
    tb = out_ref.shape[0]

    x = x_ref[...]                                    # (28, TB, 28)
    w1b = w1b_ref[...]                                # (5, 28, 256)

    # ---- conv1: 5 accumulated MXU matmuls over the kernel-row axis ---------
    # rows = (h, b), K = input width (28), N = banded output cols
    # col = (w % 2)*128 + (w // 2)*10 + c   (w-parity major, 120..127 unused)
    c1 = jnp.dot(x[0:24].reshape(24 * tb, 28), w1b[0],
                 preferred_element_type=jnp.float32)
    for i in range(1, 5):
        c1 = c1 + jnp.dot(x[i:i + 24].reshape(24 * tb, 28), w1b[i],
                          preferred_element_type=jnp.float32)

    # ---- maxpool 2x2 + bias + relu (bias after pool is equivalent) ----------
    a1 = jnp.max(c1.reshape(12, 2, tb, 256), axis=1)      # pool over H (free split)
    p1 = jnp.maximum(a1[:, :, :128], a1[:, :, 128:])      # pool over W (aligned halves)
    pool1 = jnp.maximum(p1 + b1_ref[...], 0.0)            # (12, TB, 128), lanes>=120 are 0

    # ---- conv2 (Dropout2d is identity in eval): 5 accumulated matmuls -------
    # K = 128 lanes of pool1 per kernel row, N = banded cols
    # col = (w2 % 2)*128 + (w2 // 2)*20 + c2   (80..127 unused)
    w2b = w2b_ref[...]                                    # (5, 128, 256)
    c2 = jnp.dot(pool1[0:8].reshape(8 * tb, 128), w2b[0],
                 preferred_element_type=jnp.float32)
    for i in range(1, 5):
        c2 = c2 + jnp.dot(pool1[i:i + 8].reshape(8 * tb, 128), w2b[i],
                          preferred_element_type=jnp.float32)

    a2 = jnp.max(c2.reshape(4, 2, tb, 256), axis=1)       # pool over H
    p2 = jnp.maximum(a2[:, :, :128], a2[:, :, 128:])      # pool over W
    act = jnp.maximum(p2 + b2_ref[...], 0.0)              # (4, TB, 128)

    # ---- fc1 (flatten order folded into the packed weight) + relu -----------
    wf1 = wf1_ref[...]                                    # (4, 128, 50)
    h1 = jnp.dot(act[0], wf1[0], preferred_element_type=jnp.float32)
    for hp in range(1, 4):
        h1 = h1 + jnp.dot(act[hp], wf1[hp],
                          preferred_element_type=jnp.float32)
    h1 = jnp.maximum(h1 + bf1_ref[...], 0.0)              # (TB, 50)
    # F.dropout (eval) and unsqueeze(1)+mean(dim=1) are identities.

    # ---- fc2 + numerically stable log_softmax --------------------------------
    logits = jnp.dot(h1, wf2_ref[...], preferred_element_type=jnp.float32)
    logits = logits + bf2_ref[...]
    m = jnp.max(logits, axis=-1, keepdims=True)
    z = logits - m
    lse = jnp.log(jnp.sum(jnp.exp(z), axis=-1, keepdims=True))
    out_ref[...] = (z - lse).astype(out_ref.dtype)


# -------------------------------- wrapper -----------------------------------

def net_forward(kparams, x):
    """x: (N, 1, 28, 28) float32 -> (N, 10) log-probs."""
    n = x.shape[0]
    tb = min(TB_MAX, _round_up(max(n, 1), 8))
    n_pad = _round_up(n, tb)
    if n_pad != n:
        x = jnp.pad(x, ((0, n_pad - n), (0, 0), (0, 0), (0, 0)))
    # Squeeze Cin=1 and put the batch in the sublane dim: (H=28, N, W=28).
    x_t = jnp.transpose(x.reshape(n_pad, 28, 28), (1, 0, 2))

    out = pl.pallas_call(
        _net_kernel,
        out_shape=jax.ShapeDtypeStruct((n_pad, 10), jnp.float32),
        grid_spec=pltpu.PrefetchScalarGridSpec(
            num_scalar_prefetch=0,
            grid=(n_pad // tb,),
            in_specs=[
                pl.BlockSpec((28, tb, 28), lambda b: (0, b, 0)),   # input
                pl.BlockSpec((5, 28, 256), lambda b: (0, 0, 0)),   # conv1 band
                pl.BlockSpec((1, 128), lambda b: (0, 0)),          # conv1 bias
                pl.BlockSpec((5, 128, 256), lambda b: (0, 0, 0)),  # conv2 band
                pl.BlockSpec((1, 128), lambda b: (0, 0)),          # conv2 bias
                pl.BlockSpec((4, 128, 50), lambda b: (0, 0, 0)),   # fc1 w
                pl.BlockSpec((1, 50), lambda b: (0, 0)),           # fc1 b
                pl.BlockSpec((50, 10), lambda b: (0, 0)),          # fc2 w
                pl.BlockSpec((1, 10), lambda b: (0, 0)),           # fc2 b
            ],
            out_specs=pl.BlockSpec((tb, 10), lambda b: (b, 0)),
        ),
        compiler_params=pltpu.CompilerParams(
            dimension_semantics=("parallel",),
            vmem_limit_bytes=48 * 1024 * 1024),
    )(x_t,
      kparams["w1b"], kparams["b1"], kparams["w2b"], kparams["b2"],
      kparams["wf1"], kparams["bf1"], kparams["wf2"], kparams["bf2"])
    return out[:n]


# ------------------------------ parameters ----------------------------------

def init_params(key):
    """PyTorch-layout parameters (also used by the pure-JAX reference)."""
    def uniform(k, shape, fan_in):
        bound = 1.0 / jnp.sqrt(float(fan_in))
        return jax.random.uniform(k, shape, jnp.float32, -bound, bound)

    ks = jax.random.split(key, 8)
    return {
        "conv1_w": uniform(ks[0], (10, 1, 5, 5), 1 * 5 * 5),
        "conv1_b": uniform(ks[1], (10,), 1 * 5 * 5),
        "conv2_w": uniform(ks[2], (20, 10, 5, 5), 10 * 5 * 5),
        "conv2_b": uniform(ks[3], (20,), 10 * 5 * 5),
        "fc1_w": uniform(ks[4], (50, 320), 320),   # PyTorch (out, in)
        "fc1_b": uniform(ks[5], (50,), 320),
        "fc2_w": uniform(ks[6], (10, 50), 50),
        "fc2_b": uniform(ks[7], (10,), 50),
    }


def pack_params(p):
    """One-time host repack into banded, lane-dense matmul weights."""
    w1 = np.asarray(p["conv1_w"], np.float32)   # (10, 1, 5, 5)
    b1 = np.asarray(p["conv1_b"], np.float32)
    w2 = np.asarray(p["conv2_w"], np.float32)   # (20, 10, 5, 5)
    b2 = np.asarray(p["conv2_b"], np.float32)
    f1w = np.asarray(p["fc1_w"], np.float32)    # (50, 320)
    f1b = np.asarray(p["fc1_b"], np.float32)
    f2w = np.asarray(p["fc2_w"], np.float32)    # (10, 50)
    f2b = np.asarray(p["fc2_b"], np.float32)

    # conv1 band: W1[i, v, (w%2)*128 + (w//2)*10 + c] = w1[c, 0, i, v-w]
    W1 = np.zeros((5, 28, 256), np.float32)
    for i in range(5):
        for w in range(24):
            col0 = (w % 2) * 128 + (w // 2) * 10
            for j in range(5):
                W1[i, w + j, col0:col0 + 10] = w1[:, 0, i, j]
    B1 = np.zeros((1, 128), np.float32)
    for wp in range(12):
        B1[0, wp * 10:wp * 10 + 10] = b1

    # conv2 band: W2[i, xw*10+c, (w2%2)*128 + (w2//2)*20 + c2] = w2[c2, c, i, xw-w2]
    W2 = np.zeros((5, 128, 256), np.float32)
    for i in range(5):
        for w in range(8):
            col0 = (w % 2) * 128 + (w // 2) * 20
            for j in range(5):
                xw = w + j
                for c in range(10):
                    W2[i, xw * 10 + c, col0:col0 + 20] = w2[:, c, i, j]
    B2 = np.zeros((1, 128), np.float32)
    for wp in range(4):
        B2[0, wp * 20:wp * 20 + 20] = b2

    # fc1: Wf1[hp, wp*20+c2, o] = fc1_w[o, c2*16 + hp*4 + wp]  (PyTorch flatten)
    Wf1 = np.zeros((4, 128, 50), np.float32)
    fr = f1w.reshape(50, 20, 4, 4)
    for hp in range(4):
        for wp in range(4):
            for c2 in range(20):
                Wf1[hp, wp * 20 + c2, :] = fr[:, c2, hp, wp]

    return {
        "w1b": jnp.asarray(W1), "b1": jnp.asarray(B1),
        "w2b": jnp.asarray(W2), "b2": jnp.asarray(B2),
        "wf1": jnp.asarray(Wf1), "bf1": jnp.asarray(f1b.reshape(1, 50)),
        "wf2": jnp.asarray(f2w.T), "bf2": jnp.asarray(f2b.reshape(1, 10)),
    }


# ----------------------------- JAX reference ---------------------------------

def net_forward_ref(params, x):
    y = lax.conv_general_dilated(
        x, params["conv1_w"], (1, 1), "VALID",
        dimension_numbers=("NCHW", "OIHW", "NCHW"))
    y = y + params["conv1_b"].reshape(1, -1, 1, 1)
    y = jax.nn.relu(lax.reduce_window(
        y, -jnp.inf, lax.max, (1, 1, 2, 2), (1, 1, 2, 2), "VALID"))
    y = lax.conv_general_dilated(
        y, params["conv2_w"], (1, 1), "VALID",
        dimension_numbers=("NCHW", "OIHW", "NCHW"))
    y = y + params["conv2_b"].reshape(1, -1, 1, 1)
    y = jax.nn.relu(lax.reduce_window(
        y, -jnp.inf, lax.max, (1, 1, 2, 2), (1, 1, 2, 2), "VALID"))
    y = y.reshape(y.shape[0], 320)
    y = jax.nn.relu(y @ params["fc1_w"].T + params["fc1_b"])
    logits = y @ params["fc2_w"].T + params["fc2_b"]
    return jax.nn.log_softmax(logits, axis=1)


if __name__ == "__main__":
    key = jax.random.PRNGKey(0)
    k_param, k_x = jax.random.split(key)
    params = init_params(k_param)
    kparams = pack_params(params)

    # Input must be 28x28 single-channel for the 320-feature flatten to hold.
    x = jax.random.normal(k_x, (2, 1, 28, 28), dtype=jnp.float32)

    out = jax.block_until_ready(net_forward(kparams, x))
    ref = jax.block_until_ready(net_forward_ref(params, x))

    assert out.shape == (2, 10), out.shape
    assert jnp.allclose(out, ref, atol=1e-4, rtol=1e-4), (
        float(jnp.max(jnp.abs(out - ref))))
    print("KERNEL_OK")
</pallas_src>

<mosaic_0001>
module attributes {stable_mosaic.version = 11 : i64} {
  func.func @_net_kernel(%arg0: i32, %arg1: memref<28x8x28xf32, #tpu.memory_space<vmem>>, %arg2: memref<5x28x256xf32, #tpu.memory_space<vmem>>, %arg3: memref<1x128xf32, #tpu.memory_space<vmem>>, %arg4: memref<5x128x256xf32, #tpu.memory_space<vmem>>, %arg5: memref<1x128xf32, #tpu.memory_space<vmem>>, %arg6: memref<4x128x50xf32, #tpu.memory_space<vmem>>, %arg7: memref<1x50xf32, #tpu.memory_space<vmem>>, %arg8: memref<50x10xf32, #tpu.memory_space<vmem>>, %arg9: memref<1x10xf32, #tpu.memory_space<vmem>>, %arg10: memref<8x10xf32, #tpu.memory_space<vmem>>) attributes {dimension_semantics = [#tpu.dimension_semantics<parallel>], iteration_bounds = array<i64: 1>, scalar_prefetch = 0 : i64, scratch_operands = 0 : i64, tpu.core_type = #tpu.core_type<tc>, window_params = [{transform_indices = @transform_0, window_bounds = array<i64: 28, 8, 28>}, {pipeline_mode = #tpu.pipeline_mode<synchronous>, transform_indices = @transform_1, window_bounds = array<i64: 5, 28, 256>}, {pipeline_mode = #tpu.pipeline_mode<synchronous>, transform_indices = @transform_2, window_bounds = array<i64: 1, 128>}, {pipeline_mode = #tpu.pipeline_mode<synchronous>, transform_indices = @transform_3, window_bounds = array<i64: 5, 128, 256>}, {pipeline_mode = #tpu.pipeline_mode<synchronous>, transform_indices = @transform_4, window_bounds = array<i64: 1, 128>}, {pipeline_mode = #tpu.pipeline_mode<synchronous>, transform_indices = @transform_5, window_bounds = array<i64: 4, 128, 50>}, {pipeline_mode = #tpu.pipeline_mode<synchronous>, transform_indices = @transform_6, window_bounds = array<i64: 1, 50>}, {pipeline_mode = #tpu.pipeline_mode<synchronous>, transform_indices = @transform_7, window_bounds = array<i64: 50, 10>}, {pipeline_mode = #tpu.pipeline_mode<synchronous>, transform_indices = @transform_8, window_bounds = array<i64: 1, 10>}, {transform_indices = @transform_9, window_bounds = array<i64: 8, 10>}]} {
    %c0 = arith.constant 0 : index
    %c0_0 = arith.constant 0 : index
    %c0_1 = arith.constant 0 : index
    %0 = vector.load %arg1[%c0, %c0_0, %c0_1] : memref<28x8x28xf32, #tpu.memory_space<vmem>>, vector<28x8x28xf32>
    %c0_2 = arith.constant 0 : index
    %c0_3 = arith.constant 0 : index
    %c0_4 = arith.constant 0 : index
    %1 = vector.load %arg2[%c0_2, %c0_3, %c0_4] : memref<5x28x256xf32, #tpu.memory_space<vmem>>, vector<5x28x256xf32>
    %2 = vector.extract_strided_slice %0 {offsets = [0, 0, 0], sizes = [24, 8, 28], strides = [1, 1, 1]} : vector<28x8x28xf32> to vector<24x8x28xf32>
    %3 = vector.shape_cast %2 : vector<24x8x28xf32> to vector<192x28xf32>
    %4 = vector.extract_strided_slice %1 {offsets = [0, 0, 0], sizes = [1, 28, 256], strides = [1, 1, 1]} : vector<5x28x256xf32> to vector<1x28x256xf32>
    %5 = vector.shape_cast %4 : vector<1x28x256xf32> to vector<28x256xf32>
    %cst = arith.constant dense<0.000000e+00> : vector<192x256xf32>
    %6 = tpu.matmul %3, %5, %cst {dimension_numbers = #tpu.dot_dimension_numbers<[1], [0], [0], [1], [0, 0, 1, 1], [], []>} : vector<192x28xf32>, vector<28x256xf32>, vector<192x256xf32> -> vector<192x256xf32>
    %7 = vector.extract_strided_slice %0 {offsets = [1, 0, 0], sizes = [24, 8, 28], strides = [1, 1, 1]} : vector<28x8x28xf32> to vector<24x8x28xf32>
    %8 = vector.shape_cast %7 : vector<24x8x28xf32> to vector<192x28xf32>
    %9 = vector.extract_strided_slice %1 {offsets = [1, 0, 0], sizes = [1, 28, 256], strides = [1, 1, 1]} : vector<5x28x256xf32> to vector<1x28x256xf32>
    %10 = vector.shape_cast %9 : vector<1x28x256xf32> to vector<28x256xf32>
    %cst_5 = arith.constant dense<0.000000e+00> : vector<192x256xf32>
    %11 = tpu.matmul %8, %10, %cst_5 {dimension_numbers = #tpu.dot_dimension_numbers<[1], [0], [0], [1], [0, 0, 1, 1], [], []>} : vector<192x28xf32>, vector<28x256xf32>, vector<192x256xf32> -> vector<192x256xf32>
    %12 = arith.addf %6, %11 : vector<192x256xf32>
    %13 = vector.extract_strided_slice %0 {offsets = [2, 0, 0], sizes = [24, 8, 28], strides = [1, 1, 1]} : vector<28x8x28xf32> to vector<24x8x28xf32>
    %14 = vector.shape_cast %13 : vector<24x8x28xf32> to vector<192x28xf32>
    %15 = vector.extract_strided_slice %1 {offsets = [2, 0, 0], sizes = [1, 28, 256], strides = [1, 1, 1]} : vector<5x28x256xf32> to vector<1x28x256xf32>
    %16 = vector.shape_cast %15 : vector<1x28x256xf32> to vector<28x256xf32>
    %cst_6 = arith.constant dense<0.000000e+00> : vector<192x256xf32>
    %17 = tpu.matmul %14, %16, %cst_6 {dimension_numbers = #tpu.dot_dimension_numbers<[1], [0], [0], [1], [0, 0, 1, 1], [], []>} : vector<192x28xf32>, vector<28x256xf32>, vector<192x256xf32> -> vector<192x256xf32>
    %18 = arith.addf %12, %17 : vector<192x256xf32>
    %19 = vector.extract_strided_slice %0 {offsets = [3, 0, 0], sizes = [24, 8, 28], strides = [1, 1, 1]} : vector<28x8x28xf32> to vector<24x8x28xf32>
    %20 = vector.shape_cast %19 : vector<24x8x28xf32> to vector<192x28xf32>
    %21 = vector.extract_strided_slice %1 {offsets = [3, 0, 0], sizes = [1, 28, 256], strides = [1, 1, 1]} : vector<5x28x256xf32> to vector<1x28x256xf32>
    %22 = vector.shape_cast %21 : vector<1x28x256xf32> to vector<28x256xf32>
    %cst_7 = arith.constant dense<0.000000e+00> : vector<192x256xf32>
    %23 = tpu.matmul %20, %22, %cst_7 {dimension_numbers = #tpu.dot_dimension_numbers<[1], [0], [0], [1], [0, 0, 1, 1], [], []>} : vector<192x28xf32>, vector<28x256xf32>, vector<192x256xf32> -> vector<192x256xf32>
    %24 = arith.addf %18, %23 : vector<192x256xf32>
    %25 = vector.extract_strided_slice %0 {offsets = [4, 0, 0], sizes = [24, 8, 28], strides = [1, 1, 1]} : vector<28x8x28xf32> to vector<24x8x28xf32>
    %26 = vector.shape_cast %25 : vector<24x8x28xf32> to vector<192x28xf32>
    %27 = vector.extract_strided_slice %1 {offsets = [4, 0, 0], sizes = [1, 28, 256], strides = [1, 1, 1]} : vector<5x28x256xf32> to vector<1x28x256xf32>
    %28 = vector.shape_cast %27 : vector<1x28x256xf32> to vector<28x256xf32>
    %cst_8 = arith.constant dense<0.000000e+00> : vector<192x256xf32>
    %29 = tpu.matmul %26, %28, %cst_8 {dimension_numbers = #tpu.dot_dimension_numbers<[1], [0], [0], [1], [0, 0, 1, 1], [], []>} : vector<192x28xf32>, vector<28x256xf32>, vector<192x256xf32> -> vector<192x256xf32>
    %30 = arith.addf %24, %29 : vector<192x256xf32>
    %31 = vector.shape_cast %30 : vector<192x256xf32> to vector<12x2x8x256xf32>
    %cst_9 = arith.constant dense<0xFF800000> : vector<12x8x256xf32>
    %32 = vector.multi_reduction <maximumf>, %31, %cst_9 [1] : vector<12x2x8x256xf32> to vector<12x8x256xf32>
    %33 = vector.extract_strided_slice %32 {offsets = [0, 0, 0], sizes = [12, 8, 128], strides = [1, 1, 1]} : vector<12x8x256xf32> to vector<12x8x128xf32>
    %34 = vector.extract_strided_slice %32 {offsets = [0, 0, 128], sizes = [12, 8, 128], strides = [1, 1, 1]} : vector<12x8x256xf32> to vector<12x8x128xf32>
    %35 = arith.maximumf %33, %34 : vector<12x8x128xf32>
    %c0_10 = arith.constant 0 : index
    %c0_11 = arith.constant 0 : index
    %36 = vector.load %arg3[%c0_10, %c0_11] : memref<1x128xf32, #tpu.memory_space<vmem>>, vector<1x128xf32>
    %37 = vector.shape_cast %36 : vector<1x128xf32> to vector<1x1x128xf32>
    %38 = vector.broadcast %37 : vector<1x1x128xf32> to vector<12x8x128xf32>
    %39 = arith.addf %35, %38 : vector<12x8x128xf32>
    %cst_12 = arith.constant 0.000000e+00 : f32
    %40 = vector.broadcast %cst_12 : f32 to vector<12x8x128xf32>
    %41 = arith.maximumf %39, %40 : vector<12x8x128xf32>
    %c0_13 = arith.constant 0 : index
    %c0_14 = arith.constant 0 : index
    %c0_15 = arith.constant 0 : index
    %42 = vector.load %arg4[%c0_13, %c0_14, %c0_15] : memref<5x128x256xf32, #tpu.memory_space<vmem>>, vector<5x128x256xf32>
    %43 = vector.extract_strided_slice %41 {offsets = [0, 0, 0], sizes = [8, 8, 128], strides = [1, 1, 1]} : vector<12x8x128xf32> to vector<8x8x128xf32>
    %44 = vector.shape_cast %43 : vector<8x8x128xf32> to vector<64x128xf32>
    %45 = vector.extract_strided_slice %42 {offsets = [0, 0, 0], sizes = [1, 128, 256], strides = [1, 1, 1]} : vector<5x128x256xf32> to vector<1x128x256xf32>
    %46 = vector.shape_cast %45 : vector<1x128x256xf32> to vector<128x256xf32>
    %cst_16 = arith.constant dense<0.000000e+00> : vector<64x256xf32>
    %47 = tpu.matmul %44, %46, %cst_16 {dimension_numbers = #tpu.dot_dimension_numbers<[1], [0], [0], [1], [0, 0, 1, 1], [], []>} : vector<64x128xf32>, vector<128x256xf32>, vector<64x256xf32> -> vector<64x256xf32>
    %48 = vector.extract_strided_slice %41 {offsets = [1, 0, 0], sizes = [8, 8, 128], strides = [1, 1, 1]} : vector<12x8x128xf32> to vector<8x8x128xf32>
    %49 = vector.shape_cast %48 : vector<8x8x128xf32> to vector<64x128xf32>
    %50 = vector.extract_strided_slice %42 {offsets = [1, 0, 0], sizes = [1, 128, 256], strides = [1, 1, 1]} : vector<5x128x256xf32> to vector<1x128x256xf32>
    %51 = vector.shape_cast %50 : vector<1x128x256xf32> to vector<128x256xf32>
    %cst_17 = arith.constant dense<0.000000e+00> : vector<64x256xf32>
    %52 = tpu.matmul %49, %51, %cst_17 {dimension_numbers = #tpu.dot_dimension_numbers<[1], [0], [0], [1], [0, 0, 1, 1], [], []>} : vector<64x128xf32>, vector<128x256xf32>, vector<64x256xf32> -> vector<64x256xf32>
    %53 = arith.addf %47, %52 : vector<64x256xf32>
    %54 = vector.extract_strided_slice %41 {offsets = [2, 0, 0], sizes = [8, 8, 128], strides = [1, 1, 1]} : vector<12x8x128xf32> to vector<8x8x128xf32>
    %55 = vector.shape_cast %54 : vector<8x8x128xf32> to vector<64x128xf32>
    %56 = vector.extract_strided_slice %42 {offsets = [2, 0, 0], sizes = [1, 128, 256], strides = [1, 1, 1]} : vector<5x128x256xf32> to vector<1x128x256xf32>
    %57 = vector.shape_cast %56 : vector<1x128x256xf32> to vector<128x256xf32>
    %cst_18 = arith.constant dense<0.000000e+00> : vector<64x256xf32>
    %58 = tpu.matmul %55, %57, %cst_18 {dimension_numbers = #tpu.dot_dimension_numbers<[1], [0], [0], [1], [0, 0, 1, 1], [], []>} : vector<64x128xf32>, vector<128x256xf32>, vector<64x256xf32> -> vector<64x256xf32>
    %59 = arith.addf %53, %58 : vector<64x256xf32>
    %60 = vector.extract_strided_slice %41 {offsets = [3, 0, 0], sizes = [8, 8, 128], strides = [1, 1, 1]} : vector<12x8x128xf32> to vector<8x8x128xf32>
    %61 = vector.shape_cast %60 : vector<8x8x128xf32> to vector<64x128xf32>
    %62 = vector.extract_strided_slice %42 {offsets = [3, 0, 0], sizes = [1, 128, 256], strides = [1, 1, 1]} : vector<5x128x256xf32> to vector<1x128x256xf32>
    %63 = vector.shape_cast %62 : vector<1x128x256xf32> to vector<128x256xf32>
    %cst_19 = arith.constant dense<0.000000e+00> : vector<64x256xf32>
    %64 = tpu.matmul %61, %63, %cst_19 {dimension_numbers = #tpu.dot_dimension_numbers<[1], [0], [0], [1], [0, 0, 1, 1], [], []>} : vector<64x128xf32>, vector<128x256xf32>, vector<64x256xf32> -> vector<64x256xf32>
    %65 = arith.addf %59, %64 : vector<64x256xf32>
    %66 = vector.extract_strided_slice %41 {offsets = [4, 0, 0], sizes = [8, 8, 128], strides = [1, 1, 1]} : vector<12x8x128xf32> to vector<8x8x128xf32>
    %67 = vector.shape_cast %66 : vector<8x8x128xf32> to vector<64x128xf32>
    %68 = vector.extract_strided_slice %42 {offsets = [4, 0, 0], sizes = [1, 128, 256], strides = [1, 1, 1]} : vector<5x128x256xf32> to vector<1x128x256xf32>
    %69 = vector.shape_cast %68 : vector<1x128x256xf32> to vector<128x256xf32>
    %cst_20 = arith.constant dense<0.000000e+00> : vector<64x256xf32>
    %70 = tpu.matmul %67, %69, %cst_20 {dimension_numbers = #tpu.dot_dimension_numbers<[1], [0], [0], [1], [0, 0, 1, 1], [], []>} : vector<64x128xf32>, vector<128x256xf32>, vector<64x256xf32> -> vector<64x256xf32>
    %71 = arith.addf %65, %70 : vector<64x256xf32>
    %72 = vector.shape_cast %71 : vector<64x256xf32> to vector<4x2x8x256xf32>
    %cst_21 = arith.constant dense<0xFF800000> : vector<4x8x256xf32>
    %73 = vector.multi_reduction <maximumf>, %72, %cst_21 [1] : vector<4x2x8x256xf32> to vector<4x8x256xf32>
    %74 = vector.extract_strided_slice %73 {offsets = [0, 0, 0], sizes = [4, 8, 128], strides = [1, 1, 1]} : vector<4x8x256xf32> to vector<4x8x128xf32>
    %75 = vector.extract_strided_slice %73 {offsets = [0, 0, 128], sizes = [4, 8, 128], strides = [1, 1, 1]} : vector<4x8x256xf32> to vector<4x8x128xf32>
    %76 = arith.maximumf %74, %75 : vector<4x8x128xf32>
    %c0_22 = arith.constant 0 : index
    %c0_23 = arith.constant 0 : index
    %77 = vector.load %arg5[%c0_22, %c0_23] : memref<1x128xf32, #tpu.memory_space<vmem>>, vector<1x128xf32>
    %78 = vector.shape_cast %77 : vector<1x128xf32> to vector<1x1x128xf32>
    %79 = vector.broadcast %78 : vector<1x1x128xf32> to vector<4x8x128xf32>
    %80 = arith.addf %76, %79 : vector<4x8x128xf32>
    %cst_24 = arith.constant 0.000000e+00 : f32
    %81 = vector.broadcast %cst_24 : f32 to vector<4x8x128xf32>
    %82 = arith.maximumf %80, %81 : vector<4x8x128xf32>
    %c0_25 = arith.constant 0 : index
    %c0_26 = arith.constant 0 : index
    %c0_27 = arith.constant 0 : index
    %83 = vector.load %arg6[%c0_25, %c0_26, %c0_27] : memref<4x128x50xf32, #tpu.memory_space<vmem>>, vector<4x128x50xf32>
    %84 = vector.extract_strided_slice %82 {offsets = [0, 0, 0], sizes = [1, 8, 128], strides = [1, 1, 1]} : vector<4x8x128xf32> to vector<1x8x128xf32>
    %85 = vector.shape_cast %84 : vector<1x8x128xf32> to vector<8x128xf32>
    %86 = vector.extract_strided_slice %83 {offsets = [0, 0, 0], sizes = [1, 128, 50], strides = [1, 1, 1]} : vector<4x128x50xf32> to vector<1x128x50xf32>
    %87 = vector.shape_cast %86 : vector<1x128x50xf32> to vector<128x50xf32>
    %cst_28 = arith.constant dense<0.000000e+00> : vector<8x50xf32>
    %88 = tpu.matmul %85, %87, %cst_28 {dimension_numbers = #tpu.dot_dimension_numbers<[1], [0], [0], [1], [0, 0, 1, 1], [], []>} : vector<8x128xf32>, vector<128x50xf32>, vector<8x50xf32> -> vector<8x50xf32>
    %89 = vector.extract_strided_slice %82 {offsets = [1, 0, 0], sizes = [1, 8, 128], strides = [1, 1, 1]} : vector<4x8x128xf32> to vector<1x8x128xf32>
    %90 = vector.shape_cast %89 : vector<1x8x128xf32> to vector<8x128xf32>
    %91 = vector.extract_strided_slice %83 {offsets = [1, 0, 0], sizes = [1, 128, 50], strides = [1, 1, 1]} : vector<4x128x50xf32> to vector<1x128x50xf32>
    %92 = vector.shape_cast %91 : vector<1x128x50xf32> to vector<128x50xf32>
    %cst_29 = arith.constant dense<0.000000e+00> : vector<8x50xf32>
    %93 = tpu.matmul %90, %92, %cst_29 {dimension_numbers = #tpu.dot_dimension_numbers<[1], [0], [0], [1], [0, 0, 1, 1], [], []>} : vector<8x128xf32>, vector<128x50xf32>, vector<8x50xf32> -> vector<8x50xf32>
    %94 = arith.addf %88, %93 : vector<8x50xf32>
    %95 = vector.extract_strided_slice %82 {offsets = [2, 0, 0], sizes = [1, 8, 128], strides = [1, 1, 1]} : vector<4x8x128xf32> to vector<1x8x128xf32>
    %96 = vector.shape_cast %95 : vector<1x8x128xf32> to vector<8x128xf32>
    %97 = vector.extract_strided_slice %83 {offsets = [2, 0, 0], sizes = [1, 128, 50], strides = [1, 1, 1]} : vector<4x128x50xf32> to vector<1x128x50xf32>
    %98 = vector.shape_cast %97 : vector<1x128x50xf32> to vector<128x50xf32>
    %cst_30 = arith.constant dense<0.000000e+00> : vector<8x50xf32>
    %99 = tpu.matmul %96, %98, %cst_30 {dimension_numbers = #tpu.dot_dimension_numbers<[1], [0], [0], [1], [0, 0, 1, 1], [], []>} : vector<8x128xf32>, vector<128x50xf32>, vector<8x50xf32> -> vector<8x50xf32>
    %100 = arith.addf %94, %99 : vector<8x50xf32>
    %101 = vector.extract_strided_slice %82 {offsets = [3, 0, 0], sizes = [1, 8, 128], strides = [1, 1, 1]} : vector<4x8x128xf32> to vector<1x8x128xf32>
    %102 = vector.shape_cast %101 : vector<1x8x128xf32> to vector<8x128xf32>
    %103 = vector.extract_strided_slice %83 {offsets = [3, 0, 0], sizes = [1, 128, 50], strides = [1, 1, 1]} : vector<4x128x50xf32> to vector<1x128x50xf32>
    %104 = vector.shape_cast %103 : vector<1x128x50xf32> to vector<128x50xf32>
    %cst_31 = arith.constant dense<0.000000e+00> : vector<8x50xf32>
    %105 = tpu.matmul %102, %104, %cst_31 {dimension_numbers = #tpu.dot_dimension_numbers<[1], [0], [0], [1], [0, 0, 1, 1], [], []>} : vector<8x128xf32>, vector<128x50xf32>, vector<8x50xf32> -> vector<8x50xf32>
    %106 = arith.addf %100, %105 : vector<8x50xf32>
    %c0_32 = arith.constant 0 : index
    %c0_33 = arith.constant 0 : index
    %107 = vector.load %arg7[%c0_32, %c0_33] : memref<1x50xf32, #tpu.memory_space<vmem>>, vector<1x50xf32>
    %108 = vector.broadcast %107 : vector<1x50xf32> to vector<8x50xf32>
    %109 = arith.addf %106, %108 : vector<8x50xf32>
    %cst_34 = arith.constant 0.000000e+00 : f32
    %110 = vector.broadcast %cst_34 : f32 to vector<8x50xf32>
    %111 = arith.maximumf %109, %110 : vector<8x50xf32>
    %c0_35 = arith.constant 0 : index
    %c0_36 = arith.constant 0 : index
    %112 = vector.load %arg8[%c0_35, %c0_36] : memref<50x10xf32, #tpu.memory_space<vmem>>, vector<50x10xf32>
    %cst_37 = arith.constant dense<0.000000e+00> : vector<8x10xf32>
    %113 = tpu.matmul %111, %112, %cst_37 {dimension_numbers = #tpu.dot_dimension_numbers<[1], [0], [0], [1], [0, 0, 1, 1], [], []>} : vector<8x50xf32>, vector<50x10xf32>, vector<8x10xf32> -> vector<8x10xf32>
    %c0_38 = arith.constant 0 : index
    %c0_39 = arith.constant 0 : index
    %114 = vector.load %arg9[%c0_38, %c0_39] : memref<1x10xf32, #tpu.memory_space<vmem>>, vector<1x10xf32>
    %115 = vector.broadcast %114 : vector<1x10xf32> to vector<8x10xf32>
    %116 = arith.addf %113, %115 : vector<8x10xf32>
    %cst_40 = arith.constant dense<0xFF800000> : vector<8xf32>
    %117 = vector.multi_reduction <maximumf>, %116, %cst_40 [1] : vector<8x10xf32> to vector<8xf32>
    %118 = vector.shape_cast %117 : vector<8xf32> to vector<8x1xf32>
    %119 = vector.broadcast %118 : vector<8x1xf32> to vector<8x10xf32>
    %120 = arith.subf %116, %119 : vector<8x10xf32>
    %121 = math.exp %120 : vector<8x10xf32>
    %cst_41 = arith.constant dense<0.000000e+00> : vector<8xf32>
    %122 = vector.multi_reduction <add>, %121, %cst_41 [1] : vector<8x10xf32> to vector<8xf32>
    %123 = vector.shape_cast %122 : vector<8xf32> to vector<8x1xf32>
    %124 = math.log %123 : vector<8x1xf32>
    %125 = vector.broadcast %124 : vector<8x1xf32> to vector<8x10xf32>
    %126 = arith.subf %120, %125 : vector<8x10xf32>
    %c0_42 = arith.constant 0 : index
    %c0_43 = arith.constant 0 : index
    %127 = vector.load %arg10[%c0_42, %c0_43] : memref<8x10xf32, #tpu.memory_space<vmem>>, vector<8x10xf32>
    tpu.vector_store %arg10[%c0_42, %c0_43], %126 {strides = array<i32>} : memref<8x10xf32, #tpu.memory_space<vmem>>, vector<8x10xf32>,
    return
  }
  func.func @transform_0(%arg0: i32) -> (i32, i32, i32) {
    %c0_i32 = arith.constant 0 : i32
    %c0_i32_0 = arith.constant 0 : i32
    %c0_i32_1 = arith.constant 0 : i32
    return %c0_i32, %arg0, %c0_i32_0 : i32, i32, i32
  }
  func.func @transform_1(%arg0: i32) -> (i32, i32, i32) {
    %c0_i32 = arith.constant 0 : i32
    %c0_i32_0 = arith.constant 0 : i32
    %c0_i32_1 = arith.constant 0 : i32
    %c0_i32_2 = arith.constant 0 : i32
    return %c0_i32, %c0_i32_0, %c0_i32_1 : i32, i32, i32
  }
  func.func @transform_2(%arg0: i32) -> (i32, i32) {
    %c0_i32 = arith.constant 0 : i32
    %c0_i32_0 = arith.constant 0 : i32
    %c0_i32_1 = arith.constant 0 : i32
    return %c0_i32, %c0_i32_0 : i32, i32
  }
  func.func @transform_3(%arg0: i32) -> (i32, i32, i32) {
    %c0_i32 = arith.constant 0 : i32
    %c0_i32_0 = arith.constant 0 : i32
    %c0_i32_1 = arith.constant 0 : i32
    %c0_i32_2 = arith.constant 0 : i32
    return %c0_i32, %c0_i32_0, %c0_i32_1 : i32, i32, i32
  }
  func.func @transform_4(%arg0: i32) -> (i32, i32) {
    %c0_i32 = arith.constant 0 : i32
    %c0_i32_0 = arith.constant 0 : i32
    %c0_i32_1 = arith.constant 0 : i32
    return %c0_i32, %c0_i32_0 : i32, i32
  }
  func.func @transform_5(%arg0: i32) -> (i32, i32, i32) {
    %c0_i32 = arith.constant 0 : i32
    %c0_i32_0 = arith.constant 0 : i32
    %c0_i32_1 = arith.constant 0 : i32
    %c0_i32_2 = arith.constant 0 : i32
    return %c0_i32, %c0_i32_0, %c0_i32_1 : i32, i32, i32
  }
  func.func @transform_6(%arg0: i32) -> (i32, i32) {
    %c0_i32 = arith.constant 0 : i32
    %c0_i32_0 = arith.constant 0 : i32
    %c0_i32_1 = arith.constant 0 : i32
    return %c0_i32, %c0_i32_0 : i32, i32
  }
  func.func @transform_7(%arg0: i32) -> (i32, i32) {
    %c0_i32 = arith.constant 0 : i32
    %c0_i32_0 = arith.constant 0 : i32
    %c0_i32_1 = arith.constant 0 : i32
    return %c0_i32, %c0_i32_0 : i32, i32
  }
  func.func @transform_8(%arg0: i32) -> (i32, i32) {
    %c0_i32 = arith.constant 0 : i32
    %c0_i32_0 = arith.constant 0 : i32
    %c0_i32_1 = arith.constant 0 : i32
    return %c0_i32, %c0_i32_0 : i32, i32
  }
  func.func @transform_9(%arg0: i32) -> (i32, i32) {
    %c0_i32 = arith.constant 0 : i32
    %c0_i32_0 = arith.constant 0 : i32
    return %arg0, %c0_i32 : i32, i32
  }
}

</mosaic_0001>

<llo_original>
// kernel: tpu_custom_call.1
$region0: #{tpu_custom_call.1}
  #allocation0 [shape = 'u32[]', space=smem, size = 0x4, offset = 0x4, fixed_abs, tag = 'smem constant byte address 0x4 - core index']
  #allocation1 [shape = 'u32[144,128]{1,0:T(1,128)}', space=vmem, size = 0x12000, scoped, tag = 'internal scratch']
  %s0 = inlined_call_operand.vmem [shape: f32[28,8,28], index: 0, kind: input, shape index: {}]
  %s1 = inlined_call_operand.vmem [shape: f32[5,28,256], index: 1, kind: input, shape index: {}]
  %s2 = inlined_call_operand.vmem [shape: f32[1,128], index: 2, kind: input, shape index: {}]
  %s3 = inlined_call_operand.hbm [shape: f32[5,128,256], index: 3, kind: input, shape index: {}]
  %s4 = inlined_call_operand.vmem [shape: f32[1,128], index: 4, kind: input, shape index: {}]
  %s5 = inlined_call_operand.vmem [shape: f32[4,128,50], index: 5, kind: input, shape index: {}]
  %s6 = inlined_call_operand.vmem [shape: f32[1,50], index: 6, kind: input, shape index: {}]
  %s7 = inlined_call_operand.vmem [shape: f32[50,10], index: 7, kind: input, shape index: {}]
  %s8 = inlined_call_operand.vmem [shape: f32[1,10], index: 8, kind: input, shape index: {}]
  %s9 = inlined_call_operand.hbm [shape: f32[8,10], index: 9, kind: output, shape index: {}]
  %s10 = sld [smem:[#allocation0]]
  $region50: #{tpu_custom_call.1} parent=0
    _
  %s12 = ssub.s32 1, %s10
  %s13 = scalar_select 0, %s12, %s10
  $region1: #{tpu_custom_call.1} parent=0
    #allocation2 [shape = 'u8[655360]{0}', space=vmem, size = 0xa0000, scoped, tag = 'input window, operand 3, single buffered']
    #allocation3 [shape = 's32[1]{0}', space=sflag, size = 0x4, scoped, tag = 'scoped memory for tpu_custom_call.1']
    #allocation4 [shape = 's32[1]{0}', space=sflag, size = 0x4, scoped, tag = 'scoped memory for tpu_custom_call.1']
    #allocation5 [shape = 'u8[4096]{0}', space=vmem, size = 0x1000, scoped, tag = 'output window, operand 0, single buffered']
    %14 = vsyncpa [#allocation3], 0
    %15 = vsyncpa [#allocation4], 0
    // Predicated region
    $region2: #{tpu_custom_call.1} parent=1 // pred_check
      _
    $region3: #{tpu_custom_call.1} parent=1 // pred_check_branch
      %17 = sbr.rel (0) target = $region5
    $region4: #{tpu_custom_call.1} parent=1 // pred_region
      _
    $region5: #{tpu_custom_call.1} parent=1 // pred_fallthru
      _
    // Predicated region
    $region6: #{tpu_custom_call.1} parent=1 // pred_check
      _
    $region7: #{tpu_custom_call.1} parent=1 // pred_check_branch
      %19 = sbr.rel (0) target = $region9
    $region8: #{tpu_custom_call.1} parent=1 // pred_region
      _
    $region9: #{tpu_custom_call.1} parent=1 // pred_fallthru
      _
    // Predicated region
    $region10: #{tpu_custom_call.1} parent=1 // pred_check
      _
    $region11: #{tpu_custom_call.1} parent=1 // pred_check_branch
      %21 = sbr.rel (0) target = $region13
    $region12: #{tpu_custom_call.1} parent=1 // pred_region
      _
    $region13: #{tpu_custom_call.1} parent=1 // pred_fallthru
      _
    // Predicated region
    $region14: #{tpu_custom_call.1} parent=1 // pred_check
      _
    $region15: #{tpu_custom_call.1} parent=1 // pred_check_branch
      %23 = sbr.rel (0) target = $region17
    $region16: #{tpu_custom_call.1} parent=1 // pred_region
      %s25 = ssub.s32 20480, 20480
      %26 = vsyncadd [#allocation3], %s25
      %s27 = sshll.u32 [#allocation2], 4
      %s28 = int_to_ptr.vmem [resolvable:$true] %s27
      %33 = dma.hbm_to_vmem [thread:$0]  %s3, 20480, %s28, [#allocation3], 256, 256, 16
    $region17: #{tpu_custom_call.1} parent=1 // pred_fallthru
      _
    // Predicated region
    $region18: #{tpu_custom_call.1} parent=1 // pred_check
      _
    $region19: #{tpu_custom_call.1} parent=1 // pred_check_branch
      %35 = sbr.rel (0) target = $region21
    $region20: #{tpu_custom_call.1} parent=1 // pred_region
      _
    $region21: #{tpu_custom_call.1} parent=1 // pred_fallthru
      _
    // Predicated region
    $region22: #{tpu_custom_call.1} parent=1 // pred_check
      _
    $region23: #{tpu_custom_call.1} parent=1 // pred_check_branch
      %37 = sbr.rel (0) target = $region25
    $region24: #{tpu_custom_call.1} parent=1 // pred_region
      _
    $region25: #{tpu_custom_call.1} parent=1 // pred_fallthru
      _
    // Predicated region
    $region26: #{tpu_custom_call.1} parent=1 // pred_check
      _
    $region27: #{tpu_custom_call.1} parent=1 // pred_check_branch
      %39 = sbr.rel (0) target = $region29
    $region28: #{tpu_custom_call.1} parent=1 // pred_region
      _
    $region29: #{tpu_custom_call.1} parent=1 // pred_fallthru
      _
    // Predicated region
    $region30: #{tpu_custom_call.1} parent=1 // pred_check
      _
    $region31: #{tpu_custom_call.1} parent=1 // pred_check_branch
      %41 = sbr.rel (0) target = $region33
    $region32: #{tpu_custom_call.1} parent=1 // pred_region
      _
    $region33: #{tpu_custom_call.1} parent=1 // pred_fallthru
      _
    // Predicated region
    $region34: #{tpu_custom_call.1} parent=1 // pred_check
      _
    $region35: #{tpu_custom_call.1} parent=1 // pred_check_branch
      %43 = sbr.rel (0) target = $region37
    $region36: #{tpu_custom_call.1} parent=1 // pred_region
      _
    $region37: #{tpu_custom_call.1} parent=1 // pred_fallthru
      _
    // Predicated region
    $region38: #{tpu_custom_call.1} parent=1 // pred_check
      _
    $region39: #{tpu_custom_call.1} parent=1 // pred_check_branch
      %45 = sbr.rel (0) target = $region41
    $region40: #{tpu_custom_call.1} parent=1 // pred_region
      %46 = dma.done [#allocation3], 20480
    $region41: #{tpu_custom_call.1} parent=1 // pred_fallthru
      _
    %v47 = vld [vmem:[%s0] sm:$0xff]
    %v48 = vld [vmem:[%s0 + $0x8] sm:$0xff]
    %v49 = vld [vmem:[%s0 + $0x10] sm:$0xff]
    %v50 = vld [vmem:[%s0 + $0x18] sm:$0xff]
    %v51 = vld [vmem:[%s0 + $0x20] sm:$0xff]
    %v52 = vld [vmem:[%s0 + $0x28] sm:$0xff]
    %v53 = vld [vmem:[%s0 + $0x30] sm:$0xff]
    %v54 = vld [vmem:[%s0 + $0x38] sm:$0xff]
    %v55 = vld [vmem:[%s0 + $0x40] sm:$0xff]
    %v56 = vld [vmem:[%s0 + $0x48] sm:$0xff]
    %v57 = vld [vmem:[%s0 + $0x50] sm:$0xff]
    %v58 = vld [vmem:[%s0 + $0x58] sm:$0xff]
    %v59 = vld [vmem:[%s0 + $0x60] sm:$0xff]
    %v60 = vld [vmem:[%s0 + $0x68] sm:$0xff]
    %v61 = vld [vmem:[%s0 + $0x70] sm:$0xff]
    %v62 = vld [vmem:[%s0 + $0x78] sm:$0xff]
    %v63 = vld [vmem:[%s0 + $0x80] sm:$0xff]
    %v64 = vld [vmem:[%s0 + $0x88] sm:$0xff]
    %v65 = vld [vmem:[%s0 + $0x90] sm:$0xff]
    %v66 = vld [vmem:[%s0 + $0x98] sm:$0xff]
    %v67 = vld [vmem:[%s0 + $0xa0] sm:$0xff]
    %v68 = vld [vmem:[%s0 + $0xa8] sm:$0xff]
    %v69 = vld [vmem:[%s0 + $0xb0] sm:$0xff]
    %v70 = vld [vmem:[%s0 + $0xb8] sm:$0xff]
    %v71 = vld [vmem:[%s0 + $0xc0] sm:$0xff]
    %v72 = vld [vmem:[%s0 + $0xc8] sm:$0xff]
    %v73 = vld [vmem:[%s0 + $0xd0] sm:$0xff]
    %v74 = vld [vmem:[%s0 + $0xd8] sm:$0xff]
    %v75 = vld [vmem:[%s1] sm:$0xff]
    %v76 = vld [vmem:[%s1 + $0x8] sm:$0xff]
    %v77 = vld [vmem:[%s1 + $0x10] sm:$0xff]
    %v78 = vld [vmem:[%s1 + $0x18] sm:$0xff]
    %v79 = vld [vmem:[%s1 + $0x20] sm:$0xff]
    %v80 = vld [vmem:[%s1 + $0x28] sm:$0xff]
    %v81 = vld [vmem:[%s1 + $0x30] sm:$0xf]
    %v82 = vld [vmem:[%s1 + $0x38] sm:$0xf]
    %v83 = vld [vmem:[%s1 + $0x40] sm:$0xff]
    %v84 = vld [vmem:[%s1 + $0x48] sm:$0xff]
    %v85 = vld [vmem:[%s1 + $0x50] sm:$0xff]
    %v86 = vld [vmem:[%s1 + $0x58] sm:$0xff]
    %v87 = vld [vmem:[%s1 + $0x60] sm:$0xff]
    %v88 = vld [vmem:[%s1 + $0x68] sm:$0xff]
    %v89 = vld [vmem:[%s1 + $0x70] sm:$0xf]
    %v90 = vld [vmem:[%s1 + $0x78] sm:$0xf]
    %v91 = vld [vmem:[%s1 + $0x80] sm:$0xff]
    %v92 = vld [vmem:[%s1 + $0x88] sm:$0xff]
    %v93 = vld [vmem:[%s1 + $0x90] sm:$0xff]
    %v94 = vld [vmem:[%s1 + $0x98] sm:$0xff]
    %v95 = vld [vmem:[%s1 + $0xa0] sm:$0xff]
    %v96 = vld [vmem:[%s1 + $0xa8] sm:$0xff]
    %v97 = vld [vmem:[%s1 + $0xb0] sm:$0xf]
    %v98 = vld [vmem:[%s1 + $0xb8] sm:$0xf]
    %v99 = vld [vmem:[%s1 + $0xc0] sm:$0xff]
    %v100 = vld [vmem:[%s1 + $0xc8] sm:$0xff]
    %v101 = vld [vmem:[%s1 + $0xd0] sm:$0xff]
    %v102 = vld [vmem:[%s1 + $0xd8] sm:$0xff]
    %v103 = vld [vmem:[%s1 + $0xe0] sm:$0xff]
    %v104 = vld [vmem:[%s1 + $0xe8] sm:$0xff]
    %v105 = vld [vmem:[%s1 + $0xf0] sm:$0xf]
    %v106 = vld [vmem:[%s1 + $0xf8] sm:$0xf]
    %v107 = vld [vmem:[%s1 + $0x100] sm:$0xff]
    %v108 = vld [vmem:[%s1 + $0x108] sm:$0xff]
    %v109 = vld [vmem:[%s1 + $0x110] sm:$0xff]
    %v110 = vld [vmem:[%s1 + $0x118] sm:$0xff]
    %v111 = vld [vmem:[%s1 + $0x120] sm:$0xff]
    %v112 = vld [vmem:[%s1 + $0x128] sm:$0xff]
    %v113 = vld [vmem:[%s1 + $0x130] sm:$0xf]
    %v114 = vld [vmem:[%s1 + $0x138] sm:$0xf]
    %vm115 = vcmask 228352
    %v117 = vsel %vm115, %v48, 0
    %v120 = vsel %vm115, %v49, 0
    %v123 = vsel %vm115, %v50, 0
    %v126 = vsel %vm115, %v51, 0
    %v129 = vsel %vm115, %v52, 0
    %v132 = vsel %vm115, %v53, 0
    %v135 = vsel %vm115, %v54, 0
    %v138 = vsel %vm115, %v55, 0
    %v141 = vsel %vm115, %v56, 0
    %v144 = vsel %vm115, %v57, 0
    %v147 = vsel %vm115, %v58, 0
    %v150 = vsel %vm115, %v59, 0
    %v153 = vsel %vm115, %v60, 0
    %v156 = vsel %vm115, %v61, 0
    %v159 = vsel %vm115, %v62, 0
    %v162 = vsel %vm115, %v63, 0
    %v165 = vsel %vm115, %v64, 0
    %v168 = vsel %vm115, %v65, 0
    %v171 = vsel %vm115, %v66, 0
    %v174 = vsel %vm115, %v67, 0
    %v177 = vsel %vm115, %v68, 0
    %v180 = vsel %vm115, %v69, 0
    %v183 = vsel %vm115, %v70, 0
    %v186 = vsel %vm115, %v71, 0
    %vm188 = vcmask 1043456
    %v190 = vsel %vm188, %v89, 0
    %v193 = vsel %vm188, %v90, 0
    %195 = vmatprep.subr.mxu0 %v84
    %196 = vmatpush1.msra.mxu0 %v83
    %197 = vmatprep.subr.mxu0 %v86
    %198 = vmatpush1.msra.mxu0 %v85
    %199 = vmatprep.subr.mxu0 %v88
    %200 = vmatpush1.msra.mxu0 %v87
    %201 = vmatprep.subr.mxu0 %v193
    %202 = vmatpush1.msra.mxu0 %v190
    %203 = vmatprep.subr.mxu0 0.0
    %204 = vmatpush1.msra.mxu0 0.0
    %205 = vmatprep.subr.mxu0 0.0
    %206 = vmatpush1.msra.mxu0 0.0
    %207 = vmatprep.subr.mxu0 0.0
    %208 = vmatpush1.msra.mxu0 0.0
    %209 = vmatprep.subr.mxu0 0.0
    %210 = vmatpush1.msra.mxu0 0.0
    %211 = vmatprep.subr.mxu0 0.0
    %212 = vmatpush1.msra.mxu0 0.0
    %213 = vmatprep.subr.mxu0 0.0
    %214 = vmatpush1.msra.mxu0 0.0
    %215 = vmatprep.subr.mxu0 0.0
    %216 = vmatpush1.msra.mxu0 0.0
    %217 = vmatprep.subr.mxu0 0.0
    %218 = vmatpush1.msra.mxu0 0.0
    %219 = vmatprep.subr.mxu0 0.0
    %220 = vmatpush1.msra.mxu0 0.0
    %221 = vmatprep.subr.mxu0 0.0
    %222 = vmatpush1.msra.mxu0 0.0
    %223 = vmatprep.subr.mxu0 0.0
    %224 = vmatpush1.msra.mxu0 0.0
    %225 = vmatprep.subr.mxu0 0.0
    %226 = vmatpush1.msra.mxu0 0.0
    %227 = vmatprep.subr.mxu0 0.0
    %228 = vmatpush1.msra.mxu0 0.0
    %229 = vmatprep.subr.mxu0 0.0
    %230 = vmatpush1.msra.mxu0 0.0
    %231 = vmatprep.subr.mxu0 0.0
    %232 = vmatpush1.msra.mxu0 0.0
    %233 = vmatprep.subr.mxu0 0.0
    %234 = vmatpush1.msra.mxu0 0.0
    %235 = vmatprep.subr.mxu0 0.0
    %236 = vmatpush1.msra.mxu0 0.0
    %237 = vmatprep.subr.mxu0 0.0
    %238 = vmatpush1.msra.mxu0 0.0
    %239 = vmatprep.subr.mxu0 0.0
    %240 = vmatpush1.msra.mxu0 0.0
    %241 = vmatprep.subr.mxu0 0.0
    %242 = vmatpush1.msra.mxu0 0.0
    %243 = vmatprep.subr.mxu0 0.0
    %244 = vmatpush1.msra.mxu0 0.0
    %245 = vmatprep.subr.mxu0 0.0
    %246 = vmatpush1.msra.mxu0 0.0
    %247 = vmatprep.subr.mxu0 0.0
    %248 = vmatpush1.msra.mxu0 0.0
    %249 = vmatprep.subr.mxu0 0.0
    %250 = vmatpush1.msra.mxu0 0.0
    %251 = vmatprep.subr.mxu0 0.0
    %252 = vmatpush1.msra.mxu0 0.0
    %253 = vmatprep.subr.mxu0 0.0
    %254 = vmatpush1.msra.mxu0 0.0
    %255 = vmatprep.subr.mxu0 0.0
    %256 = vmatpush1.msra.mxu0 0.0
    %257 = vmatprep.subr.mxu0 0.0
    %258 = vmatpush1.msra.mxu0 0.0
    %259 = vmatprep.mubr.f32.mxu0 0.0
    %260 = vmatmul.mubr.f32.gmra.mrb[0].mxu0 %v117
    %v261 = vpop.f32.mrb[0].mxu0
    %v262 = vadd.f32 0.0, %v261
    %v263 = vpop.f32.mrb[0].mxu0
    %v264 = vadd.f32 0.0, %v263
    %265 = vmatprep.mubr.f32.mxu0 0.0
    %266 = vmatmul.mubr.f32.gmra.mrb[0].mxu0 %v120
    %v267 = vpop.f32.mrb[0].mxu0
    %v268 = vadd.f32 0.0, %v267
    %v269 = vpop.f32.mrb[0].mxu0
    %v270 = vadd.f32 0.0, %v269
    %271 = vmatprep.mubr.f32.mxu0 0.0
    %272 = vmatmul.mubr.f32.gmra.mrb[0].mxu0 %v123
    %v273 = vpop.f32.mrb[0].mxu0
    %v274 = vadd.f32 0.0, %v273
    %v275 = vpop.f32.mrb[0].mxu0
    %v276 = vadd.f32 0.0, %v275
    %277 = vmatprep.mubr.f32.mxu0 0.0
    %278 = vmatmul.mubr.f32.gmra.mrb[0].mxu0 %v126
    %v279 = vpop.f32.mrb[0].mxu0
    %v280 = vadd.f32 0.0, %v279
    %v281 = vpop.f32.mrb[0].mxu0
    %v282 = vadd.f32 0.0, %v281
    %283 = vmatprep.mubr.f32.mxu0 0.0
    %284 = vmatmul.mubr.f32.gmra.mrb[0].mxu0 %v129
    %v285 = vpop.f32.mrb[0].mxu0
    %v286 = vadd.f32 0.0, %v285
    %v287 = vpop.f32.mrb[0].mxu0
    %v288 = vadd.f32 0.0, %v287
    %289 = vmatprep.mubr.f32.mxu0 0.0
    %290 = vmatmul.mubr.f32.gmra.mrb[0].mxu0 %v132
    %v291 = vpop.f32.mrb[0].mxu0
    %v292 = vadd.f32 0.0, %v291
    %v293 = vpop.f32.mrb[0].mxu0
    %v294 = vadd.f32 0.0, %v293
    %295 = vmatprep.mubr.f32.mxu0 0.0
    %296 = vmatmul.mubr.f32.gmra.mrb[0].mxu0 %v135
    %v297 = vpop.f32.mrb[0].mxu0
    %v298 = vadd.f32 0.0, %v297
    %v299 = vpop.f32.mrb[0].mxu0
    %v300 = vadd.f32 0.0, %v299
    %301 = vmatprep.mubr.f32.mxu0 0.0
    %302 = vmatmul.mubr.f32.gmra.mrb[0].mxu0 %v138
    %v303 = vpop.f32.mrb[0].mxu0
    %v304 = vadd.f32 0.0, %v303
    %v305 = vpop.f32.mrb[0].mxu0
    %v306 = vadd.f32 0.0, %v305
    %307 = vmatprep.mubr.f32.mxu0 0.0
    %308 = vmatmul.mubr.f32.gmra.mrb[0].mxu0 %v141
    %v309 = vpop.f32.mrb[0].mxu0
    %v310 = vadd.f32 0.0, %v309
    %v311 = vpop.f32.mrb[0].mxu0
    %v312 = vadd.f32 0.0, %v311
    %313 = vmatprep.mubr.f32.mxu0 0.0
    %314 = vmatmul.mubr.f32.gmra.mrb[0].mxu0 %v144
    %v315 = vpop.f32.mrb[0].mxu0
    %v316 = vadd.f32 0.0, %v315
    %v317 = vpop.f32.mrb[0].mxu0
    %v318 = vadd.f32 0.0, %v317
    %319 = vmatprep.mubr.f32.mxu0 0.0
    %320 = vmatmul.mubr.f32.gmra.mrb[0].mxu0 %v147
    %v321 = vpop.f32.mrb[0].mxu0
    %v322 = vadd.f32 0.0, %v321
    %v323 = vpop.f32.mrb[0].mxu0
    %v324 = vadd.f32 0.0, %v323
    %325 = vmatprep.mubr.f32.mxu0 0.0
    %326 = vmatmul.mubr.f32.gmra.mrb[0].mxu0 %v150
    %v327 = vpop.f32.mrb[0].mxu0
    %v328 = vadd.f32 0.0, %v327
    %v329 = vpop.f32.mrb[0].mxu0
    %v330 = vadd.f32 0.0, %v329
    %331 = vmatprep.mubr.f32.mxu0 0.0
    %332 = vmatmul.mubr.f32.gmra.mrb[0].mxu0 %v153
    %v333 = vpop.f32.mrb[0].mxu0
    %v334 = vadd.f32 0.0, %v333
    %v335 = vpop.f32.mrb[0].mxu0
    %v336 = vadd.f32 0.0, %v335
    %337 = vmatprep.mubr.f32.mxu0 0.0
    %338 = vmatmul.mubr.f32.gmra.mrb[0].mxu0 %v156
    %v339 = vpop.f32.mrb[0].mxu0
    %v340 = vadd.f32 0.0, %v339
    %v341 = vpop.f32.mrb[0].mxu0
    %v342 = vadd.f32 0.0, %v341
    %343 = vmatprep.mubr.f32.mxu0 0.0
    %344 = vmatmul.mubr.f32.gmra.mrb[0].mxu0 %v159
    %v345 = vpop.f32.mrb[0].mxu0
    %v346 = vadd.f32 0.0, %v345
    %v347 = vpop.f32.mrb[0].mxu0
    %v348 = vadd.f32 0.0, %v347
    %349 = vmatprep.mubr.f32.mxu0 0.0
    %350 = vmatmul.mubr.f32.gmra.mrb[0].mxu0 %v162
    %v351 = vpop.f32.mrb[0].mxu0
    %v352 = vadd.f32 0.0, %v351
    %v353 = vpop.f32.mrb[0].mxu0
    %v354 = vadd.f32 0.0, %v353
    %355 = vmatprep.mubr.f32.mxu0 0.0
    %356 = vmatmul.mubr.f32.gmra.mrb[0].mxu0 %v165
    %v357 = vpop.f32.mrb[0].mxu0
    %v358 = vadd.f32 0.0, %v357
    %v359 = vpop.f32.mrb[0].mxu0
    %v360 = vadd.f32 0.0, %v359
    %361 = vmatprep.mubr.f32.mxu0 0.0
    %362 = vmatmul.mubr.f32.gmra.mrb[0].mxu0 %v168
    %v363 = vpop.f32.mrb[0].mxu0
    %v364 = vadd.f32 0.0, %v363
    %v365 = vpop.f32.mrb[0].mxu0
    %v366 = vadd.f32 0.0, %v365
    %367 = vmatprep.mubr.f32.mxu0 0.0
    %368 = vmatmul.mubr.f32.gmra.mrb[0].mxu0 %v171
    %v369 = vpop.f32.mrb[0].mxu0
    %v370 = vadd.f32 0.0, %v369
    %v371 = vpop.f32.mrb[0].mxu0
    %v372 = vadd.f32 0.0, %v371
    %373 = vmatprep.mubr.f32.mxu0 0.0
    %374 = vmatmul.mubr.f32.gmra.mrb[0].mxu0 %v174
    %v375 = vpop.f32.mrb[0].mxu0
    %v376 = vadd.f32 0.0, %v375
    %v377 = vpop.f32.mrb[0].mxu0
    %v378 = vadd.f32 0.0, %v377
    %379 = vmatprep.mubr.f32.mxu0 0.0
    %380 = vmatmul.mubr.f32.gmra.mrb[0].mxu0 %v177
    %v381 = vpop.f32.mrb[0].mxu0
    %v382 = vadd.f32 0.0, %v381
    %v383 = vpop.f32.mrb[0].mxu0
    %v384 = vadd.f32 0.0, %v383
    %385 = vmatprep.mubr.f32.mxu0 0.0
    %386 = vmatmul.mubr.f32.gmra.mrb[0].mxu0 %v180
    %v387 = vpop.f32.mrb[0].mxu0
    %v388 = vadd.f32 0.0, %v387
    %v389 = vpop.f32.mrb[0].mxu0
    %v390 = vadd.f32 0.0, %v389
    %391 = vmatprep.mubr.f32.mxu0 0.0
    %392 = vmatmul.mubr.f32.gmra.mrb[0].mxu0 %v183
    %v393 = vpop.f32.mrb[0].mxu0
    %v394 = vadd.f32 0.0, %v393
    %v395 = vpop.f32.mrb[0].mxu0
    %v396 = vadd.f32 0.0, %v395
    %397 = vmatprep.mubr.f32.mxu0 0.0
    %398 = vmatmul.mubr.f32.gmra.mrb[0].mxu0 %v186
    %v399 = vpop.f32.mrb[0].mxu0
    %v400 = vadd.f32 0.0, %v399
    %v401 = vpop.f32.mrb[0].mxu0
    %v402 = vadd.f32 0.0, %v401
    %403 = vdwg.mxu0
    %v405 = vsel %vm115, %v47, 0
    %v408 = vsel %vm188, %v81, 0
    %v411 = vsel %vm188, %v82, 0
    %413 = vmatprep.subr.mxu0 %v76
    %414 = vmatpush1.msra.mxu0 %v75
    %415 = vmatprep.subr.mxu0 %v78
    %416 = vmatpush1.msra.mxu0 %v77
    %417 = vmatprep.subr.mxu0 %v80
    %418 = vmatpush1.msra.mxu0 %v79
    %419 = vmatprep.subr.mxu0 %v411
    %420 = vmatpush1.msra.mxu0 %v408
    %421 = vmatprep.subr.mxu0 0.0
    %422 = vmatpush1.msra.mxu0 0.0
    %423 = vmatprep.subr.mxu0 0.0
    %424 = vmatpush1.msra.mxu0 0.0
    %425 = vmatprep.subr.mxu0 0.0
    %426 = vmatpush1.msra.mxu0 0.0
    %427 = vmatprep.subr.mxu0 0.0
    %428 = vmatpush1.msra.mxu0 0.0
    %429 = vmatprep.subr.mxu0 0.0
    %430 = vmatpush1.msra.mxu0 0.0
    %431 = vmatprep.subr.mxu0 0.0
    %432 = vmatpush1.msra.mxu0 0.0
    %433 = vmatprep.subr.mxu0 0.0
    %434 = vmatpush1.msra.mxu0 0.0
    %435 = vmatprep.subr.mxu0 0.0
    %436 = vmatpush1.msra.mxu0 0.0
    %437 = vmatprep.subr.mxu0 0.0
    %438 = vmatpush1.msra.mxu0 0.0
    %439 = vmatprep.subr.mxu0 0.0
    %440 = vmatpush1.msra.mxu0 0.0
    %441 = vmatprep.subr.mxu0 0.0
    %442 = vmatpush1.msra.mxu0 0.0
    %443 = vmatprep.subr.mxu0 0.0
    %444 = vmatpush1.msra.mxu0 0.0
    %445 = vmatprep.subr.mxu0 0.0
    %446 = vmatpush1.msra.mxu0 0.0
    %447 = vmatprep.subr.mxu0 0.0
    %448 = vmatpush1.msra.mxu0 0.0
    %449 = vmatprep.subr.mxu0 0.0
    %450 = vmatpush1.msra.mxu0 0.0
    %451 = vmatprep.subr.mxu0 0.0
    %452 = vmatpush1.msra.mxu0 0.0
    %453 = vmatprep.subr.mxu0 0.0
    %454 = vmatpush1.msra.mxu0 0.0
    %455 = vmatprep.subr.mxu0 0.0
    %456 = vmatpush1.msra.mxu0 0.0
    %457 = vmatprep.subr.mxu0 0.0
    %458 = vmatpush1.msra.mxu0 0.0
    %459 = vmatprep.subr.mxu0 0.0
    %460 = vmatpush1.msra.mxu0 0.0
    %461 = vmatprep.subr.mxu0 0.0
    %462 = vmatpush1.msra.mxu0 0.0
    %463 = vmatprep.subr.mxu0 0.0
    %464 = vmatpush1.msra.mxu0 0.0
    %465 = vmatprep.subr.mxu0 0.0
    %466 = vmatpush1.msra.mxu0 0.0
    %467 = vmatprep.subr.mxu0 0.0
    %468 = vmatpush1.msra.mxu0 0.0
    %469 = vmatprep.subr.mxu0 0.0
    %470 = vmatpush1.msra.mxu0 0.0
    %471 = vmatprep.subr.mxu0 0.0
    %472 = vmatpush1.msra.mxu0 0.0
    %473 = vmatprep.subr.mxu0 0.0
    %474 = vmatpush1.msra.mxu0 0.0
    %475 = vmatprep.subr.mxu0 0.0
    %476 = vmatpush1.msra.mxu0 0.0
    %477 = vmatprep.mubr.f32.mxu0 0.0
    %478 = vmatmul.mubr.f32.gmra.mrb[0].mxu0 %v405
    %v479 = vpop.f32.mrb[0].mxu0
    %v480 = vadd.f32 %v262, %v479
    %v481 = vpop.f32.mrb[0].mxu0
    %v482 = vadd.f32 %v264, %v481
    %483 = vmatprep.mubr.f32.mxu0 0.0
    %484 = vmatmul.mubr.f32.gmra.mrb[0].mxu0 %v117
    %v485 = vpop.f32.mrb[0].mxu0
    %v486 = vadd.f32 %v268, %v485
    %v487 = vpop.f32.mrb[0].mxu0
    %v488 = vadd.f32 %v270, %v487
    %489 = vmatprep.mubr.f32.mxu0 0.0
    %490 = vmatmul.mubr.f32.gmra.mrb[0].mxu0 %v120
    %v491 = vpop.f32.mrb[0].mxu0
    %v492 = vadd.f32 %v274, %v491
    %v493 = vpop.f32.mrb[0].mxu0
    %v494 = vadd.f32 %v276, %v493
    %495 = vmatprep.mubr.f32.mxu0 0.0
    %496 = vmatmul.mubr.f32.gmra.mrb[0].mxu0 %v123
    %v497 = vpop.f32.mrb[0].mxu0
    %v498 = vadd.f32 %v280, %v497
    %v499 = vpop.f32.mrb[0].mxu0
    %v500 = vadd.f32 %v282, %v499
    %501 = vmatprep.mubr.f32.mxu0 0.0
    %502 = vmatmul.mubr.f32.gmra.mrb[0].mxu0 %v126
    %v503 = vpop.f32.mrb[0].mxu0
    %v504 = vadd.f32 %v286, %v503
    %v505 = vpop.f32.mrb[0].mxu0
    %v506 = vadd.f32 %v288, %v505
    %507 = vmatprep.mubr.f32.mxu0 0.0
    %508 = vmatmul.mubr.f32.gmra.mrb[0].mxu0 %v129
    %v509 = vpop.f32.mrb[0].mxu0
    %v510 = vadd.f32 %v292, %v509
    %v511 = vpop.f32.mrb[0].mxu0
    %v512 = vadd.f32 %v294, %v511
    %513 = vmatprep.mubr.f32.mxu0 0.0
    %514 = vmatmul.mubr.f32.gmra.mrb[0].mxu0 %v132
    %v515 = vpop.f32.mrb[0].mxu0
    %v516 = vadd.f32 %v298, %v515
    %v517 = vpop.f32.mrb[0].mxu0
    %v518 = vadd.f32 %v300, %v517
    %519 = vmatprep.mubr.f32.mxu0 0.0
    %520 = vmatmul.mubr.f32.gmra.mrb[0].mxu0 %v135
    %v521 = vpop.f32.mrb[0].mxu0
    %v522 = vadd.f32 %v304, %v521
    %v523 = vpop.f32.mrb[0].mxu0
    %v524 = vadd.f32 %v306, %v523
    %525 = vmatprep.mubr.f32.mxu0 0.0
    %526 = vmatmul.mubr.f32.gmra.mrb[0].mxu0 %v138
    %v527 = vpop.f32.mrb[0].mxu0
    %v528 = vadd.f32 %v310, %v527
    %v529 = vpop.f32.mrb[0].mxu0
    %v530 = vadd.f32 %v312, %v529
    %531 = vmatprep.mubr.f32.mxu0 0.0
    %532 = vmatmul.mubr.f32.gmra.mrb[0].mxu0 %v141
    %v533 = vpop.f32.mrb[0].mxu0
    %v534 = vadd.f32 %v316, %v533
    %v535 = vpop.f32.mrb[0].mxu0
    %v536 = vadd.f32 %v318, %v535
    %537 = vmatprep.mubr.f32.mxu0 0.0
    %538 = vmatmul.mubr.f32.gmra.mrb[0].mxu0 %v144
    %v539 = vpop.f32.mrb[0].mxu0
    %v540 = vadd.f32 %v322, %v539
    %v541 = vpop.f32.mrb[0].mxu0
    %v542 = vadd.f32 %v324, %v541
    %543 = vmatprep.mubr.f32.mxu0 0.0
    %544 = vmatmul.mubr.f32.gmra.mrb[0].mxu0 %v147
    %v545 = vpop.f32.mrb[0].mxu0
    %v546 = vadd.f32 %v328, %v545
    %v547 = vpop.f32.mrb[0].mxu0
    %v548 = vadd.f32 %v330, %v547
    %549 = vmatprep.mubr.f32.mxu0 0.0
    %550 = vmatmul.mubr.f32.gmra.mrb[0].mxu0 %v150
    %v551 = vpop.f32.mrb[0].mxu0
    %v552 = vadd.f32 %v334, %v551
    %v553 = vpop.f32.mrb[0].mxu0
    %v554 = vadd.f32 %v336, %v553
    %555 = vmatprep.mubr.f32.mxu0 0.0
    %556 = vmatmul.mubr.f32.gmra.mrb[0].mxu0 %v153
    %v557 = vpop.f32.mrb[0].mxu0
    %v558 = vadd.f32 %v340, %v557
    %v559 = vpop.f32.mrb[0].mxu0
    %v560 = vadd.f32 %v342, %v559
    %561 = vmatprep.mubr.f32.mxu0 0.0
    %562 = vmatmul.mubr.f32.gmra.mrb[0].mxu0 %v156
    %v563 = vpop.f32.mrb[0].mxu0
    %v564 = vadd.f32 %v346, %v563
    %v565 = vpop.f32.mrb[0].mxu0
    %v566 = vadd.f32 %v348, %v565
    %567 = vmatprep.mubr.f32.mxu0 0.0
    %568 = vmatmul.mubr.f32.gmra.mrb[0].mxu0 %v159
    %v569 = vpop.f32.mrb[0].mxu0
    %v570 = vadd.f32 %v352, %v569
    %v571 = vpop.f32.mrb[0].mxu0
    %v572 = vadd.f32 %v354, %v571
    %573 = vmatprep.mubr.f32.mxu0 0.0
    %574 = vmatmul.mubr.f32.gmra.mrb[0].mxu0 %v162
    %v575 = vpop.f32.mrb[0].mxu0
    %v576 = vadd.f32 %v358, %v575
    %v577 = vpop.f32.mrb[0].mxu0
    %v578 = vadd.f32 %v360, %v577
    %579 = vmatprep.mubr.f32.mxu0 0.0
    %580 = vmatmul.mubr.f32.gmra.mrb[0].mxu0 %v165
    %v581 = vpop.f32.mrb[0].mxu0
    %v582 = vadd.f32 %v364, %v581
    %v583 = vpop.f32.mrb[0].mxu0
    %v584 = vadd.f32 %v366, %v583
    %585 = vmatprep.mubr.f32.mxu0 0.0
    %586 = vmatmul.mubr.f32.gmra.mrb[0].mxu0 %v168
    %v587 = vpop.f32.mrb[0].mxu0
    %v588 = vadd.f32 %v370, %v587
    %v589 = vpop.f32.mrb[0].mxu0
    %v590 = vadd.f32 %v372, %v589
    %591 = vmatprep.mubr.f32.mxu0 0.0
    %592 = vmatmul.mubr.f32.gmra.mrb[0].mxu0 %v171
    %v593 = vpop.f32.mrb[0].mxu0
    %v594 = vadd.f32 %v376, %v593
    %v595 = vpop.f32.mrb[0].mxu0
    %v596 = vadd.f32 %v378, %v595
    %597 = vmatprep.mubr.f32.mxu0 0.0
    %598 = vmatmul.mubr.f32.gmra.mrb[0].mxu0 %v174
    %v599 = vpop.f32.mrb[0].mxu0
    %v600 = vadd.f32 %v382, %v599
    %v601 = vpop.f32.mrb[0].mxu0
    %v602 = vadd.f32 %v384, %v601
    %603 = vmatprep.mubr.f32.mxu0 0.0
    %604 = vmatmul.mubr.f32.gmra.mrb[0].mxu0 %v177
    %v605 = vpop.f32.mrb[0].mxu0
    %v606 = vadd.f32 %v388, %v605
    %v607 = vpop.f32.mrb[0].mxu0
    %v608 = vadd.f32 %v390, %v607
    %609 = vmatprep.mubr.f32.mxu0 0.0
    %610 = vmatmul.mubr.f32.gmra.mrb[0].mxu0 %v180
    %v611 = vpop.f32.mrb[0].mxu0
    %v612 = vadd.f32 %v394, %v611
    %v613 = vpop.f32.mrb[0].mxu0
    %v614 = vadd.f32 %v396, %v613
    %615 = vmatprep.mubr.f32.mxu0 0.0
    %616 = vmatmul.mubr.f32.gmra.mrb[0].mxu0 %v183
    %v617 = vpop.f32.mrb[0].mxu0
    %v618 = vadd.f32 %v400, %v617
    %v619 = vpop.f32.mrb[0].mxu0
    %v620 = vadd.f32 %v402, %v619
    %621 = vdwg.mxu0
    %v623 = vsel %vm115, %v72, 0
    %v626 = vsel %vm188, %v97, 0
    %v629 = vsel %vm188, %v98, 0
    %631 = vmatprep.subr.mxu0 %v92
    %632 = vmatpush1.msra.mxu0 %v91
    %633 = vmatprep.subr.mxu0 %v94
    %634 = vmatpush1.msra.mxu0 %v93
    %635 = vmatprep.subr.mxu0 %v96
    %636 = vmatpush1.msra.mxu0 %v95
    %637 = vmatprep.subr.mxu0 %v629
    %638 = vmatpush1.msra.mxu0 %v626
    %639 = vmatprep.subr.mxu0 0.0
    %640 = vmatpush1.msra.mxu0 0.0
    %641 = vmatprep.subr.mxu0 0.0
    %642 = vmatpush1.msra.mxu0 0.0
    %643 = vmatprep.subr.mxu0 0.0
    %644 = vmatpush1.msra.mxu0 0.0
    %645 = vmatprep.subr.mxu0 0.0
    %646 = vmatpush1.msra.mxu0 0.0
    %647 = vmatprep.subr.mxu0 0.0
    %648 = vmatpush1.msra.mxu0 0.0
    %649 = vmatprep.subr.mxu0 0.0
    %650 = vmatpush1.msra.mxu0 0.0
    %651 = vmatprep.subr.mxu0 0.0
    %652 = vmatpush1.msra.mxu0 0.0
    %653 = vmatprep.subr.mxu0 0.0
    %654 = vmatpush1.msra.mxu0 0.0
    %655 = vmatprep.subr.mxu0 0.0
    %656 = vmatpush1.msra.mxu0 0.0
    %657 = vmatprep.subr.mxu0 0.0
    %658 = vmatpush1.msra.mxu0 0.0
    %659 = vmatprep.subr.mxu0 0.0
    %660 = vmatpush1.msra.mxu0 0.0
    %661 = vmatprep.subr.mxu0 0.0
    %662 = vmatpush1.msra.mxu0 0.0
    %663 = vmatprep.subr.mxu0 0.0
    %664 = vmatpush1.msra.mxu0 0.0
    %665 = vmatprep.subr.mxu0 0.0
    %666 = vmatpush1.msra.mxu0 0.0
    %667 = vmatprep.subr.mxu0 0.0
    %668 = vmatpush1.msra.mxu0 0.0
    %669 = vmatprep.subr.mxu0 0.0
    %670 = vmatpush1.msra.mxu0 0.0
    %671 = vmatprep.subr.mxu0 0.0
    %672 = vmatpush1.msra.mxu0 0.0
    %673 = vmatprep.subr.mxu0 0.0
    %674 = vmatpush1.msra.mxu0 0.0
    %675 = vmatprep.subr.mxu0 0.0
    %676 = vmatpush1.msra.mxu0 0.0
    %677 = vmatprep.subr.mxu0 0.0
    %678 = vmatpush1.msra.mxu0 0.0
    %679 = vmatprep.subr.mxu0 0.0
    %680 = vmatpush1.msra.mxu0 0.0
    %681 = vmatprep.subr.mxu0 0.0
    %682 = vmatpush1.msra.mxu0 0.0
    %683 = vmatprep.subr.mxu0 0.0
    %684 = vmatpush1.msra.mxu0 0.0
    %685 = vmatprep.subr.mxu0 0.0
    %686 = vmatpush1.msra.mxu0 0.0
    %687 = vmatprep.subr.mxu0 0.0
    %688 = vmatpush1.msra.mxu0 0.0
    %689 = vmatprep.subr.mxu0 0.0
    %690 = vmatpush1.msra.mxu0 0.0
    %691 = vmatprep.subr.mxu0 0.0
    %692 = vmatpush1.msra.mxu0 0.0
    %693 = vmatprep.subr.mxu0 0.0
    %694 = vmatpush1.msra.mxu0 0.0
    %695 = vmatprep.mubr.f32.mxu0 0.0
    %696 = vmatmul.mubr.f32.gmra.mrb[0].mxu0 %v120
    %v697 = vpop.f32.mrb[0].mxu0
    %v698 = vadd.f32 0.0, %v697
    %v699 = vpop.f32.mrb[0].mxu0
    %v700 = vadd.f32 0.0, %v699
    %701 = vmatprep.mubr.f32.mxu0 0.0
    %702 = vmatmul.mubr.f32.gmra.mrb[0].mxu0 %v123
    %v703 = vpop.f32.mrb[0].mxu0
    %v704 = vadd.f32 0.0, %v703
    %v705 = vpop.f32.mrb[0].mxu0
    %v706 = vadd.f32 0.0, %v705
    %707 = vmatprep.mubr.f32.mxu0 0.0
    %708 = vmatmul.mubr.f32.gmra.mrb[0].mxu0 %v126
    %v709 = vpop.f32.mrb[0].mxu0
    %v710 = vadd.f32 0.0, %v709
    %v711 = vpop.f32.mrb[0].mxu0
    %v712 = vadd.f32 0.0, %v711
    %713 = vmatprep.mubr.f32.mxu0 0.0
    %714 = vmatmul.mubr.f32.gmra.mrb[0].mxu0 %v129
    %v715 = vpop.f32.mrb[0].mxu0
    %v716 = vadd.f32 0.0, %v715
    %v717 = vpop.f32.mrb[0].mxu0
    %v718 = vadd.f32 0.0, %v717
    %719 = vmatprep.mubr.f32.mxu0 0.0
    %720 = vmatmul.mubr.f32.gmra.mrb[0].mxu0 %v132
    %v721 = vpop.f32.mrb[0].mxu0
    %v722 = vadd.f32 0.0, %v721
    %v723 = vpop.f32.mrb[0].mxu0
    %v724 = vadd.f32 0.0, %v723
    %725 = vmatprep.mubr.f32.mxu0 0.0
    %726 = vmatmul.mubr.f32.gmra.mrb[0].mxu0 %v135
    %v727 = vpop.f32.mrb[0].mxu0
    %v728 = vadd.f32 0.0, %v727
    %v729 = vpop.f32.mrb[0].mxu0
    %v730 = vadd.f32 0.0, %v729
    %731 = vmatprep.mubr.f32.mxu0 0.0
    %732 = vmatmul.mubr.f32.gmra.mrb[0].mxu0 %v138
    %v733 = vpop.f32.mrb[0].mxu0
    %v734 = vadd.f32 0.0, %v733
    %v735 = vpop.f32.mrb[0].mxu0
    %v736 = vadd.f32 0.0, %v735
    %737 = vmatprep.mubr.f32.mxu0 0.0
    %738 = vmatmul.mubr.f32.gmra.mrb[0].mxu0 %v141
    %v739 = vpop.f32.mrb[0].mxu0
    %v740 = vadd.f32 0.0, %v739
    %v741 = vpop.f32.mrb[0].mxu0
    %v742 = vadd.f32 0.0, %v741
    %743 = vmatprep.mubr.f32.mxu0 0.0
    %744 = vmatmul.mubr.f32.gmra.mrb[0].mxu0 %v144
    %v745 = vpop.f32.mrb[0].mxu0
    %v746 = vadd.f32 0.0, %v745
    %v747 = vpop.f32.mrb[0].mxu0
    %v748 = vadd.f32 0.0, %v747
    %749 = vmatprep.mubr.f32.mxu0 0.0
    %750 = vmatmul.mubr.f32.gmra.mrb[0].mxu0 %v147
    %v751 = vpop.f32.mrb[0].mxu0
    %v752 = vadd.f32 0.0, %v751
    %v753 = vpop.f32.mrb[0].mxu0
    %v754 = vadd.f32 0.0, %v753
    %755 = vmatprep.mubr.f32.mxu0 0.0
    %756 = vmatmul.mubr.f32.gmra.mrb[0].mxu0 %v150
    %v757 = vpop.f32.mrb[0].mxu0
    %v758 = vadd.f32 0.0, %v757
    %v759 = vpop.f32.mrb[0].mxu0
    %v760 = vadd.f32 0.0, %v759
    %761 = vmatprep.mubr.f32.mxu0 0.0
    %762 = vmatmul.mubr.f32.gmra.mrb[0].mxu0 %v153
    %v763 = vpop.f32.mrb[0].mxu0
    %v764 = vadd.f32 0.0, %v763
    %v765 = vpop.f32.mrb[0].mxu0
    %v766 = vadd.f32 0.0, %v765
    %767 = vmatprep.mubr.f32.mxu0 0.0
    %768 = vmatmul.mubr.f32.gmra.mrb[0].mxu0 %v156
    %v769 = vpop.f32.mrb[0].mxu0
    %v770 = vadd.f32 0.0, %v769
    %v771 = vpop.f32.mrb[0].mxu0
    %v772 = vadd.f32 0.0, %v771
    %773 = vmatprep.mubr.f32.mxu0 0.0
    %774 = vmatmul.mubr.f32.gmra.mrb[0].mxu0 %v159
    %v775 = vpop.f32.mrb[0].mxu0
    %v776 = vadd.f32 0.0, %v775
    %v777 = vpop.f32.mrb[0].mxu0
    %v778 = vadd.f32 0.0, %v777
    %779 = vmatprep.mubr.f32.mxu0 0.0
    %780 = vmatmul.mubr.f32.gmra.mrb[0].mxu0 %v162
    %v781 = vpop.f32.mrb[0].mxu0
    %v782 = vadd.f32 0.0, %v781
    %v783 = vpop.f32.mrb[0].mxu0
    %v784 = vadd.f32 0.0, %v783
    %785 = vmatprep.mubr.f32.mxu0 0.0
    %786 = vmatmul.mubr.f32.gmra.mrb[0].mxu0 %v165
    %v787 = vpop.f32.mrb[0].mxu0
    %v788 = vadd.f32 0.0, %v787
    %v789 = vpop.f32.mrb[0].mxu0
    %v790 = vadd.f32 0.0, %v789
    %791 = vmatprep.mubr.f32.mxu0 0.0
    %792 = vmatmul.mubr.f32.gmra.mrb[0].mxu0 %v168
    %v793 = vpop.f32.mrb[0].mxu0
    %v794 = vadd.f32 0.0, %v793
    %v795 = vpop.f32.mrb[0].mxu0
    %v796 = vadd.f32 0.0, %v795
    %797 = vmatprep.mubr.f32.mxu0 0.0
    %798 = vmatmul.mubr.f32.gmra.mrb[0].mxu0 %v171
    %v799 = vpop.f32.mrb[0].mxu0
    %v800 = vadd.f32 0.0, %v799
    %v801 = vpop.f32.mrb[0].mxu0
    %v802 = vadd.f32 0.0, %v801
    %803 = vmatprep.mubr.f32.mxu0 0.0
    %804 = vmatmul.mubr.f32.gmra.mrb[0].mxu0 %v174
    %v805 = vpop.f32.mrb[0].mxu0
    %v806 = vadd.f32 0.0, %v805
    %v807 = vpop.f32.mrb[0].mxu0
    %v808 = vadd.f32 0.0, %v807
    %809 = vmatprep.mubr.f32.mxu0 0.0
    %810 = vmatmul.mubr.f32.gmra.mrb[0].mxu0 %v177
    %v811 = vpop.f32.mrb[0].mxu0
    %v812 = vadd.f32 0.0, %v811
    %v813 = vpop.f32.mrb[0].mxu0
    %v814 = vadd.f32 0.0, %v813
    %815 = vmatprep.mubr.f32.mxu0 0.0
    %816 = vmatmul.mubr.f32.gmra.mrb[0].mxu0 %v180
    %v817 = vpop.f32.mrb[0].mxu0
    %v818 = vadd.f32 0.0, %v817
    %v819 = vpop.f32.mrb[0].mxu0
    %v820 = vadd.f32 0.0, %v819
    %821 = vmatprep.mubr.f32.mxu0 0.0
    %822 = vmatmul.mubr.f32.gmra.mrb[0].mxu0 %v183
    %v823 = vpop.f32.mrb[0].mxu0
    %v824 = vadd.f32 0.0, %v823
    %v825 = vpop.f32.mrb[0].mxu0
    %v826 = vadd.f32 0.0, %v825
    %827 = vmatprep.mubr.f32.mxu0 0.0
    %828 = vmatmul.mubr.f32.gmra.mrb[0].mxu0 %v186
    %v829 = vpop.f32.mrb[0].mxu0
    %v830 = vadd.f32 0.0, %v829
    %v831 = vpop.f32.mrb[0].mxu0
    %v832 = vadd.f32 0.0, %v831
    %833 = vmatprep.mubr.f32.mxu0 0.0
    %834 = vmatmul.mubr.f32.gmra.mrb[0].mxu0 %v623
    %v835 = vpop.f32.mrb[0].mxu0
    %v836 = vadd.f32 0.0, %v835
    %v837 = vpop.f32.mrb[0].mxu0
    %v838 = vadd.f32 0.0, %v837
    %839 = vdwg.mxu0
    %v840 = vadd.f32 %v480, %v698
    %v841 = vadd.f32 %v482, %v700
    %v842 = vadd.f32 %v486, %v704
    %v843 = vadd.f32 %v488, %v706
    %v844 = vadd.f32 %v492, %v710
    %v845 = vadd.f32 %v494, %v712
    %v846 = vadd.f32 %v498, %v716
    %v847 = vadd.f32 %v500, %v718
    %v848 = vadd.f32 %v504, %v722
    %v849 = vadd.f32 %v506, %v724
    %v850 = vadd.f32 %v510, %v728
    %v851 = vadd.f32 %v512, %v730
    %v852 = vadd.f32 %v516, %v734
    %v853 = vadd.f32 %v518, %v736
    %v854 = vadd.f32 %v522, %v740
    %v855 = vadd.f32 %v524, %v742
    %v856 = vadd.f32 %v528, %v746
    %v857 = vadd.f32 %v530, %v748
    %v858 = vadd.f32 %v534, %v752
    %v859 = vadd.f32 %v536, %v754
    %v860 = vadd.f32 %v540, %v758
    %v861 = vadd.f32 %v542, %v760
    %v862 = vadd.f32 %v546, %v764
    %v863 = vadd.f32 %v548, %v766
    %v864 = vadd.f32 %v552, %v770
    %v865 = vadd.f32 %v554, %v772
    %v866 = vadd.f32 %v558, %v776
    %v867 = vadd.f32 %v560, %v778
    %v868 = vadd.f32 %v564, %v782
    %v869 = vadd.f32 %v566, %v784
    %v870 = vadd.f32 %v570, %v788
    %v871 = vadd.f32 %v572, %v790
    %v872 = vadd.f32 %v576, %v794
    %v873 = vadd.f32 %v578, %v796
    %v874 = vadd.f32 %v582, %v800
    %v875 = vadd.f32 %v584, %v802
    %v876 = vadd.f32 %v588, %v806
    %v877 = vadd.f32 %v590, %v808
    %v878 = vadd.f32 %v594, %v812
    %v879 = vadd.f32 %v596, %v814
    %v880 = vadd.f32 %v600, %v818
    %v881 = vadd.f32 %v602, %v820
    %v882 = vadd.f32 %v606, %v824
    %v883 = vadd.f32 %v608, %v826
    %v884 = vadd.f32 %v612, %v830
    %v885 = vadd.f32 %v614, %v832
    %v886 = vadd.f32 %v618, %v836
    %v887 = vadd.f32 %v620, %v838
    %v889 = vsel %vm115, %v73, 0
    %v892 = vsel %vm188, %v105, 0
    %v895 = vsel %vm188, %v106, 0
    %897 = vmatprep.subr.mxu0 %v100
    %898 = vmatpush1.msra.mxu0 %v99
    %899 = vmatprep.subr.mxu0 %v102
    %900 = vmatpush1.msra.mxu0 %v101
    %901 = vmatprep.subr.mxu0 %v104
    %902 = vmatpush1.msra.mxu0 %v103
    %903 = vmatprep.subr.mxu0 %v895
    %904 = vmatpush1.msra.mxu0 %v892
    %905 = vmatprep.subr.mxu0 0.0
    %906 = vmatpush1.msra.mxu0 0.0
    %907 = vmatprep.subr.mxu0 0.0
    %908 = vmatpush1.msra.mxu0 0.0
    %909 = vmatprep.subr.mxu0 0.0
    %910 = vmatpush1.msra.mxu0 0.0
    %911 = vmatprep.subr.mxu0 0.0
    %912 = vmatpush1.msra.mxu0 0.0
    %913 = vmatprep.subr.mxu0 0.0
    %914 = vmatpush1.msra.mxu0 0.0
    %915 = vmatprep.subr.mxu0 0.0
    %916 = vmatpush1.msra.mxu0 0.0
    %917 = vmatprep.subr.mxu0 0.0
    %918 = vmatpush1.msra.mxu0 0.0
    %919 = vmatprep.subr.mxu0 0.0
    %920 = vmatpush1.msra.mxu0 0.0
    %921 = vmatprep.subr.mxu0 0.0
    %922 = vmatpush1.msra.mxu0 0.0
    %923 = vmatprep.subr.mxu0 0.0
    %924 = vmatpush1.msra.mxu0 0.0
    %925 = vmatprep.subr.mxu0 0.0
    %926 = vmatpush1.msra.mxu0 0.0
    %927 = vmatprep.subr.mxu0 0.0
    %928 = vmatpush1.msra.mxu0 0.0
    %929 = vmatprep.subr.mxu0 0.0
    %930 = vmatpush1.msra.mxu0 0.0
    %931 = vmatprep.subr.mxu0 0.0
    %932 = vmatpush1.msra.mxu0 0.0
    %933 = vmatprep.subr.mxu0 0.0
    %934 = vmatpush1.msra.mxu0 0.0
    %935 = vmatprep.subr.mxu0 0.0
    %936 = vmatpush1.msra.mxu0 0.0
    %937 = vmatprep.subr.mxu0 0.0
    %938 = vmatpush1.msra.mxu0 0.0
    %939 = vmatprep.subr.mxu0 0.0
    %940 = vmatpush1.msra.mxu0 0.0
    %941 = vmatprep.subr.mxu0 0.0
    %942 = vmatpush1.msra.mxu0 0.0
    %943 = vmatprep.subr.mxu0 0.0
    %944 = vmatpush1.msra.mxu0 0.0
    %945 = vmatprep.subr.mxu0 0.0
    %946 = vmatpush1.msra.mxu0 0.0
    %947 = vmatprep.subr.mxu0 0.0
    %948 = vmatpush1.msra.mxu0 0.0
    %949 = vmatprep.subr.mxu0 0.0
    %950 = vmatpush1.msra.mxu0 0.0
    %951 = vmatprep.subr.mxu0 0.0
    %952 = vmatpush1.msra.mxu0 0.0
    %953 = vmatprep.subr.mxu0 0.0
    %954 = vmatpush1.msra.mxu0 0.0
    %955 = vmatprep.subr.mxu0 0.0
    %956 = vmatpush1.msra.mxu0 0.0
    %957 = vmatprep.subr.mxu0 0.0
    %958 = vmatpush1.msra.mxu0 0.0
    %959 = vmatprep.subr.mxu0 0.0
    %960 = vmatpush1.msra.mxu0 0.0
    %961 = vmatprep.mubr.f32.mxu0 0.0
    %962 = vmatmul.mubr.f32.gmra.mrb[0].mxu0 %v123
    %v963 = vpop.f32.mrb[0].mxu0
    %v964 = vadd.f32 0.0, %v963
    %v965 = vpop.f32.mrb[0].mxu0
    %v966 = vadd.f32 0.0, %v965
    %967 = vmatprep.mubr.f32.mxu0 0.0
    %968 = vmatmul.mubr.f32.gmra.mrb[0].mxu0 %v126
    %v969 = vpop.f32.mrb[0].mxu0
    %v970 = vadd.f32 0.0, %v969
    %v971 = vpop.f32.mrb[0].mxu0
    %v972 = vadd.f32 0.0, %v971
    %973 = vmatprep.mubr.f32.mxu0 0.0
    %974 = vmatmul.mubr.f32.gmra.mrb[0].mxu0 %v129
    %v975 = vpop.f32.mrb[0].mxu0
    %v976 = vadd.f32 0.0, %v975
    %v977 = vpop.f32.mrb[0].mxu0
    %v978 = vadd.f32 0.0, %v977
    %979 = vmatprep.mubr.f32.mxu0 0.0
    %980 = vmatmul.mubr.f32.gmra.mrb[0].mxu0 %v132
    %v981 = vpop.f32.mrb[0].mxu0
    %v982 = vadd.f32 0.0, %v981
    %v983 = vpop.f32.mrb[0].mxu0
    %v984 = vadd.f32 0.0, %v983
    %985 = vmatprep.mubr.f32.mxu0 0.0
    %986 = vmatmul.mubr.f32.gmra.mrb[0].mxu0 %v135
    %v987 = vpop.f32.mrb[0].mxu0
    %v988 = vadd.f32 0.0, %v987
    %v989 = vpop.f32.mrb[0].mxu0
    %v990 = vadd.f32 0.0, %v989
    %991 = vmatprep.mubr.f32.mxu0 0.0
    %992 = vmatmul.mubr.f32.gmra.mrb[0].mxu0 %v138
    %v993 = vpop.f32.mrb[0].mxu0
    %v994 = vadd.f32 0.0, %v993
    %v995 = vpop.f32.mrb[0].mxu0
    %v996 = vadd.f32 0.0, %v995
    %997 = vmatprep.mubr.f32.mxu0 0.0
    %998 = vmatmul.mubr.f32.gmra.mrb[0].mxu0 %v141
    %v999 = vpop.f32.mrb[0].mxu0
    %v1000 = vadd.f32 0.0, %v999
    %v1001 = vpop.f32.mrb[0].mxu0
    %v1002 = vadd.f32 0.0, %v1001
    %1003 = vmatprep.mubr.f32.mxu0 0.0
    %1004 = vmatmul.mubr.f32.gmra.mrb[0].mxu0 %v144
    %v1005 = vpop.f32.mrb[0].mxu0
    %v1006 = vadd.f32 0.0, %v1005
    %v1007 = vpop.f32.mrb[0].mxu0
    %v1008 = vadd.f32 0.0, %v1007
    %1009 = vmatprep.mubr.f32.mxu0 0.0
    %1010 = vmatmul.mubr.f32.gmra.mrb[0].mxu0 %v147
    %v1011 = vpop.f32.mrb[0].mxu0
    %v1012 = vadd.f32 0.0, %v1011
    %v1013 = vpop.f32.mrb[0].mxu0
    %v1014 = vadd.f32 0.0, %v1013
    %1015 = vmatprep.mubr.f32.mxu0 0.0
    %1016 = vmatmul.mubr.f32.gmra.mrb[0].mxu0 %v150
    %v1017 = vpop.f32.mrb[0].mxu0
    %v1018 = vadd.f32 0.0, %v1017
    %v1019 = vpop.f32.mrb[0].mxu0
    %v1020 = vadd.f32 0.0, %v1019
    %1021 = vmatprep.mubr.f32.mxu0 0.0
    %1022 = vmatmul.mubr.f32.gmra.mrb[0].mxu0 %v153
    %v1023 = vpop.f32.mrb[0].mxu0
    %v1024 = vadd.f32 0.0, %v1023
    %v1025 = vpop.f32.mrb[0].mxu0
    %v1026 = vadd.f32 0.0, %v1025
    %1027 = vmatprep.mubr.f32.mxu0 0.0
    %1028 = vmatmul.mubr.f32.gmra.mrb[0].mxu0 %v156
    %v1029 = vpop.f32.mrb[0].mxu0
    %v1030 = vadd.f32 0.0, %v1029
    %v1031 = vpop.f32.mrb[0].mxu0
    %v1032 = vadd.f32 0.0, %v1031
    %1033 = vmatprep.mubr.f32.mxu0 0.0
    %1034 = vmatmul.mubr.f32.gmra.mrb[0].mxu0 %v159
    %v1035 = vpop.f32.mrb[0].mxu0
    %v1036 = vadd.f32 0.0, %v1035
    %v1037 = vpop.f32.mrb[0].mxu0
    %v1038 = vadd.f32 0.0, %v1037
    %1039 = vmatprep.mubr.f32.mxu0 0.0
    %1040 = vmatmul.mubr.f32.gmra.mrb[0].mxu0 %v162
    %v1041 = vpop.f32.mrb[0].mxu0
    %v1042 = vadd.f32 0.0, %v1041
    %v1043 = vpop.f32.mrb[0].mxu0
    %v1044 = vadd.f32 0.0, %v1043
    %1045 = vmatprep.mubr.f32.mxu0 0.0
    %1046 = vmatmul.mubr.f32.gmra.mrb[0].mxu0 %v165
    %v1047 = vpop.f32.mrb[0].mxu0
    %v1048 = vadd.f32 0.0, %v1047
    %v1049 = vpop.f32.mrb[0].mxu0
    %v1050 = vadd.f32 0.0, %v1049
    %1051 = vmatprep.mubr.f32.mxu0 0.0
    %1052 = vmatmul.mubr.f32.gmra.mrb[0].mxu0 %v168
    %v1053 = vpop.f32.mrb[0].mxu0
    %v1054 = vadd.f32 0.0, %v1053
    %v1055 = vpop.f32.mrb[0].mxu0
    %v1056 = vadd.f32 0.0, %v1055
    %1057 = vmatprep.mubr.f32.mxu0 0.0
    %1058 = vmatmul.mubr.f32.gmra.mrb[0].mxu0 %v171
    %v1059 = vpop.f32.mrb[0].mxu0
    %v1060 = vadd.f32 0.0, %v1059
    %v1061 = vpop.f32.mrb[0].mxu0
    %v1062 = vadd.f32 0.0, %v1061
    %1063 = vmatprep.mubr.f32.mxu0 0.0
    %1064 = vmatmul.mubr.f32.gmra.mrb[0].mxu0 %v174
    %v1065 = vpop.f32.mrb[0].mxu0
    %v1066 = vadd.f32 0.0, %v1065
    %v1067 = vpop.f32.mrb[0].mxu0
    %v1068 = vadd.f32 0.0, %v1067
    %1069 = vmatprep.mubr.f32.mxu0 0.0
    %1070 = vmatmul.mubr.f32.gmra.mrb[0].mxu0 %v177
    %v1071 = vpop.f32.mrb[0].mxu0
    %v1072 = vadd.f32 0.0, %v1071
    %v1073 = vpop.f32.mrb[0].mxu0
    %v1074 = vadd.f32 0.0, %v1073
    %1075 = vmatprep.mubr.f32.mxu0 0.0
    %1076 = vmatmul.mubr.f32.gmra.mrb[0].mxu0 %v180
    %v1077 = vpop.f32.mrb[0].mxu0
    %v1078 = vadd.f32 0.0, %v1077
    %v1079 = vpop.f32.mrb[0].mxu0
    %v1080 = vadd.f32 0.0, %v1079
    %1081 = vmatprep.mubr.f32.mxu0 0.0
    %1082 = vmatmul.mubr.f32.gmra.mrb[0].mxu0 %v183
    %v1083 = vpop.f32.mrb[0].mxu0
    %v1084 = vadd.f32 0.0, %v1083
    %v1085 = vpop.f32.mrb[0].mxu0
    %v1086 = vadd.f32 0.0, %v1085
    %1087 = vmatprep.mubr.f32.mxu0 0.0
    %1088 = vmatmul.mubr.f32.gmra.mrb[0].mxu0 %v186
    %v1089 = vpop.f32.mrb[0].mxu0
    %v1090 = vadd.f32 0.0, %v1089
    %v1091 = vpop.f32.mrb[0].mxu0
    %v1092 = vadd.f32 0.0, %v1091
    %1093 = vmatprep.mubr.f32.mxu0 0.0
    %1094 = vmatmul.mubr.f32.gmra.mrb[0].mxu0 %v623
    %v1095 = vpop.f32.mrb[0].mxu0
    %v1096 = vadd.f32 0.0, %v1095
    %v1097 = vpop.f32.mrb[0].mxu0
    %v1098 = vadd.f32 0.0, %v1097
    %1099 = vmatprep.mubr.f32.mxu0 0.0
    %1100 = vmatmul.mubr.f32.gmra.mrb[0].mxu0 %v889
    %v1101 = vpop.f32.mrb[0].mxu0
    %v1102 = vadd.f32 0.0, %v1101
    %v1103 = vpop.f32.mrb[0].mxu0
    %v1104 = vadd.f32 0.0, %v1103
    %1105 = vdwg.mxu0
    %v1106 = vadd.f32 %v840, %v964
    %v1107 = vadd.f32 %v841, %v966
    %v1108 = vadd.f32 %v842, %v970
    %v1109 = vadd.f32 %v843, %v972
    %v1110 = vadd.f32 %v844, %v976
    %v1111 = vadd.f32 %v845, %v978
    %v1112 = vadd.f32 %v846, %v982
    %v1113 = vadd.f32 %v847, %v984
    %v1114 = vadd.f32 %v848, %v988
    %v1115 = vadd.f32 %v849, %v990
    %v1116 = vadd.f32 %v850, %v994
    %v1117 = vadd.f32 %v851, %v996
    %v1118 = vadd.f32 %v852, %v1000
    %v1119 = vadd.f32 %v853, %v1002
    %v1120 = vadd.f32 %v854, %v1006
    %v1121 = vadd.f32 %v855, %v1008
    %v1122 = vadd.f32 %v856, %v1012
    %v1123 = vadd.f32 %v857, %v1014
    %v1124 = vadd.f32 %v858, %v1018
    %v1125 = vadd.f32 %v859, %v1020
    %v1126 = vadd.f32 %v860, %v1024
    %v1127 = vadd.f32 %v861, %v1026
    %v1128 = vadd.f32 %v862, %v1030
    %v1129 = vadd.f32 %v863, %v1032
    %v1130 = vadd.f32 %v864, %v1036
    %v1131 = vadd.f32 %v865, %v1038
    %v1132 = vadd.f32 %v866, %v1042
    %v1133 = vadd.f32 %v867, %v1044
    %v1134 = vadd.f32 %v868, %v1048
    %v1135 = vadd.f32 %v869, %v1050
    %v1136 = vadd.f32 %v870, %v1054
    %v1137 = vadd.f32 %v871, %v1056
    %v1138 = vadd.f32 %v872, %v1060
    %v1139 = vadd.f32 %v873, %v1062
    %v1140 = vadd.f32 %v874, %v1066
    %v1141 = vadd.f32 %v875, %v1068
    %v1142 = vadd.f32 %v876, %v1072
    %v1143 = vadd.f32 %v877, %v1074
    %v1144 = vadd.f32 %v878, %v1078
    %v1145 = vadd.f32 %v879, %v1080
    %v1146 = vadd.f32 %v880, %v1084
    %v1147 = vadd.f32 %v881, %v1086
    %v1148 = vadd.f32 %v882, %v1090
    %v1149 = vadd.f32 %v883, %v1092
    %v1150 = vadd.f32 %v884, %v1096
    %v1151 = vadd.f32 %v885, %v1098
    %v1152 = vadd.f32 %v886, %v1102
    %v1153 = vadd.f32 %v887, %v1104
    %v1155 = vsel %vm115, %v74, 0
    %v1158 = vsel %vm188, %v113, 0
    %v1161 = vsel %vm188, %v114, 0
    %1163 = vmatprep.subr.mxu0 %v108
    %1164 = vmatpush1.msra.mxu0 %v107
    %1165 = vmatprep.subr.mxu0 %v110
    %1166 = vmatpush1.msra.mxu0 %v109
    %1167 = vmatprep.subr.mxu0 %v112
    %1168 = vmatpush1.msra.mxu0 %v111
    %1169 = vmatprep.subr.mxu0 %v1161
    %1170 = vmatpush1.msra.mxu0 %v1158
    %1171 = vmatprep.subr.mxu0 0.0
    %1172 = vmatpush1.msra.mxu0 0.0
    %1173 = vmatprep.subr.mxu0 0.0
    %1174 = vmatpush1.msra.mxu0 0.0
    %1175 = vmatprep.subr.mxu0 0.0
    %1176 = vmatpush1.msra.mxu0 0.0
    %1177 = vmatprep.subr.mxu0 0.0
    %1178 = vmatpush1.msra.mxu0 0.0
    %1179 = vmatprep.subr.mxu0 0.0
    %1180 = vmatpush1.msra.mxu0 0.0
    %1181 = vmatprep.subr.mxu0 0.0
    %1182 = vmatpush1.msra.mxu0 0.0
    %1183 = vmatprep.subr.mxu0 0.0
    %1184 = vmatpush1.msra.mxu0 0.0
    %1185 = vmatprep.subr.mxu0 0.0
    %1186 = vmatpush1.msra.mxu0 0.0
    %1187 = vmatprep.subr.mxu0 0.0
    %1188 = vmatpush1.msra.mxu0 0.0
    %1189 = vmatprep.subr.mxu0 0.0
    %1190 = vmatpush1.msra.mxu0 0.0
    %1191 = vmatprep.subr.mxu0 0.0
    %1192 = vmatpush1.msra.mxu0 0.0
    %1193 = vmatprep.subr.mxu0 0.0
    %1194 = vmatpush1.msra.mxu0 0.0
    %1195 = vmatprep.subr.mxu0 0.0
    %1196 = vmatpush1.msra.mxu0 0.0
    %1197 = vmatprep.subr.mxu0 0.0
    %1198 = vmatpush1.msra.mxu0 0.0
    %1199 = vmatprep.subr.mxu0 0.0
    %1200 = vmatpush1.msra.mxu0 0.0
    %1201 = vmatprep.subr.mxu0 0.0
    %1202 = vmatpush1.msra.mxu0 0.0
    %1203 = vmatprep.subr.mxu0 0.0
    %1204 = vmatpush1.msra.mxu0 0.0
    %1205 = vmatprep.subr.mxu0 0.0
    %1206 = vmatpush1.msra.mxu0 0.0
    %1207 = vmatprep.subr.mxu0 0.0
    %1208 = vmatpush1.msra.mxu0 0.0
    %1209 = vmatprep.subr.mxu0 0.0
    %1210 = vmatpush1.msra.mxu0 0.0
    %1211 = vmatprep.subr.mxu0 0.0
    %1212 = vmatpush1.msra.mxu0 0.0
    %1213 = vmatprep.subr.mxu0 0.0
    %1214 = vmatpush1.msra.mxu0 0.0
    %1215 = vmatprep.subr.mxu0 0.0
    %1216 = vmatpush1.msra.mxu0 0.0
    %1217 = vmatprep.subr.mxu0 0.0
    %1218 = vmatpush1.msra.mxu0 0.0
    %1219 = vmatprep.subr.mxu0 0.0
    %1220 = vmatpush1.msra.mxu0 0.0
    %1221 = vmatprep.subr.mxu0 0.0
    %1222 = vmatpush1.msra.mxu0 0.0
    %1223 = vmatprep.subr.mxu0 0.0
    %1224 = vmatpush1.msra.mxu0 0.0
    %1225 = vmatprep.subr.mxu0 0.0
    %1226 = vmatpush1.msra.mxu0 0.0
    %1227 = vmatprep.mubr.f32.mxu0 0.0
    %1228 = vmatmul.mubr.f32.gmra.mrb[0].mxu0 %v126
    %v1229 = vpop.f32.mrb[0].mxu0
    %v1230 = vadd.f32 0.0, %v1229
    %v1231 = vpop.f32.mrb[0].mxu0
    %v1232 = vadd.f32 0.0, %v1231
    %1233 = vmatprep.mubr.f32.mxu0 0.0
    %1234 = vmatmul.mubr.f32.gmra.mrb[0].mxu0 %v129
    %v1235 = vpop.f32.mrb[0].mxu0
    %v1236 = vadd.f32 0.0, %v1235
    %v1237 = vpop.f32.mrb[0].mxu0
    %v1238 = vadd.f32 0.0, %v1237
    %1239 = vmatprep.mubr.f32.mxu0 0.0
    %1240 = vmatmul.mubr.f32.gmra.mrb[0].mxu0 %v132
    %v1241 = vpop.f32.mrb[0].mxu0
    %v1242 = vadd.f32 0.0, %v1241
    %v1243 = vpop.f32.mrb[0].mxu0
    %v1244 = vadd.f32 0.0, %v1243
    %1245 = vmatprep.mubr.f32.mxu0 0.0
    %1246 = vmatmul.mubr.f32.gmra.mrb[0].mxu0 %v135
    %v1247 = vpop.f32.mrb[0].mxu0
    %v1248 = vadd.f32 0.0, %v1247
    %v1249 = vpop.f32.mrb[0].mxu0
    %v1250 = vadd.f32 0.0, %v1249
    %1251 = vmatprep.mubr.f32.mxu0 0.0
    %1252 = vmatmul.mubr.f32.gmra.mrb[0].mxu0 %v138
    %v1253 = vpop.f32.mrb[0].mxu0
    %v1254 = vadd.f32 0.0, %v1253
    %v1255 = vpop.f32.mrb[0].mxu0
    %v1256 = vadd.f32 0.0, %v1255
    %1257 = vmatprep.mubr.f32.mxu0 0.0
    %1258 = vmatmul.mubr.f32.gmra.mrb[0].mxu0 %v141
    %v1259 = vpop.f32.mrb[0].mxu0
    %v1260 = vadd.f32 0.0, %v1259
    %v1261 = vpop.f32.mrb[0].mxu0
    %v1262 = vadd.f32 0.0, %v1261
    %1263 = vmatprep.mubr.f32.mxu0 0.0
    %1264 = vmatmul.mubr.f32.gmra.mrb[0].mxu0 %v144
    %v1265 = vpop.f32.mrb[0].mxu0
    %v1266 = vadd.f32 0.0, %v1265
    %v1267 = vpop.f32.mrb[0].mxu0
    %v1268 = vadd.f32 0.0, %v1267
    %1269 = vmatprep.mubr.f32.mxu0 0.0
    %1270 = vmatmul.mubr.f32.gmra.mrb[0].mxu0 %v147
    %v1271 = vpop.f32.mrb[0].mxu0
    %v1272 = vadd.f32 0.0, %v1271
    %v1273 = vpop.f32.mrb[0].mxu0
    %v1274 = vadd.f32 0.0, %v1273
    %1275 = vmatprep.mubr.f32.mxu0 0.0
    %1276 = vmatmul.mubr.f32.gmra.mrb[0].mxu0 %v150
    %v1277 = vpop.f32.mrb[0].mxu0
    %v1278 = vadd.f32 0.0, %v1277
    %v1279 = vpop.f32.mrb[0].mxu0
    %v1280 = vadd.f32 0.0, %v1279
    %1281 = vmatprep.mubr.f32.mxu0 0.0
    %1282 = vmatmul.mubr.f32.gmra.mrb[0].mxu0 %v153
    %v1283 = vpop.f32.mrb[0].mxu0
    %v1284 = vadd.f32 0.0, %v1283
    %v1285 = vpop.f32.mrb[0].mxu0
    %v1286 = vadd.f32 0.0, %v1285
    %1287 = vmatprep.mubr.f32.mxu0 0.0
    %1288 = vmatmul.mubr.f32.gmra.mrb[0].mxu0 %v156
    %v1289 = vpop.f32.mrb[0].mxu0
    %v1290 = vadd.f32 0.0, %v1289
    %v1291 = vpop.f32.mrb[0].mxu0
    %v1292 = vadd.f32 0.0, %v1291
    %1293 = vmatprep.mubr.f32.mxu0 0.0
    %1294 = vmatmul.mubr.f32.gmra.mrb[0].mxu0 %v159
    %v1295 = vpop.f32.mrb[0].mxu0
    %v1296 = vadd.f32 0.0, %v1295
    %v1297 = vpop.f32.mrb[0].mxu0
    %v1298 = vadd.f32 0.0, %v1297
    %1299 = vmatprep.mubr.f32.mxu0 0.0
    %1300 = vmatmul.mubr.f32.gmra.mrb[0].mxu0 %v162
    %v1301 = vpop.f32.mrb[0].mxu0
    %v1302 = vadd.f32 0.0, %v1301
    %v1303 = vpop.f32.mrb[0].mxu0
    %v1304 = vadd.f32 0.0, %v1303
    %1305 = vmatprep.mubr.f32.mxu0 0.0
    %1306 = vmatmul.mubr.f32.gmra.mrb[0].mxu0 %v165
    %v1307 = vpop.f32.mrb[0].mxu0
    %v1308 = vadd.f32 0.0, %v1307
    %v1309 = vpop.f32.mrb[0].mxu0
    %v1310 = vadd.f32 0.0, %v1309
    %1311 = vmatprep.mubr.f32.mxu0 0.0
    %1312 = vmatmul.mubr.f32.gmra.mrb[0].mxu0 %v168
    %v1313 = vpop.f32.mrb[0].mxu0
    %v1314 = vadd.f32 0.0, %v1313
    %v1315 = vpop.f32.mrb[0].mxu0
    %v1316 = vadd.f32 0.0, %v1315
    %1317 = vmatprep.mubr.f32.mxu0 0.0
    %1318 = vmatmul.mubr.f32.gmra.mrb[0].mxu0 %v171
    %v1319 = vpop.f32.mrb[0].mxu0
    %v1320 = vadd.f32 0.0, %v1319
    %v1321 = vpop.f32.mrb[0].mxu0
    %v1322 = vadd.f32 0.0, %v1321
    %1323 = vmatprep.mubr.f32.mxu0 0.0
    %1324 = vmatmul.mubr.f32.gmra.mrb[0].mxu0 %v174
    %v1325 = vpop.f32.mrb[0].mxu0
    %v1326 = vadd.f32 0.0, %v1325
    %v1327 = vpop.f32.mrb[0].mxu0
    %v1328 = vadd.f32 0.0, %v1327
    %1329 = vmatprep.mubr.f32.mxu0 0.0
    %1330 = vmatmul.mubr.f32.gmra.mrb[0].mxu0 %v177
    %v1331 = vpop.f32.mrb[0].mxu0
    %v1332 = vadd.f32 0.0, %v1331
    %v1333 = vpop.f32.mrb[0].mxu0
    %v1334 = vadd.f32 0.0, %v1333
    %1335 = vmatprep.mubr.f32.mxu0 0.0
    %1336 = vmatmul.mubr.f32.gmra.mrb[0].mxu0 %v180
    %v1337 = vpop.f32.mrb[0].mxu0
    %v1338 = vadd.f32 0.0, %v1337
    %v1339 = vpop.f32.mrb[0].mxu0
    %v1340 = vadd.f32 0.0, %v1339
    %1341 = vmatprep.mubr.f32.mxu0 0.0
    %1342 = vmatmul.mubr.f32.gmra.mrb[0].mxu0 %v183
    %v1343 = vpop.f32.mrb[0].mxu0
    %v1344 = vadd.f32 0.0, %v1343
    %v1345 = vpop.f32.mrb[0].mxu0
    %v1346 = vadd.f32 0.0, %v1345
    %1347 = vmatprep.mubr.f32.mxu0 0.0
    %1348 = vmatmul.mubr.f32.gmra.mrb[0].mxu0 %v186
    %v1349 = vpop.f32.mrb[0].mxu0
    %v1350 = vadd.f32 0.0, %v1349
    %v1351 = vpop.f32.mrb[0].mxu0
    %v1352 = vadd.f32 0.0, %v1351
    %1353 = vmatprep.mubr.f32.mxu0 0.0
    %1354 = vmatmul.mubr.f32.gmra.mrb[0].mxu0 %v623
    %v1355 = vpop.f32.mrb[0].mxu0
    %v1356 = vadd.f32 0.0, %v1355
    %v1357 = vpop.f32.mrb[0].mxu0
    %v1358 = vadd.f32 0.0, %v1357
    %1359 = vmatprep.mubr.f32.mxu0 0.0
    %1360 = vmatmul.mubr.f32.gmra.mrb[0].mxu0 %v889
    %v1361 = vpop.f32.mrb[0].mxu0
    %v1362 = vadd.f32 0.0, %v1361
    %v1363 = vpop.f32.mrb[0].mxu0
    %v1364 = vadd.f32 0.0, %v1363
    %1365 = vmatprep.mubr.f32.mxu0 0.0
    %1366 = vmatmul.mubr.f32.gmra.mrb[0].mxu0 %v1155
    %v1367 = vpop.f32.mrb[0].mxu0
    %v1368 = vadd.f32 0.0, %v1367
    %v1369 = vpop.f32.mrb[0].mxu0
    %v1370 = vadd.f32 0.0, %v1369
    %1371 = vdwg.mxu0
    %v1372 = vadd.f32 %v1106, %v1230
    %v1373 = vadd.f32 %v1107, %v1232
    %v1374 = vadd.f32 %v1108, %v1236
    %v1375 = vadd.f32 %v1109, %v1238
    %v1376 = vadd.f32 %v1110, %v1242
    %v1377 = vadd.f32 %v1111, %v1244
    %v1378 = vadd.f32 %v1112, %v1248
    %v1379 = vadd.f32 %v1113, %v1250
    %v1380 = vadd.f32 %v1114, %v1254
    %v1381 = vadd.f32 %v1115, %v1256
    %v1382 = vadd.f32 %v1116, %v1260
    %v1383 = vadd.f32 %v1117, %v1262
    %v1384 = vadd.f32 %v1118, %v1266
    %v1385 = vadd.f32 %v1119, %v1268
    %v1386 = vadd.f32 %v1120, %v1272
    %v1387 = vadd.f32 %v1121, %v1274
    %v1388 = vadd.f32 %v1122, %v1278
    %v1389 = vadd.f32 %v1123, %v1280
    %v1390 = vadd.f32 %v1124, %v1284
    %v1391 = vadd.f32 %v1125, %v1286
    %v1392 = vadd.f32 %v1126, %v1290
    %v1393 = vadd.f32 %v1127, %v1292
    %v1394 = vadd.f32 %v1128, %v1296
    %v1395 = vadd.f32 %v1129, %v1298
    %v1396 = vadd.f32 %v1130, %v1302
    %v1397 = vadd.f32 %v1131, %v1304
    %v1398 = vadd.f32 %v1132, %v1308
    %v1399 = vadd.f32 %v1133, %v1310
    %v1400 = vadd.f32 %v1134, %v1314
    %v1401 = vadd.f32 %v1135, %v1316
    %v1402 = vadd.f32 %v1136, %v1320
    %v1403 = vadd.f32 %v1137, %v1322
    %v1404 = vadd.f32 %v1138, %v1326
    %v1405 = vadd.f32 %v1139, %v1328
    %v1406 = vadd.f32 %v1140, %v1332
    %v1407 = vadd.f32 %v1141, %v1334
    %v1408 = vadd.f32 %v1142, %v1338
    %v1409 = vadd.f32 %v1143, %v1340
    %v1410 = vadd.f32 %v1144, %v1344
    %v1411 = vadd.f32 %v1145, %v1346
    %v1412 = vadd.f32 %v1146, %v1350
    %v1413 = vadd.f32 %v1147, %v1352
    %v1414 = vadd.f32 %v1148, %v1356
    %v1415 = vadd.f32 %v1149, %v1358
    %v1416 = vadd.f32 %v1150, %v1362
    %v1417 = vadd.f32 %v1151, %v1364
    %v1418 = vadd.f32 %v1152, %v1368
    %v1419 = vadd.f32 %v1153, %v1370
    %v1420 = vmax.f32 %v1372, %v1374
    %v1421 = vmax.f32 %v1373, %v1375
    %v1422 = vmax.f32 %v1376, %v1378
    %v1423 = vmax.f32 %v1377, %v1379
    %v1424 = vmax.f32 %v1380, %v1382
    %v1425 = vmax.f32 %v1381, %v1383
    %v1426 = vmax.f32 %v1384, %v1386
    %v1427 = vmax.f32 %v1385, %v1387
    %v1428 = vmax.f32 %v1388, %v1390
    %v1429 = vmax.f32 %v1389, %v1391
    %v1430 = vmax.f32 %v1392, %v1394
    %v1431 = vmax.f32 %v1393, %v1395
    %v1432 = vmax.f32 %v1396, %v1398
    %v1433 = vmax.f32 %v1397, %v1399
    %v1434 = vmax.f32 %v1400, %v1402
    %v1435 = vmax.f32 %v1401, %v1403
    %v1436 = vmax.f32 %v1404, %v1406
    %v1437 = vmax.f32 %v1405, %v1407
    %v1438 = vmax.f32 %v1408, %v1410
    %v1439 = vmax.f32 %v1409, %v1411
    %v1440 = vmax.f32 %v1412, %v1414
    %v1441 = vmax.f32 %v1413, %v1415
    %v1442 = vmax.f32 %v1416, %v1418
    %v1443 = vmax.f32 %v1417, %v1419
    %v1444 = vmax.f32 %v1420, %v1421
    %v1445 = vmax.f32 %v1422, %v1423
    %v1446 = vmax.f32 %v1424, %v1425
    %v1447 = vmax.f32 %v1426, %v1427
    %v1448 = vmax.f32 %v1428, %v1429
    %v1449 = vmax.f32 %v1430, %v1431
    %v1450 = vmax.f32 %v1432, %v1433
    %v1451 = vmax.f32 %v1434, %v1435
    %v1452 = vmax.f32 %v1436, %v1437
    %v1453 = vmax.f32 %v1438, %v1439
    %v1454 = vmax.f32 %v1440, %v1441
    %v1455 = vmax.f32 %v1442, %v1443
    %v1456 = vld [vmem:[%s2] sm:$0x1]
    %v1458 = vlaneseq
    %v1459 = vshrl.u32 %v1458, 7
    %v1460 = vsub.s32 0, %v1459
    %v1461 = vrot.slane %v1456, %v1460
    %v1463 = vadd.f32 %v1444, %v1461
    %v1464 = vadd.f32 %v1445, %v1461
    %v1465 = vadd.f32 %v1446, %v1461
    %v1466 = vadd.f32 %v1447, %v1461
    %v1467 = vadd.f32 %v1448, %v1461
    %v1468 = vadd.f32 %v1449, %v1461
    %v1469 = vadd.f32 %v1450, %v1461
    %v1470 = vadd.f32 %v1451, %v1461
    %v1471 = vadd.f32 %v1452, %v1461
    %v1472 = vadd.f32 %v1453, %v1461
    %v1473 = vadd.f32 %v1454, %v1461
    %v1474 = vadd.f32 %v1455, %v1461
    %v1475 = vmax.f32 %v1463, 0.0
    %v1476 = vmax.f32 %v1464, 0.0
    %v1477 = vmax.f32 %v1465, 0.0
    %v1478 = vmax.f32 %v1466, 0.0
    %v1479 = vmax.f32 %v1467, 0.0
    %v1480 = vmax.f32 %v1468, 0.0
    %v1481 = vmax.f32 %v1469, 0.0
    %v1482 = vmax.f32 %v1470, 0.0
    %v1483 = vmax.f32 %v1471, 0.0
    %v1484 = vmax.f32 %v1472, 0.0
    %v1485 = vmax.f32 %v1473, 0.0
    %v1486 = vmax.f32 %v1474, 0.0
    %v1487 = vld [vmem:[#allocation2] sm:$0xff]
    %v1488 = vld [vmem:[#allocation2 + $0x8] sm:$0xff]
    %v1489 = vld [vmem:[#allocation2 + $0x10] sm:$0xff]
    %v1490 = vld [vmem:[#allocation2 + $0x18] sm:$0xff]
    %v1491 = vld [vmem:[#allocation2 + $0x20] sm:$0xff]
    %v1492 = vld [vmem:[#allocation2 + $0x28] sm:$0xff]
    %v1493 = vld [vmem:[#allocation2 + $0x30] sm:$0xff]
    %v1494 = vld [vmem:[#allocation2 + $0x38] sm:$0xff]
    %v1495 = vld [vmem:[#allocation2 + $0x40] sm:$0xff]
    %v1496 = vld [vmem:[#allocation2 + $0x48] sm:$0xff]
    %v1497 = vld [vmem:[#allocation2 + $0x50] sm:$0xff]
    %v1498 = vld [vmem:[#allocation2 + $0x58] sm:$0xff]
    %v1499 = vld [vmem:[#allocation2 + $0x60] sm:$0xff]
    %v1500 = vld [vmem:[#allocation2 + $0x68] sm:$0xff]
    %v1501 = vld [vmem:[#allocation2 + $0x70] sm:$0xff]
    %v1502 = vld [vmem:[#allocation2 + $0x78] sm:$0xff]
    %v1503 = vld [vmem:[#allocation2 + $0x80] sm:$0xff]
    %v1504 = vld [vmem:[#allocation2 + $0x88] sm:$0xff]
    %v1505 = vld [vmem:[#allocation2 + $0x90] sm:$0xff]
    %v1506 = vld [vmem:[#allocation2 + $0x98] sm:$0xff]
    %v1507 = vld [vmem:[#allocation2 + $0xa0] sm:$0xff]
    %v1508 = vld [vmem:[#allocation2 + $0xa8] sm:$0xff]
    %v1509 = vld [vmem:[#allocation2 + $0xb0] sm:$0xff]
    %v1510 = vld [vmem:[#allocation2 + $0xb8] sm:$0xff]
    %v1511 = vld [vmem:[#allocation2 + $0xc0] sm:$0xff]
    %v1512 = vld [vmem:[#allocation2 + $0xc8] sm:$0xff]
    %v1513 = vld [vmem:[#allocation2 + $0xd0] sm:$0xff]
    %v1514 = vld [vmem:[#allocation2 + $0xd8] sm:$0xff]
    %v1515 = vld [vmem:[#allocation2 + $0xe0] sm:$0xff]
    %v1516 = vld [vmem:[#allocation2 + $0xe8] sm:$0xff]
    %v1517 = vld [vmem:[#allocation2 + $0xf0] sm:$0xff]
    %v1518 = vld [vmem:[#allocation2 + $0xf8] sm:$0xff]
    %v1519 = vld [vmem:[#allocation2 + $0x100] sm:$0xff]
    %v1520 = vld [vmem:[#allocation2 + $0x108] sm:$0xff]
    %v1521 = vld [vmem:[#allocation2 + $0x110] sm:$0xff]
    %v1522 = vld [vmem:[#allocation2 + $0x118] sm:$0xff]
    %v1523 = vld [vmem:[#allocation2 + $0x120] sm:$0xff]
    %v1524 = vld [vmem:[#allocation2 + $0x128] sm:$0xff]
    %v1525 = vld [vmem:[#allocation2 + $0x130] sm:$0xff]
    %v1526 = vld [vmem:[#allocation2 + $0x138] sm:$0xff]
    %v1527 = vld [vmem:[#allocation2 + $0x140] sm:$0xff]
    %v1528 = vld [vmem:[#allocation2 + $0x148] sm:$0xff]
    %v1529 = vld [vmem:[#allocation2 + $0x150] sm:$0xff]
    %v1530 = vld [vmem:[#allocation2 + $0x158] sm:$0xff]
    %v1531 = vld [vmem:[#allocation2 + $0x160] sm:$0xff]
    %v1532 = vld [vmem:[#allocation2 + $0x168] sm:$0xff]
    %v1533 = vld [vmem:[#allocation2 + $0x170] sm:$0xff]
    %v1534 = vld [vmem:[#allocation2 + $0x178] sm:$0xff]
    %v1535 = vld [vmem:[#allocation2 + $0x180] sm:$0xff]
    %v1536 = vld [vmem:[#allocation2 + $0x188] sm:$0xff]
    %v1537 = vld [vmem:[#allocation2 + $0x190] sm:$0xff]
    %v1538 = vld [vmem:[#allocation2 + $0x198] sm:$0xff]
    %v1539 = vld [vmem:[#allocation2 + $0x1a0] sm:$0xff]
    %v1540 = vld [vmem:[#allocation2 + $0x1a8] sm:$0xff]
    %v1541 = vld [vmem:[#allocation2 + $0x1b0] sm:$0xff]
    %v1542 = vld [vmem:[#allocation2 + $0x1b8] sm:$0xff]
    %v1543 = vld [vmem:[#allocation2 + $0x1c0] sm:$0xff]
    %v1544 = vld [vmem:[#allocation2 + $0x1c8] sm:$0xff]
    %v1545 = vld [vmem:[#allocation2 + $0x1d0] sm:$0xff]
    %v1546 = vld [vmem:[#allocation2 + $0x1d8] sm:$0xff]
    %v1547 = vld [vmem:[#allocation2 + $0x1e0] sm:$0xff]
    %v1548 = vld [vmem:[#allocation2 + $0x1e8] sm:$0xff]
    %v1549 = vld [vmem:[#allocation2 + $0x1f0] sm:$0xff]
    %v1550 = vld [vmem:[#allocation2 + $0x1f8] sm:$0xff]
    %v1551 = vld [vmem:[#allocation2 + $0x200] sm:$0xff]
    %v1552 = vld [vmem:[#allocation2 + $0x208] sm:$0xff]
    %v1553 = vld [vmem:[#allocation2 + $0x210] sm:$0xff]
    %v1554 = vld [vmem:[#allocation2 + $0x218] sm:$0xff]
    %v1555 = vld [vmem:[#allocation2 + $0x220] sm:$0xff]
    %v1556 = vld [vmem:[#allocation2 + $0x228] sm:$0xff]
    %v1557 = vld [vmem:[#allocation2 + $0x230] sm:$0xff]
    %v1558 = vld [vmem:[#allocation2 + $0x238] sm:$0xff]
    %v1559 = vld [vmem:[#allocation2 + $0x240] sm:$0xff]
    %v1560 = vld [vmem:[#allocation2 + $0x248] sm:$0xff]
    %v1561 = vld [vmem:[#allocation2 + $0x250] sm:$0xff]
    %v1562 = vld [vmem:[#allocation2 + $0x258] sm:$0xff]
    %v1563 = vld [vmem:[#allocation2 + $0x260] sm:$0xff]
    %v1564 = vld [vmem:[#allocation2 + $0x268] sm:$0xff]
    %v1565 = vld [vmem:[#allocation2 + $0x270] sm:$0xff]
    %v1566 = vld [vmem:[#allocation2 + $0x278] sm:$0xff]
    %v1567 = vld [vmem:[#allocation2 + $0x280] sm:$0xff]
    %v1568 = vld [vmem:[#allocation2 + $0x288] sm:$0xff]
    %v1569 = vld [vmem:[#allocation2 + $0x290] sm:$0xff]
    %v1570 = vld [vmem:[#allocation2 + $0x298] sm:$0xff]
    %v1571 = vld [vmem:[#allocation2 + $0x2a0] sm:$0xff]
    %v1572 = vld [vmem:[#allocation2 + $0x2a8] sm:$0xff]
    %v1573 = vld [vmem:[#allocation2 + $0x2b0] sm:$0xff]
    %v1574 = vld [vmem:[#allocation2 + $0x2b8] sm:$0xff]
    %v1575 = vld [vmem:[#allocation2 + $0x2c0] sm:$0xff]
    %v1576 = vld [vmem:[#allocation2 + $0x2c8] sm:$0xff]
    %v1577 = vld [vmem:[#allocation2 + $0x2d0] sm:$0xff]
    %v1578 = vld [vmem:[#allocation2 + $0x2d8] sm:$0xff]
    %v1579 = vld [vmem:[#allocation2 + $0x2e0] sm:$0xff]
    %v1580 = vld [vmem:[#allocation2 + $0x2e8] sm:$0xff]
    %v1581 = vld [vmem:[#allocation2 + $0x2f0] sm:$0xff]
    %v1582 = vld [vmem:[#allocation2 + $0x2f8] sm:$0xff]
    %v1583 = vld [vmem:[#allocation2 + $0x300] sm:$0xff]
    %v1584 = vld [vmem:[#allocation2 + $0x308] sm:$0xff]
    %v1585 = vld [vmem:[#allocation2 + $0x310] sm:$0xff]
    %v1586 = vld [vmem:[#allocation2 + $0x318] sm:$0xff]
    %v1587 = vld [vmem:[#allocation2 + $0x320] sm:$0xff]
    %v1588 = vld [vmem:[#allocation2 + $0x328] sm:$0xff]
    %v1589 = vld [vmem:[#allocation2 + $0x330] sm:$0xff]
    %v1590 = vld [vmem:[#allocation2 + $0x338] sm:$0xff]
    %v1591 = vld [vmem:[#allocation2 + $0x340] sm:$0xff]
    %v1592 = vld [vmem:[#allocation2 + $0x348] sm:$0xff]
    %v1593 = vld [vmem:[#allocation2 + $0x350] sm:$0xff]
    %v1594 = vld [vmem:[#allocation2 + $0x358] sm:$0xff]
    %v1595 = vld [vmem:[#allocation2 + $0x360] sm:$0xff]
    %v1596 = vld [vmem:[#allocation2 + $0x368] sm:$0xff]
    %v1597 = vld [vmem:[#allocation2 + $0x370] sm:$0xff]
    %v1598 = vld [vmem:[#allocation2 + $0x378] sm:$0xff]
    %v1599 = vld [vmem:[#allocation2 + $0x380] sm:$0xff]
    %v1600 = vld [vmem:[#allocation2 + $0x388] sm:$0xff]
    %v1601 = vld [vmem:[#allocation2 + $0x390] sm:$0xff]
    %v1602 = vld [vmem:[#allocation2 + $0x398] sm:$0xff]
    %v1603 = vld [vmem:[#allocation2 + $0x3a0] sm:$0xff]
    %v1604 = vld [vmem:[#allocation2 + $0x3a8] sm:$0xff]
    %v1605 = vld [vmem:[#allocation2 + $0x3b0] sm:$0xff]
    %v1606 = vld [vmem:[#allocation2 + $0x3b8] sm:$0xff]
    %v1607 = vld [vmem:[#allocation2 + $0x3c0] sm:$0xff]
    %v1608 = vld [vmem:[#allocation2 + $0x3c8] sm:$0xff]
    %v1609 = vld [vmem:[#allocation2 + $0x3d0] sm:$0xff]
    %v1610 = vld [vmem:[#allocation2 + $0x3d8] sm:$0xff]
    %v1611 = vld [vmem:[#allocation2 + $0x3e0] sm:$0xff]
    %v1612 = vld [vmem:[#allocation2 + $0x3e8] sm:$0xff]
    %v1613 = vld [vmem:[#allocation2 + $0x3f0] sm:$0xff]
    %v1614 = vld [vmem:[#allocation2 + $0x3f8] sm:$0xff]
    %v1615 = vld [vmem:[#allocation2 + $0x400] sm:$0xff]
    %v1616 = vld [vmem:[#allocation2 + $0x408] sm:$0xff]
    %v1617 = vld [vmem:[#allocation2 + $0x410] sm:$0xff]
    %v1618 = vld [vmem:[#allocation2 + $0x418] sm:$0xff]
    %v1619 = vld [vmem:[#allocation2 + $0x420] sm:$0xff]
    %v1620 = vld [vmem:[#allocation2 + $0x428] sm:$0xff]
    %v1621 = vld [vmem:[#allocation2 + $0x430] sm:$0xff]
    %v1622 = vld [vmem:[#allocation2 + $0x438] sm:$0xff]
    %v1623 = vld [vmem:[#allocation2 + $0x440] sm:$0xff]
    %v1624 = vld [vmem:[#allocation2 + $0x448] sm:$0xff]
    %v1625 = vld [vmem:[#allocation2 + $0x450] sm:$0xff]
    %v1626 = vld [vmem:[#allocation2 + $0x458] sm:$0xff]
    %v1627 = vld [vmem:[#allocation2 + $0x460] sm:$0xff]
    %v1628 = vld [vmem:[#allocation2 + $0x468] sm:$0xff]
    %v1629 = vld [vmem:[#allocation2 + $0x470] sm:$0xff]
    %v1630 = vld [vmem:[#allocation2 + $0x478] sm:$0xff]
    %v1631 = vld [vmem:[#allocation2 + $0x480] sm:$0xff]
    %v1632 = vld [vmem:[#allocation2 + $0x488] sm:$0xff]
    %v1633 = vld [vmem:[#allocation2 + $0x490] sm:$0xff]
    %v1634 = vld [vmem:[#allocation2 + $0x498] sm:$0xff]
    %v1635 = vld [vmem:[#allocation2 + $0x4a0] sm:$0xff]
    %v1636 = vld [vmem:[#allocation2 + $0x4a8] sm:$0xff]
    %v1637 = vld [vmem:[#allocation2 + $0x4b0] sm:$0xff]
    %v1638 = vld [vmem:[#allocation2 + $0x4b8] sm:$0xff]
    %v1639 = vld [vmem:[#allocation2 + $0x4c0] sm:$0xff]
    %v1640 = vld [vmem:[#allocation2 + $0x4c8] sm:$0xff]
    %v1641 = vld [vmem:[#allocation2 + $0x4d0] sm:$0xff]
    %v1642 = vld [vmem:[#allocation2 + $0x4d8] sm:$0xff]
    %v1643 = vld [vmem:[#allocation2 + $0x4e0] sm:$0xff]
    %v1644 = vld [vmem:[#allocation2 + $0x4e8] sm:$0xff]
    %v1645 = vld [vmem:[#allocation2 + $0x4f0] sm:$0xff]
    %v1646 = vld [vmem:[#allocation2 + $0x4f8] sm:$0xff]
    %1647 = vmatprep.subr.mxu0 %v1520
    %1648 = vmatpush1.msra.mxu0 %v1519
    %1649 = vmatprep.subr.mxu0 %v1522
    %1650 = vmatpush1.msra.mxu0 %v1521
    %1651 = vmatprep.subr.mxu0 %v1524
    %1652 = vmatpush1.msra.mxu0 %v1523
    %1653 = vmatprep.subr.mxu0 %v1526
    %1654 = vmatpush1.msra.mxu0 %v1525
    %1655 = vmatprep.subr.mxu0 %v1528
    %1656 = vmatpush1.msra.mxu0 %v1527
    %1657 = vmatprep.subr.mxu0 %v1530
    %1658 = vmatpush1.msra.mxu0 %v1529
    %1659 = vmatprep.subr.mxu0 %v1532
    %1660 = vmatpush1.msra.mxu0 %v1531
    %1661 = vmatprep.subr.mxu0 %v1534
    %1662 = vmatpush1.msra.mxu0 %v1533
    %1663 = vmatprep.subr.mxu0 %v1536
    %1664 = vmatpush1.msra.mxu0 %v1535
    %1665 = vmatprep.subr.mxu0 %v1538
    %1666 = vmatpush1.msra.mxu0 %v1537
    %1667 = vmatprep.subr.mxu0 %v1540
    %1668 = vmatpush1.msra.mxu0 %v1539
    %1669 = vmatprep.subr.mxu0 %v1542
    %1670 = vmatpush1.msra.mxu0 %v1541
    %1671 = vmatprep.subr.mxu0 %v1544
    %1672 = vmatpush1.msra.mxu0 %v1543
    %1673 = vmatprep.subr.mxu0 %v1546
    %1674 = vmatpush1.msra.mxu0 %v1545
    %1675 = vmatprep.subr.mxu0 %v1548
    %1676 = vmatpush1.msra.mxu0 %v1547
    %1677 = vmatprep.subr.mxu0 %v1550
    %1678 = vmatpush1.msra.mxu0 %v1549
    %1679 = vmatprep.subr.mxu0 0.0
    %1680 = vmatpush1.msra.mxu0 0.0
    %1681 = vmatprep.subr.mxu0 0.0
    %1682 = vmatpush1.msra.mxu0 0.0
    %1683 = vmatprep.subr.mxu0 0.0
    %1684 = vmatpush1.msra.mxu0 0.0
    %1685 = vmatprep.subr.mxu0 0.0
    %1686 = vmatpush1.msra.mxu0 0.0
    %1687 = vmatprep.subr.mxu0 0.0
    %1688 = vmatpush1.msra.mxu0 0.0
    %1689 = vmatprep.subr.mxu0 0.0
    %1690 = vmatpush1.msra.mxu0 0.0
    %1691 = vmatprep.subr.mxu0 0.0
    %1692 = vmatpush1.msra.mxu0 0.0
    %1693 = vmatprep.subr.mxu0 0.0
    %1694 = vmatpush1.msra.mxu0 0.0
    %1695 = vmatprep.subr.mxu0 0.0
    %1696 = vmatpush1.msra.mxu0 0.0
    %1697 = vmatprep.subr.mxu0 0.0
    %1698 = vmatpush1.msra.mxu0 0.0
    %1699 = vmatprep.subr.mxu0 0.0
    %1700 = vmatpush1.msra.mxu0 0.0
    %1701 = vmatprep.subr.mxu0 0.0
    %1702 = vmatpush1.msra.mxu0 0.0
    %1703 = vmatprep.subr.mxu0 0.0
    %1704 = vmatpush1.msra.mxu0 0.0
    %1705 = vmatprep.subr.mxu0 0.0
    %1706 = vmatpush1.msra.mxu0 0.0
    %1707 = vmatprep.subr.mxu0 0.0
    %1708 = vmatpush1.msra.mxu0 0.0
    %1709 = vmatprep.subr.mxu0 0.0
    %1710 = vmatpush1.msra.mxu0 0.0
    %1711 = vmatprep.mubr.f32.mxu0 0.0
    %1712 = vmatmul.mubr.f32.gmra.mrb[0].mxu0 %v1476
    %v1713 = vpop.f32.mrb[0].mxu0
    %v1714 = vadd.f32 0.0, %v1713
    %v1715 = vpop.f32.mrb[0].mxu0
    %v1716 = vadd.f32 0.0, %v1715
    %1717 = vmatprep.mubr.f32.mxu0 0.0
    %1718 = vmatmul.mubr.f32.gmra.mrb[0].mxu0 %v1477
    %v1719 = vpop.f32.mrb[0].mxu0
    %v1720 = vadd.f32 0.0, %v1719
    %v1721 = vpop.f32.mrb[0].mxu0
    %v1722 = vadd.f32 0.0, %v1721
    %1723 = vmatprep.mubr.f32.mxu0 0.0
    %1724 = vmatmul.mubr.f32.gmra.mrb[0].mxu0 %v1478
    %v1725 = vpop.f32.mrb[0].mxu0
    %v1726 = vadd.f32 0.0, %v1725
    %v1727 = vpop.f32.mrb[0].mxu0
    %v1728 = vadd.f32 0.0, %v1727
    %1729 = vmatprep.mubr.f32.mxu0 0.0
    %1730 = vmatmul.mubr.f32.gmra.mrb[0].mxu0 %v1479
    %v1731 = vpop.f32.mrb[0].mxu0
    %v1732 = vadd.f32 0.0, %v1731
    %v1733 = vpop.f32.mrb[0].mxu0
    %v1734 = vadd.f32 0.0, %v1733
    %1735 = vmatprep.mubr.f32.mxu0 0.0
    %1736 = vmatmul.mubr.f32.gmra.mrb[0].mxu0 %v1480
    %v1737 = vpop.f32.mrb[0].mxu0
    %v1738 = vadd.f32 0.0, %v1737
    %v1739 = vpop.f32.mrb[0].mxu0
    %v1740 = vadd.f32 0.0, %v1739
    %1741 = vmatprep.mubr.f32.mxu0 0.0
    %1742 = vmatmul.mubr.f32.gmra.mrb[0].mxu0 %v1481
    %v1743 = vpop.f32.mrb[0].mxu0
    %v1744 = vadd.f32 0.0, %v1743
    %v1745 = vpop.f32.mrb[0].mxu0
    %v1746 = vadd.f32 0.0, %v1745
    %1747 = vmatprep.mubr.f32.mxu0 0.0
    %1748 = vmatmul.mubr.f32.gmra.mrb[0].mxu0 %v1482
    %v1749 = vpop.f32.mrb[0].mxu0
    %v1750 = vadd.f32 0.0, %v1749
    %v1751 = vpop.f32.mrb[0].mxu0
    %v1752 = vadd.f32 0.0, %v1751
    %1753 = vmatprep.mubr.f32.mxu0 0.0
    %1754 = vmatmul.mubr.f32.gmra.mrb[0].mxu0 %v1483
    %v1755 = vpop.f32.mrb[0].mxu0
    %v1756 = vadd.f32 0.0, %v1755
    %v1757 = vpop.f32.mrb[0].mxu0
    %v1758 = vadd.f32 0.0, %v1757
    %1759 = vdwg.mxu0
    %1760 = vmatprep.subr.mxu0 %v1488
    %1761 = vmatpush1.msra.mxu0 %v1487
    %1762 = vmatprep.subr.mxu0 %v1490
    %1763 = vmatpush1.msra.mxu0 %v1489
    %1764 = vmatprep.subr.mxu0 %v1492
    %1765 = vmatpush1.msra.mxu0 %v1491
    %1766 = vmatprep.subr.mxu0 %v1494
    %1767 = vmatpush1.msra.mxu0 %v1493
    %1768 = vmatprep.subr.mxu0 %v1496
    %1769 = vmatpush1.msra.mxu0 %v1495
    %1770 = vmatprep.subr.mxu0 %v1498
    %1771 = vmatpush1.msra.mxu0 %v1497
    %1772 = vmatprep.subr.mxu0 %v1500
    %1773 = vmatpush1.msra.mxu0 %v1499
    %1774 = vmatprep.subr.mxu0 %v1502
    %1775 = vmatpush1.msra.mxu0 %v1501
    %1776 = vmatprep.subr.mxu0 %v1504
    %1777 = vmatpush1.msra.mxu0 %v1503
    %1778 = vmatprep.subr.mxu0 %v1506
    %1779 = vmatpush1.msra.mxu0 %v1505
    %1780 = vmatprep.subr.mxu0 %v1508
    %1781 = vmatpush1.msra.mxu0 %v1507
    %1782 = vmatprep.subr.mxu0 %v1510
    %1783 = vmatpush1.msra.mxu0 %v1509
    %1784 = vmatprep.subr.mxu0 %v1512
    %1785 = vmatpush1.msra.mxu0 %v1511
    %1786 = vmatprep.subr.mxu0 %v1514
    %1787 = vmatpush1.msra.mxu0 %v1513
    %1788 = vmatprep.subr.mxu0 %v1516
    %1789 = vmatpush1.msra.mxu0 %v1515
    %1790 = vmatprep.subr.mxu0 %v1518
    %1791 = vmatpush1.msra.mxu0 %v1517
    %1792 = vmatprep.subr.mxu0 0.0
    %1793 = vmatpush1.msra.mxu0 0.0
    %1794 = vmatprep.subr.mxu0 0.0
    %1795 = vmatpush1.msra.mxu0 0.0
    %1796 = vmatprep.subr.mxu0 0.0
    %1797 = vmatpush1.msra.mxu0 0.0
    %1798 = vmatprep.subr.mxu0 0.0
    %1799 = vmatpush1.msra.mxu0 0.0
    %1800 = vmatprep.subr.mxu0 0.0
    %1801 = vmatpush1.msra.mxu0 0.0
    %1802 = vmatprep.subr.mxu0 0.0
    %1803 = vmatpush1.msra.mxu0 0.0
    %1804 = vmatprep.subr.mxu0 0.0
    %1805 = vmatpush1.msra.mxu0 0.0
    %1806 = vmatprep.subr.mxu0 0.0
    %1807 = vmatpush1.msra.mxu0 0.0
    %1808 = vmatprep.subr.mxu0 0.0
    %1809 = vmatpush1.msra.mxu0 0.0
    %1810 = vmatprep.subr.mxu0 0.0
    %1811 = vmatpush1.msra.mxu0 0.0
    %1812 = vmatprep.subr.mxu0 0.0
    %1813 = vmatpush1.msra.mxu0 0.0
    %1814 = vmatprep.subr.mxu0 0.0
    %1815 = vmatpush1.msra.mxu0 0.0
    %1816 = vmatprep.subr.mxu0 0.0
    %1817 = vmatpush1.msra.mxu0 0.0
    %1818 = vmatprep.subr.mxu0 0.0
    %1819 = vmatpush1.msra.mxu0 0.0
    %1820 = vmatprep.subr.mxu0 0.0
    %1821 = vmatpush1.msra.mxu0 0.0
    %1822 = vmatprep.subr.mxu0 0.0
    %1823 = vmatpush1.msra.mxu0 0.0
    %1824 = vmatprep.mubr.f32.mxu0 0.0
    %1825 = vmatmul.mubr.f32.gmra.mrb[0].mxu0 %v1475
    %v1826 = vpop.f32.mrb[0].mxu0
    %v1827 = vadd.f32 %v1714, %v1826
    %v1828 = vpop.f32.mrb[0].mxu0
    %v1829 = vadd.f32 %v1716, %v1828
    %1830 = vmatprep.mubr.f32.mxu0 0.0
    %1831 = vmatmul.mubr.f32.gmra.mrb[0].mxu0 %v1476
    %v1832 = vpop.f32.mrb[0].mxu0
    %v1833 = vadd.f32 %v1720, %v1832
    %v1834 = vpop.f32.mrb[0].mxu0
    %v1835 = vadd.f32 %v1722, %v1834
    %1836 = vmatprep.mubr.f32.mxu0 0.0
    %1837 = vmatmul.mubr.f32.gmra.mrb[0].mxu0 %v1477
    %v1838 = vpop.f32.mrb[0].mxu0
    %v1839 = vadd.f32 %v1726, %v1838
    %v1840 = vpop.f32.mrb[0].mxu0
    %v1841 = vadd.f32 %v1728, %v1840
    %1842 = vmatprep.mubr.f32.mxu0 0.0
    %1843 = vmatmul.mubr.f32.gmra.mrb[0].mxu0 %v1478
    %v1844 = vpop.f32.mrb[0].mxu0
    %v1845 = vadd.f32 %v1732, %v1844
    %v1846 = vpop.f32.mrb[0].mxu0
    %v1847 = vadd.f32 %v1734, %v1846
    %1848 = vmatprep.mubr.f32.mxu0 0.0
    %1849 = vmatmul.mubr.f32.gmra.mrb[0].mxu0 %v1479
    %v1850 = vpop.f32.mrb[0].mxu0
    %v1851 = vadd.f32 %v1738, %v1850
    %v1852 = vpop.f32.mrb[0].mxu0
    %v1853 = vadd.f32 %v1740, %v1852
    %1854 = vmatprep.mubr.f32.mxu0 0.0
    %1855 = vmatmul.mubr.f32.gmra.mrb[0].mxu0 %v1480
    %v1856 = vpop.f32.mrb[0].mxu0
    %v1857 = vadd.f32 %v1744, %v1856
    %v1858 = vpop.f32.mrb[0].mxu0
    %v1859 = vadd.f32 %v1746, %v1858
    %1860 = vmatprep.mubr.f32.mxu0 0.0
    %1861 = vmatmul.mubr.f32.gmra.mrb[0].mxu0 %v1481
    %v1862 = vpop.f32.mrb[0].mxu0
    %v1863 = vadd.f32 %v1750, %v1862
    %v1864 = vpop.f32.mrb[0].mxu0
    %v1865 = vadd.f32 %v1752, %v1864
    %1866 = vmatprep.mubr.f32.mxu0 0.0
    %1867 = vmatmul.mubr.f32.gmra.mrb[0].mxu0 %v1482
    %v1868 = vpop.f32.mrb[0].mxu0
    %v1869 = vadd.f32 %v1756, %v1868
    %v1870 = vpop.f32.mrb[0].mxu0
    %v1871 = vadd.f32 %v1758, %v1870
    %1872 = vdwg.mxu0
    %1873 = vmatprep.subr.mxu0 %v1552
    %1874 = vmatpush1.msra.mxu0 %v1551
    %1875 = vmatprep.subr.mxu0 %v1554
    %1876 = vmatpush1.msra.mxu0 %v1553
    %1877 = vmatprep.subr.mxu0 %v1556
    %1878 = vmatpush1.msra.mxu0 %v1555
    %1879 = vmatprep.subr.mxu0 %v1558
    %1880 = vmatpush1.msra.mxu0 %v1557
    %1881 = vmatprep.subr.mxu0 %v1560
    %1882 = vmatpush1.msra.mxu0 %v1559
    %1883 = vmatprep.subr.mxu0 %v1562
    %1884 = vmatpush1.msra.mxu0 %v1561
    %1885 = vmatprep.subr.mxu0 %v1564
    %1886 = vmatpush1.msra.mxu0 %v1563
    %1887 = vmatprep.subr.mxu0 %v1566
    %1888 = vmatpush1.msra.mxu0 %v1565
    %1889 = vmatprep.subr.mxu0 %v1568
    %1890 = vmatpush1.msra.mxu0 %v1567
    %1891 = vmatprep.subr.mxu0 %v1570
    %1892 = vmatpush1.msra.mxu0 %v1569
    %1893 = vmatprep.subr.mxu0 %v1572
    %1894 = vmatpush1.msra.mxu0 %v1571
    %1895 = vmatprep.subr.mxu0 %v1574
    %1896 = vmatpush1.msra.mxu0 %v1573
    %1897 = vmatprep.subr.mxu0 %v1576
    %1898 = vmatpush1.msra.mxu0 %v1575
    %1899 = vmatprep.subr.mxu0 %v1578
    %1900 = vmatpush1.msra.mxu0 %v1577
    %1901 = vmatprep.subr.mxu0 %v1580
    %1902 = vmatpush1.msra.mxu0 %v1579
    %1903 = vmatprep.subr.mxu0 %v1582
    %1904 = vmatpush1.msra.mxu0 %v1581
    %1905 = vmatprep.subr.mxu0 0.0
    %1906 = vmatpush1.msra.mxu0 0.0
    %1907 = vmatprep.subr.mxu0 0.0
    %1908 = vmatpush1.msra.mxu0 0.0
    %1909 = vmatprep.subr.mxu0 0.0
    %1910 = vmatpush1.msra.mxu0 0.0
    %1911 = vmatprep.subr.mxu0 0.0
    %1912 = vmatpush1.msra.mxu0 0.0
    %1913 = vmatprep.subr.mxu0 0.0
    %1914 = vmatpush1.msra.mxu0 0.0
    %1915 = vmatprep.subr.mxu0 0.0
    %1916 = vmatpush1.msra.mxu0 0.0
    %1917 = vmatprep.subr.mxu0 0.0
    %1918 = vmatpush1.msra.mxu0 0.0
    %1919 = vmatprep.subr.mxu0 0.0
    %1920 = vmatpush1.msra.mxu0 0.0
    %1921 = vmatprep.subr.mxu0 0.0
    %1922 = vmatpush1.msra.mxu0 0.0
    %1923 = vmatprep.subr.mxu0 0.0
    %1924 = vmatpush1.msra.mxu0 0.0
    %1925 = vmatprep.subr.mxu0 0.0
    %1926 = vmatpush1.msra.mxu0 0.0
    %1927 = vmatprep.subr.mxu0 0.0
    %1928 = vmatpush1.msra.mxu0 0.0
    %1929 = vmatprep.subr.mxu0 0.0
    %1930 = vmatpush1.msra.mxu0 0.0
    %1931 = vmatprep.subr.mxu0 0.0
    %1932 = vmatpush1.msra.mxu0 0.0
    %1933 = vmatprep.subr.mxu0 0.0
    %1934 = vmatpush1.msra.mxu0 0.0
    %1935 = vmatprep.subr.mxu0 0.0
    %1936 = vmatpush1.msra.mxu0 0.0
    %1937 = vmatprep.mubr.f32.mxu0 0.0
    %1938 = vmatmul.mubr.f32.gmra.mrb[0].mxu0 %v1477
    %v1939 = vpop.f32.mrb[0].mxu0
    %v1940 = vadd.f32 0.0, %v1939
    %v1941 = vpop.f32.mrb[0].mxu0
    %v1942 = vadd.f32 0.0, %v1941
    %1943 = vmatprep.mubr.f32.mxu0 0.0
    %1944 = vmatmul.mubr.f32.gmra.mrb[0].mxu0 %v1478
    %v1945 = vpop.f32.mrb[0].mxu0
    %v1946 = vadd.f32 0.0, %v1945
    %v1947 = vpop.f32.mrb[0].mxu0
    %v1948 = vadd.f32 0.0, %v1947
    %1949 = vmatprep.mubr.f32.mxu0 0.0
    %1950 = vmatmul.mubr.f32.gmra.mrb[0].mxu0 %v1479
    %v1951 = vpop.f32.mrb[0].mxu0
    %v1952 = vadd.f32 0.0, %v1951
    %v1953 = vpop.f32.mrb[0].mxu0
    %v1954 = vadd.f32 0.0, %v1953
    %1955 = vmatprep.mubr.f32.mxu0 0.0
    %1956 = vmatmul.mubr.f32.gmra.mrb[0].mxu0 %v1480
    %v1957 = vpop.f32.mrb[0].mxu0
    %v1958 = vadd.f32 0.0, %v1957
    %v1959 = vpop.f32.mrb[0].mxu0
    %v1960 = vadd.f32 0.0, %v1959
    %1961 = vmatprep.mubr.f32.mxu0 0.0
    %1962 = vmatmul.mubr.f32.gmra.mrb[0].mxu0 %v1481
    %v1963 = vpop.f32.mrb[0].mxu0
    %v1964 = vadd.f32 0.0, %v1963
    %v1965 = vpop.f32.mrb[0].mxu0
    %v1966 = vadd.f32 0.0, %v1965
    %1967 = vmatprep.mubr.f32.mxu0 0.0
    %1968 = vmatmul.mubr.f32.gmra.mrb[0].mxu0 %v1482
    %v1969 = vpop.f32.mrb[0].mxu0
    %v1970 = vadd.f32 0.0, %v1969
    %v1971 = vpop.f32.mrb[0].mxu0
    %v1972 = vadd.f32 0.0, %v1971
    %1973 = vmatprep.mubr.f32.mxu0 0.0
    %1974 = vmatmul.mubr.f32.gmra.mrb[0].mxu0 %v1483
    %v1975 = vpop.f32.mrb[0].mxu0
    %v1976 = vadd.f32 0.0, %v1975
    %v1977 = vpop.f32.mrb[0].mxu0
    %v1978 = vadd.f32 0.0, %v1977
    %1979 = vmatprep.mubr.f32.mxu0 0.0
    %1980 = vmatmul.mubr.f32.gmra.mrb[0].mxu0 %v1484
    %v1981 = vpop.f32.mrb[0].mxu0
    %v1982 = vadd.f32 0.0, %v1981
    %v1983 = vpop.f32.mrb[0].mxu0
    %v1984 = vadd.f32 0.0, %v1983
    %1985 = vdwg.mxu0
    %v1986 = vadd.f32 %v1827, %v1940
    %v1987 = vadd.f32 %v1829, %v1942
    %v1988 = vadd.f32 %v1833, %v1946
    %v1989 = vadd.f32 %v1835, %v1948
    %v1990 = vadd.f32 %v1839, %v1952
    %v1991 = vadd.f32 %v1841, %v1954
    %v1992 = vadd.f32 %v1845, %v1958
    %v1993 = vadd.f32 %v1847, %v1960
    %v1994 = vadd.f32 %v1851, %v1964
    %v1995 = vadd.f32 %v1853, %v1966
    %v1996 = vadd.f32 %v1857, %v1970
    %v1997 = vadd.f32 %v1859, %v1972
    %v1998 = vadd.f32 %v1863, %v1976
    %v1999 = vadd.f32 %v1865, %v1978
    %v2000 = vadd.f32 %v1869, %v1982
    %v2001 = vadd.f32 %v1871, %v1984
    %2002 = vmatprep.subr.mxu0 %v1584
    %2003 = vmatpush1.msra.mxu0 %v1583
    %2004 = vmatprep.subr.mxu0 %v1586
    %2005 = vmatpush1.msra.mxu0 %v1585
    %2006 = vmatprep.subr.mxu0 %v1588
    %2007 = vmatpush1.msra.mxu0 %v1587
    %2008 = vmatprep.subr.mxu0 %v1590
    %2009 = vmatpush1.msra.mxu0 %v1589
    %2010 = vmatprep.subr.mxu0 %v1592
    %2011 = vmatpush1.msra.mxu0 %v1591
    %2012 = vmatprep.subr.mxu0 %v1594
    %2013 = vmatpush1.msra.mxu0 %v1593
    %2014 = vmatprep.subr.mxu0 %v1596
    %2015 = vmatpush1.msra.mxu0 %v1595
    %2016 = vmatprep.subr.mxu0 %v1598
    %2017 = vmatpush1.msra.mxu0 %v1597
    %2018 = vmatprep.subr.mxu0 %v1600
    %2019 = vmatpush1.msra.mxu0 %v1599
    %2020 = vmatprep.subr.mxu0 %v1602
    %2021 = vmatpush1.msra.mxu0 %v1601
    %2022 = vmatprep.subr.mxu0 %v1604
    %2023 = vmatpush1.msra.mxu0 %v1603
    %2024 = vmatprep.subr.mxu0 %v1606
    %2025 = vmatpush1.msra.mxu0 %v1605
    %2026 = vmatprep.subr.mxu0 %v1608
    %2027 = vmatpush1.msra.mxu0 %v1607
    %2028 = vmatprep.subr.mxu0 %v1610
    %2029 = vmatpush1.msra.mxu0 %v1609
    %2030 = vmatprep.subr.mxu0 %v1612
    %2031 = vmatpush1.msra.mxu0 %v1611
    %2032 = vmatprep.subr.mxu0 %v1614
    %2033 = vmatpush1.msra.mxu0 %v1613
    %2034 = vmatprep.subr.mxu0 0.0
    %2035 = vmatpush1.msra.mxu0 0.0
    %2036 = vmatprep.subr.mxu0 0.0
    %2037 = vmatpush1.msra.mxu0 0.0
    %2038 = vmatprep.subr.mxu0 0.0
    %2039 = vmatpush1.msra.mxu0 0.0
    %2040 = vmatprep.subr.mxu0 0.0
    %2041 = vmatpush1.msra.mxu0 0.0
    %2042 = vmatprep.subr.mxu0 0.0
    %2043 = vmatpush1.msra.mxu0 0.0
    %2044 = vmatprep.subr.mxu0 0.0
    %2045 = vmatpush1.msra.mxu0 0.0
    %2046 = vmatprep.subr.mxu0 0.0
    %2047 = vmatpush1.msra.mxu0 0.0
    %2048 = vmatprep.subr.mxu0 0.0
    %2049 = vmatpush1.msra.mxu0 0.0
    %2050 = vmatprep.subr.mxu0 0.0
    %2051 = vmatpush1.msra.mxu0 0.0
    %2052 = vmatprep.subr.mxu0 0.0
    %2053 = vmatpush1.msra.mxu0 0.0
    %2054 = vmatprep.subr.mxu0 0.0
    %2055 = vmatpush1.msra.mxu0 0.0
    %2056 = vmatprep.subr.mxu0 0.0
    %2057 = vmatpush1.msra.mxu0 0.0
    %2058 = vmatprep.subr.mxu0 0.0
    %2059 = vmatpush1.msra.mxu0 0.0
    %2060 = vmatprep.subr.mxu0 0.0
    %2061 = vmatpush1.msra.mxu0 0.0
    %2062 = vmatprep.subr.mxu0 0.0
    %2063 = vmatpush1.msra.mxu0 0.0
    %2064 = vmatprep.subr.mxu0 0.0
    %2065 = vmatpush1.msra.mxu0 0.0
    %2066 = vmatprep.mubr.f32.mxu0 0.0
    %2067 = vmatmul.mubr.f32.gmra.mrb[0].mxu0 %v1478
    %v2068 = vpop.f32.mrb[0].mxu0
    %v2069 = vadd.f32 0.0, %v2068
    %v2070 = vpop.f32.mrb[0].mxu0
    %v2071 = vadd.f32 0.0, %v2070
    %2072 = vmatprep.mubr.f32.mxu0 0.0
    %2073 = vmatmul.mubr.f32.gmra.mrb[0].mxu0 %v1479
    %v2074 = vpop.f32.mrb[0].mxu0
    %v2075 = vadd.f32 0.0, %v2074
    %v2076 = vpop.f32.mrb[0].mxu0
    %v2077 = vadd.f32 0.0, %v2076
    %2078 = vmatprep.mubr.f32.mxu0 0.0
    %2079 = vmatmul.mubr.f32.gmra.mrb[0].mxu0 %v1480
    %v2080 = vpop.f32.mrb[0].mxu0
    %v2081 = vadd.f32 0.0, %v2080
    %v2082 = vpop.f32.mrb[0].mxu0
    %v2083 = vadd.f32 0.0, %v2082
    %2084 = vmatprep.mubr.f32.mxu0 0.0
    %2085 = vmatmul.mubr.f32.gmra.mrb[0].mxu0 %v1481
    %v2086 = vpop.f32.mrb[0].mxu0
    %v2087 = vadd.f32 0.0, %v2086
    %v2088 = vpop.f32.mrb[0].mxu0
    %v2089 = vadd.f32 0.0, %v2088
    %2090 = vmatprep.mubr.f32.mxu0 0.0
    %2091 = vmatmul.mubr.f32.gmra.mrb[0].mxu0 %v1482
    %v2092 = vpop.f32.mrb[0].mxu0
    %v2093 = vadd.f32 0.0, %v2092
    %v2094 = vpop.f32.mrb[0].mxu0
    %v2095 = vadd.f32 0.0, %v2094
    %2096 = vmatprep.mubr.f32.mxu0 0.0
    %2097 = vmatmul.mubr.f32.gmra.mrb[0].mxu0 %v1483
    %v2098 = vpop.f32.mrb[0].mxu0
    %v2099 = vadd.f32 0.0, %v2098
    %v2100 = vpop.f32.mrb[0].mxu0
    %v2101 = vadd.f32 0.0, %v2100
    %2102 = vmatprep.mubr.f32.mxu0 0.0
    %2103 = vmatmul.mubr.f32.gmra.mrb[0].mxu0 %v1484
    %v2104 = vpop.f32.mrb[0].mxu0
    %v2105 = vadd.f32 0.0, %v2104
    %v2106 = vpop.f32.mrb[0].mxu0
    %v2107 = vadd.f32 0.0, %v2106
    %2108 = vmatprep.mubr.f32.mxu0 0.0
    %2109 = vmatmul.mubr.f32.gmra.mrb[0].mxu0 %v1485
    %v2110 = vpop.f32.mrb[0].mxu0
    %v2111 = vadd.f32 0.0, %v2110
    %v2112 = vpop.f32.mrb[0].mxu0
    %v2113 = vadd.f32 0.0, %v2112
    %2114 = vdwg.mxu0
    %v2115 = vadd.f32 %v1986, %v2069
    %v2116 = vadd.f32 %v1987, %v2071
    %v2117 = vadd.f32 %v1988, %v2075
    %v2118 = vadd.f32 %v1989, %v2077
    %v2119 = vadd.f32 %v1990, %v2081
    %v2120 = vadd.f32 %v1991, %v2083
    %v2121 = vadd.f32 %v1992, %v2087
    %v2122 = vadd.f32 %v1993, %v2089
    %v2123 = vadd.f32 %v1994, %v2093
    %v2124 = vadd.f32 %v1995, %v2095
    %v2125 = vadd.f32 %v1996, %v2099
    %v2126 = vadd.f32 %v1997, %v2101
    %v2127 = vadd.f32 %v1998, %v2105
    %v2128 = vadd.f32 %v1999, %v2107
    %v2129 = vadd.f32 %v2000, %v2111
    %v2130 = vadd.f32 %v2001, %v2113
    %2131 = vmatprep.subr.mxu0 %v1616
    %2132 = vmatpush1.msra.mxu0 %v1615
    %2133 = vmatprep.subr.mxu0 %v1618
    %2134 = vmatpush1.msra.mxu0 %v1617
    %2135 = vmatprep.subr.mxu0 %v1620
    %2136 = vmatpush1.msra.mxu0 %v1619
    %2137 = vmatprep.subr.mxu0 %v1622
    %2138 = vmatpush1.msra.mxu0 %v1621
    %2139 = vmatprep.subr.mxu0 %v1624
    %2140 = vmatpush1.msra.mxu0 %v1623
    %2141 = vmatprep.subr.mxu0 %v1626
    %2142 = vmatpush1.msra.mxu0 %v1625
    %2143 = vmatprep.subr.mxu0 %v1628
    %2144 = vmatpush1.msra.mxu0 %v1627
    %2145 = vmatprep.subr.mxu0 %v1630
    %2146 = vmatpush1.msra.mxu0 %v1629
    %2147 = vmatprep.subr.mxu0 %v1632
    %2148 = vmatpush1.msra.mxu0 %v1631
    %2149 = vmatprep.subr.mxu0 %v1634
    %2150 = vmatpush1.msra.mxu0 %v1633
    %2151 = vmatprep.subr.mxu0 %v1636
    %2152 = vmatpush1.msra.mxu0 %v1635
    %2153 = vmatprep.subr.mxu0 %v1638
    %2154 = vmatpush1.msra.mxu0 %v1637
    %2155 = vmatprep.subr.mxu0 %v1640
    %2156 = vmatpush1.msra.mxu0 %v1639
    %2157 = vmatprep.subr.mxu0 %v1642
    %2158 = vmatpush1.msra.mxu0 %v1641
    %2159 = vmatprep.subr.mxu0 %v1644
    %2160 = vmatpush1.msra.mxu0 %v1643
    %2161 = vmatprep.subr.mxu0 %v1646
    %2162 = vmatpush1.msra.mxu0 %v1645
    %2163 = vmatprep.subr.mxu0 0.0
    %2164 = vmatpush1.msra.mxu0 0.0
    %2165 = vmatprep.subr.mxu0 0.0
    %2166 = vmatpush1.msra.mxu0 0.0
    %2167 = vmatprep.subr.mxu0 0.0
    %2168 = vmatpush1.msra.mxu0 0.0
    %2169 = vmatprep.subr.mxu0 0.0
    %2170 = vmatpush1.msra.mxu0 0.0
    %2171 = vmatprep.subr.mxu0 0.0
    %2172 = vmatpush1.msra.mxu0 0.0
    %2173 = vmatprep.subr.mxu0 0.0
    %2174 = vmatpush1.msra.mxu0 0.0
    %2175 = vmatprep.subr.mxu0 0.0
    %2176 = vmatpush1.msra.mxu0 0.0
    %2177 = vmatprep.subr.mxu0 0.0
    %2178 = vmatpush1.msra.mxu0 0.0
    %2179 = vmatprep.subr.mxu0 0.0
    %2180 = vmatpush1.msra.mxu0 0.0
    %2181 = vmatprep.subr.mxu0 0.0
    %2182 = vmatpush1.msra.mxu0 0.0
    %2183 = vmatprep.subr.mxu0 0.0
    %2184 = vmatpush1.msra.mxu0 0.0
    %2185 = vmatprep.subr.mxu0 0.0
    %2186 = vmatpush1.msra.mxu0 0.0
    %2187 = vmatprep.subr.mxu0 0.0
    %2188 = vmatpush1.msra.mxu0 0.0
    %2189 = vmatprep.subr.mxu0 0.0
    %2190 = vmatpush1.msra.mxu0 0.0
    %2191 = vmatprep.subr.mxu0 0.0
    %2192 = vmatpush1.msra.mxu0 0.0
    %2193 = vmatprep.subr.mxu0 0.0
    %2194 = vmatpush1.msra.mxu0 0.0
    %2195 = vmatprep.mubr.f32.mxu0 0.0
    %2196 = vmatmul.mubr.f32.gmra.mrb[0].mxu0 %v1479
    %v2197 = vpop.f32.mrb[0].mxu0
    %v2198 = vadd.f32 0.0, %v2197
    %v2199 = vpop.f32.mrb[0].mxu0
    %v2200 = vadd.f32 0.0, %v2199
    %2201 = vmatprep.mubr.f32.mxu0 0.0
    %2202 = vmatmul.mubr.f32.gmra.mrb[0].mxu0 %v1480
    %v2203 = vpop.f32.mrb[0].mxu0
    %v2204 = vadd.f32 0.0, %v2203
    %v2205 = vpop.f32.mrb[0].mxu0
    %v2206 = vadd.f32 0.0, %v2205
    %2207 = vmatprep.mubr.f32.mxu0 0.0
    %2208 = vmatmul.mubr.f32.gmra.mrb[0].mxu0 %v1481
    %v2209 = vpop.f32.mrb[0].mxu0
    %v2210 = vadd.f32 0.0, %v2209
    %v2211 = vpop.f32.mrb[0].mxu0
    %v2212 = vadd.f32 0.0, %v2211
    %2213 = vmatprep.mubr.f32.mxu0 0.0
    %2214 = vmatmul.mubr.f32.gmra.mrb[0].mxu0 %v1482
    %v2215 = vpop.f32.mrb[0].mxu0
    %v2216 = vadd.f32 0.0, %v2215
    %v2217 = vpop.f32.mrb[0].mxu0
    %v2218 = vadd.f32 0.0, %v2217
    %2219 = vmatprep.mubr.f32.mxu0 0.0
    %2220 = vmatmul.mubr.f32.gmra.mrb[0].mxu0 %v1483
    %v2221 = vpop.f32.mrb[0].mxu0
    %v2222 = vadd.f32 0.0, %v2221
    %v2223 = vpop.f32.mrb[0].mxu0
    %v2224 = vadd.f32 0.0, %v2223
    %2225 = vmatprep.mubr.f32.mxu0 0.0
    %2226 = vmatmul.mubr.f32.gmra.mrb[0].mxu0 %v1484
    %v2227 = vpop.f32.mrb[0].mxu0
    %v2228 = vadd.f32 0.0, %v2227
    %v2229 = vpop.f32.mrb[0].mxu0
    %v2230 = vadd.f32 0.0, %v2229
    %2231 = vmatprep.mubr.f32.mxu0 0.0
    %2232 = vmatmul.mubr.f32.gmra.mrb[0].mxu0 %v1485
    %v2233 = vpop.f32.mrb[0].mxu0
    %v2234 = vadd.f32 0.0, %v2233
    %v2235 = vpop.f32.mrb[0].mxu0
    %v2236 = vadd.f32 0.0, %v2235
    %2237 = vmatprep.mubr.f32.mxu0 0.0
    %2238 = vmatmul.mubr.f32.gmra.mrb[0].mxu0 %v1486
    %v2239 = vpop.f32.mrb[0].mxu0
    %v2240 = vadd.f32 0.0, %v2239
    %v2241 = vpop.f32.mrb[0].mxu0
    %v2242 = vadd.f32 0.0, %v2241
    %2243 = vdwg.mxu0
    %v2244 = vadd.f32 %v2115, %v2198
    %v2245 = vadd.f32 %v2116, %v2200
    %v2246 = vadd.f32 %v2117, %v2204
    %v2247 = vadd.f32 %v2118, %v2206
    %v2248 = vadd.f32 %v2119, %v2210
    %v2249 = vadd.f32 %v2120, %v2212
    %v2250 = vadd.f32 %v2121, %v2216
    %v2251 = vadd.f32 %v2122, %v2218
    %v2252 = vadd.f32 %v2123, %v2222
    %v2253 = vadd.f32 %v2124, %v2224
    %v2254 = vadd.f32 %v2125, %v2228
    %v2255 = vadd.f32 %v2126, %v2230
    %v2256 = vadd.f32 %v2127, %v2234
    %v2257 = vadd.f32 %v2128, %v2236
    %v2258 = vadd.f32 %v2129, %v2240
    %v2259 = vadd.f32 %v2130, %v2242
    %v2260 = vmax.f32 %v2244, %v2246
    %v2261 = vmax.f32 %v2245, %v2247
    %v2262 = vmax.f32 %v2248, %v2250
    %v2263 = vmax.f32 %v2249, %v2251
    %v2264 = vmax.f32 %v2252, %v2254
    %v2265 = vmax.f32 %v2253, %v2255
    %v2266 = vmax.f32 %v2256, %v2258
    %v2267 = vmax.f32 %v2257, %v2259
    %v2268 = vmax.f32 %v2260, %v2261
    %v2269 = vmax.f32 %v2262, %v2263
    %v2270 = vmax.f32 %v2264, %v2265
    %v2271 = vmax.f32 %v2266, %v2267
    %v2272 = vld [vmem:[%s4] sm:$0x1]
    %v2274 = vlaneseq
    %v2275 = vshrl.u32 %v2274, 7
    %v2276 = vsub.s32 0, %v2275
    %v2277 = vrot.slane %v2272, %v2276
    %v2279 = vadd.f32 %v2268, %v2277
    %v2280 = vadd.f32 %v2269, %v2277
    %v2281 = vadd.f32 %v2270, %v2277
    %v2282 = vadd.f32 %v2271, %v2277
    %v2283 = vmax.f32 %v2279, 0.0
    %v2284 = vmax.f32 %v2280, 0.0
    %v2285 = vmax.f32 %v2281, 0.0
    %v2286 = vmax.f32 %v2282, 0.0
    %v2287 = vld [vmem:[%s5] sm:$0xff]
    %v2288 = vld [vmem:[%s5 + $0x8] sm:$0xff]
    %v2289 = vld [vmem:[%s5 + $0x10] sm:$0xff]
    %v2290 = vld [vmem:[%s5 + $0x18] sm:$0xff]
    %v2291 = vld [vmem:[%s5 + $0x20] sm:$0xff]
    %v2292 = vld [vmem:[%s5 + $0x28] sm:$0xff]
    %v2293 = vld [vmem:[%s5 + $0x30] sm:$0xff]
    %v2294 = vld [vmem:[%s5 + $0x38] sm:$0xff]
    %v2295 = vld [vmem:[%s5 + $0x40] sm:$0xff]
    %v2296 = vld [vmem:[%s5 + $0x48] sm:$0xff]
    %v2297 = vld [vmem:[%s5 + $0x50] sm:$0xff]
    %v2298 = vld [vmem:[%s5 + $0x58] sm:$0xff]
    %v2299 = vld [vmem:[%s5 + $0x60] sm:$0xff]
    %v2300 = vld [vmem:[%s5 + $0x68] sm:$0xff]
    %v2301 = vld [vmem:[%s5 + $0x70] sm:$0xff]
    %v2302 = vld [vmem:[%s5 + $0x78] sm:$0xff]
    %v2303 = vld [vmem:[%s5 + $0x80] sm:$0xff]
    %v2304 = vld [vmem:[%s5 + $0x88] sm:$0xff]
    %v2305 = vld [vmem:[%s5 + $0x90] sm:$0xff]
    %v2306 = vld [vmem:[%s5 + $0x98] sm:$0xff]
    %v2307 = vld [vmem:[%s5 + $0xa0] sm:$0xff]
    %v2308 = vld [vmem:[%s5 + $0xa8] sm:$0xff]
    %v2309 = vld [vmem:[%s5 + $0xb0] sm:$0xff]
    %v2310 = vld [vmem:[%s5 + $0xb8] sm:$0xff]
    %v2311 = vld [vmem:[%s5 + $0xc0] sm:$0xff]
    %v2312 = vld [vmem:[%s5 + $0xc8] sm:$0xff]
    %v2313 = vld [vmem:[%s5 + $0xd0] sm:$0xff]
    %v2314 = vld [vmem:[%s5 + $0xd8] sm:$0xff]
    %v2315 = vld [vmem:[%s5 + $0xe0] sm:$0xff]
    %v2316 = vld [vmem:[%s5 + $0xe8] sm:$0xff]
    %v2317 = vld [vmem:[%s5 + $0xf0] sm:$0xff]
    %v2318 = vld [vmem:[%s5 + $0xf8] sm:$0xff]
    %v2319 = vld [vmem:[%s5 + $0x100] sm:$0xff]
    %v2320 = vld [vmem:[%s5 + $0x108] sm:$0xff]
    %v2321 = vld [vmem:[%s5 + $0x110] sm:$0xff]
    %v2322 = vld [vmem:[%s5 + $0x118] sm:$0xff]
    %v2323 = vld [vmem:[%s5 + $0x120] sm:$0xff]
    %v2324 = vld [vmem:[%s5 + $0x128] sm:$0xff]
    %v2325 = vld [vmem:[%s5 + $0x130] sm:$0xff]
    %v2326 = vld [vmem:[%s5 + $0x138] sm:$0xff]
    %v2327 = vld [vmem:[%s5 + $0x140] sm:$0xff]
    %v2328 = vld [vmem:[%s5 + $0x148] sm:$0xff]
    %v2329 = vld [vmem:[%s5 + $0x150] sm:$0xff]
    %v2330 = vld [vmem:[%s5 + $0x158] sm:$0xff]
    %v2331 = vld [vmem:[%s5 + $0x160] sm:$0xff]
    %v2332 = vld [vmem:[%s5 + $0x168] sm:$0xff]
    %v2333 = vld [vmem:[%s5 + $0x170] sm:$0xff]
    %v2334 = vld [vmem:[%s5 + $0x178] sm:$0xff]
    %v2335 = vld [vmem:[%s5 + $0x180] sm:$0xff]
    %v2336 = vld [vmem:[%s5 + $0x188] sm:$0xff]
    %v2337 = vld [vmem:[%s5 + $0x190] sm:$0xff]
    %v2338 = vld [vmem:[%s5 + $0x198] sm:$0xff]
    %v2339 = vld [vmem:[%s5 + $0x1a0] sm:$0xff]
    %v2340 = vld [vmem:[%s5 + $0x1a8] sm:$0xff]
    %v2341 = vld [vmem:[%s5 + $0x1b0] sm:$0xff]
    %v2342 = vld [vmem:[%s5 + $0x1b8] sm:$0xff]
    %v2343 = vld [vmem:[%s5 + $0x1c0] sm:$0xff]
    %v2344 = vld [vmem:[%s5 + $0x1c8] sm:$0xff]
    %v2345 = vld [vmem:[%s5 + $0x1d0] sm:$0xff]
    %v2346 = vld [vmem:[%s5 + $0x1d8] sm:$0xff]
    %v2347 = vld [vmem:[%s5 + $0x1e0] sm:$0xff]
    %v2348 = vld [vmem:[%s5 + $0x1e8] sm:$0xff]
    %v2349 = vld [vmem:[%s5 + $0x1f0] sm:$0xff]
    %v2350 = vld [vmem:[%s5 + $0x1f8] sm:$0xff]
    %2351 = vmatprep.subr.mxu0 0.0
    %2352 = vmatpush1.msra.mxu0 %v2303
    %2353 = vmatprep.subr.mxu0 0.0
    %2354 = vmatpush1.msra.mxu0 %v2304
    %2355 = vmatprep.subr.mxu0 0.0
    %2356 = vmatpush1.msra.mxu0 %v2305
    %2357 = vmatprep.subr.mxu0 0.0
    %2358 = vmatpush1.msra.mxu0 %v2306
    %2359 = vmatprep.subr.mxu0 0.0
    %2360 = vmatpush1.msra.mxu0 %v2307
    %2361 = vmatprep.subr.mxu0 0.0
    %2362 = vmatpush1.msra.mxu0 %v2308
    %2363 = vmatprep.subr.mxu0 0.0
    %2364 = vmatpush1.msra.mxu0 %v2309
    %2365 = vmatprep.subr.mxu0 0.0
    %2366 = vmatpush1.msra.mxu0 %v2310
    %2367 = vmatprep.subr.mxu0 0.0
    %2368 = vmatpush1.msra.mxu0 %v2311
    %2369 = vmatprep.subr.mxu0 0.0
    %2370 = vmatpush1.msra.mxu0 %v2312
    %2371 = vmatprep.subr.mxu0 0.0
    %2372 = vmatpush1.msra.mxu0 %v2313
    %2373 = vmatprep.subr.mxu0 0.0
    %2374 = vmatpush1.msra.mxu0 %v2314
    %2375 = vmatprep.subr.mxu0 0.0
    %2376 = vmatpush1.msra.mxu0 %v2315
    %2377 = vmatprep.subr.mxu0 0.0
    %2378 = vmatpush1.msra.mxu0 %v2316
    %2379 = vmatprep.subr.mxu0 0.0
    %2380 = vmatpush1.msra.mxu0 %v2317
    %2381 = vmatprep.subr.mxu0 0.0
    %2382 = vmatpush1.msra.mxu0 %v2318
    %2383 = vmatprep.subr.mxu0 0.0
    %2384 = vmatpush1.msra.mxu0 0.0
    %2385 = vmatprep.subr.mxu0 0.0
    %2386 = vmatpush1.msra.mxu0 0.0
    %2387 = vmatprep.subr.mxu0 0.0
    %2388 = vmatpush1.msra.mxu0 0.0
    %2389 = vmatprep.subr.mxu0 0.0
    %2390 = vmatpush1.msra.mxu0 0.0
    %2391 = vmatprep.subr.mxu0 0.0
    %2392 = vmatpush1.msra.mxu0 0.0
    %2393 = vmatprep.subr.mxu0 0.0
    %2394 = vmatpush1.msra.mxu0 0.0
    %2395 = vmatprep.subr.mxu0 0.0
    %2396 = vmatpush1.msra.mxu0 0.0
    %2397 = vmatprep.subr.mxu0 0.0
    %2398 = vmatpush1.msra.mxu0 0.0
    %2399 = vmatprep.subr.mxu0 0.0
    %2400 = vmatpush1.msra.mxu0 0.0
    %2401 = vmatprep.subr.mxu0 0.0
    %2402 = vmatpush1.msra.mxu0 0.0
    %2403 = vmatprep.subr.mxu0 0.0
    %2404 = vmatpush1.msra.mxu0 0.0
    %2405 = vmatprep.subr.mxu0 0.0
    %2406 = vmatpush1.msra.mxu0 0.0
    %2407 = vmatprep.subr.mxu0 0.0
    %2408 = vmatpush1.msra.mxu0 0.0
    %2409 = vmatprep.subr.mxu0 0.0
    %2410 = vmatpush1.msra.mxu0 0.0
    %2411 = vmatprep.subr.mxu0 0.0
    %2412 = vmatpush1.msra.mxu0 0.0
    %2413 = vmatprep.subr.mxu0 0.0
    %2414 = vmatpush1.msra.mxu0 0.0
    %2415 = vmatprep.mubr.f32.mxu0 0.0
    %2416 = vmatmul.mubr.f32.gmra.mrb[0].mxu0 %v2284
    %v2417 = vpop.f32.mrb[0].mxu0
    %v2418 = vadd.f32 0.0, %v2417
    %v2419 = vpop.f32.mrb[0].mxu0
    %2420 = vdwg.mxu0
    %2421 = vmatprep.subr.mxu0 0.0
    %2422 = vmatpush1.msra.mxu0 %v2287
    %2423 = vmatprep.subr.mxu0 0.0
    %2424 = vmatpush1.msra.mxu0 %v2288
    %2425 = vmatprep.subr.mxu0 0.0
    %2426 = vmatpush1.msra.mxu0 %v2289
    %2427 = vmatprep.subr.mxu0 0.0
    %2428 = vmatpush1.msra.mxu0 %v2290
    %2429 = vmatprep.subr.mxu0 0.0
    %2430 = vmatpush1.msra.mxu0 %v2291
    %2431 = vmatprep.subr.mxu0 0.0
    %2432 = vmatpush1.msra.mxu0 %v2292
    %2433 = vmatprep.subr.mxu0 0.0
    %2434 = vmatpush1.msra.mxu0 %v2293
    %2435 = vmatprep.subr.mxu0 0.0
    %2436 = vmatpush1.msra.mxu0 %v2294
    %2437 = vmatprep.subr.mxu0 0.0
    %2438 = vmatpush1.msra.mxu0 %v2295
    %2439 = vmatprep.subr.mxu0 0.0
    %2440 = vmatpush1.msra.mxu0 %v2296
    %2441 = vmatprep.subr.mxu0 0.0
    %2442 = vmatpush1.msra.mxu0 %v2297
    %2443 = vmatprep.subr.mxu0 0.0
    %2444 = vmatpush1.msra.mxu0 %v2298
    %2445 = vmatprep.subr.mxu0 0.0
    %2446 = vmatpush1.msra.mxu0 %v2299
    %2447 = vmatprep.subr.mxu0 0.0
    %2448 = vmatpush1.msra.mxu0 %v2300
    %2449 = vmatprep.subr.mxu0 0.0
    %2450 = vmatpush1.msra.mxu0 %v2301
    %2451 = vmatprep.subr.mxu0 0.0
    %2452 = vmatpush1.msra.mxu0 %v2302
    %2453 = vmatprep.subr.mxu0 0.0
    %2454 = vmatpush1.msra.mxu0 0.0
    %2455 = vmatprep.subr.mxu0 0.0
    %2456 = vmatpush1.msra.mxu0 0.0
    %2457 = vmatprep.subr.mxu0 0.0
    %2458 = vmatpush1.msra.mxu0 0.0
    %2459 = vmatprep.subr.mxu0 0.0
    %2460 = vmatpush1.msra.mxu0 0.0
    %2461 = vmatprep.subr.mxu0 0.0
    %2462 = vmatpush1.msra.mxu0 0.0
    %2463 = vmatprep.subr.mxu0 0.0
    %2464 = vmatpush1.msra.mxu0 0.0
    %2465 = vmatprep.subr.mxu0 0.0
    %2466 = vmatpush1.msra.mxu0 0.0
    %2467 = vmatprep.subr.mxu0 0.0
    %2468 = vmatpush1.msra.mxu0 0.0
    %2469 = vmatprep.subr.mxu0 0.0
    %2470 = vmatpush1.msra.mxu0 0.0
    %2471 = vmatprep.subr.mxu0 0.0
    %2472 = vmatpush1.msra.mxu0 0.0
    %2473 = vmatprep.subr.mxu0 0.0
    %2474 = vmatpush1.msra.mxu0 0.0
    %2475 = vmatprep.subr.mxu0 0.0
    %2476 = vmatpush1.msra.mxu0 0.0
    %2477 = vmatprep.subr.mxu0 0.0
    %2478 = vmatpush1.msra.mxu0 0.0
    %2479 = vmatprep.subr.mxu0 0.0
    %2480 = vmatpush1.msra.mxu0 0.0
    %2481 = vmatprep.subr.mxu0 0.0
    %2482 = vmatpush1.msra.mxu0 0.0
    %2483 = vmatprep.subr.mxu0 0.0
    %2484 = vmatpush1.msra.mxu0 0.0
    %2485 = vmatprep.mubr.f32.mxu0 0.0
    %2486 = vmatmul.mubr.f32.gmra.mrb[0].mxu0 %v2283
    %v2487 = vpop.f32.mrb[0].mxu0
    %v2488 = vadd.f32 %v2418, %v2487
    %v2489 = vpop.f32.mrb[0].mxu0
    %2490 = vdwg.mxu0
    %2491 = vmatprep.subr.mxu0 0.0
    %2492 = vmatpush1.msra.mxu0 %v2319
    %2493 = vmatprep.subr.mxu0 0.0
    %2494 = vmatpush1.msra.mxu0 %v2320
    %2495 = vmatprep.subr.mxu0 0.0
    %2496 = vmatpush1.msra.mxu0 %v2321
    %2497 = vmatprep.subr.mxu0 0.0
    %2498 = vmatpush1.msra.mxu0 %v2322
    %2499 = vmatprep.subr.mxu0 0.0
    %2500 = vmatpush1.msra.mxu0 %v2323
    %2501 = vmatprep.subr.mxu0 0.0
    %2502 = vmatpush1.msra.mxu0 %v2324
    %2503 = vmatprep.subr.mxu0 0.0
    %2504 = vmatpush1.msra.mxu0 %v2325
    %2505 = vmatprep.subr.mxu0 0.0
    %2506 = vmatpush1.msra.mxu0 %v2326
    %2507 = vmatprep.subr.mxu0 0.0
    %2508 = vmatpush1.msra.mxu0 %v2327
    %2509 = vmatprep.subr.mxu0 0.0
    %2510 = vmatpush1.msra.mxu0 %v2328
    %2511 = vmatprep.subr.mxu0 0.0
    %2512 = vmatpush1.msra.mxu0 %v2329
    %2513 = vmatprep.subr.mxu0 0.0
    %2514 = vmatpush1.msra.mxu0 %v2330
    %2515 = vmatprep.subr.mxu0 0.0
    %2516 = vmatpush1.msra.mxu0 %v2331
    %2517 = vmatprep.subr.mxu0 0.0
    %2518 = vmatpush1.msra.mxu0 %v2332
    %2519 = vmatprep.subr.mxu0 0.0
    %2520 = vmatpush1.msra.mxu0 %v2333
    %2521 = vmatprep.subr.mxu0 0.0
    %2522 = vmatpush1.msra.mxu0 %v2334
    %2523 = vmatprep.subr.mxu0 0.0
    %2524 = vmatpush1.msra.mxu0 0.0
    %2525 = vmatprep.subr.mxu0 0.0
    %2526 = vmatpush1.msra.mxu0 0.0
    %2527 = vmatprep.subr.mxu0 0.0
    %2528 = vmatpush1.msra.mxu0 0.0
    %2529 = vmatprep.subr.mxu0 0.0
    %2530 = vmatpush1.msra.mxu0 0.0
    %2531 = vmatprep.subr.mxu0 0.0
    %2532 = vmatpush1.msra.mxu0 0.0
    %2533 = vmatprep.subr.mxu0 0.0
    %2534 = vmatpush1.msra.mxu0 0.0
    %2535 = vmatprep.subr.mxu0 0.0
    %2536 = vmatpush1.msra.mxu0 0.0
    %2537 = vmatprep.subr.mxu0 0.0
    %2538 = vmatpush1.msra.mxu0 0.0
    %2539 = vmatprep.subr.mxu0 0.0
    %2540 = vmatpush1.msra.mxu0 0.0
    %2541 = vmatprep.subr.mxu0 0.0
    %2542 = vmatpush1.msra.mxu0 0.0
    %2543 = vmatprep.subr.mxu0 0.0
    %2544 = vmatpush1.msra.mxu0 0.0
    %2545 = vmatprep.subr.mxu0 0.0
    %2546 = vmatpush1.msra.mxu0 0.0
    %2547 = vmatprep.subr.mxu0 0.0
    %2548 = vmatpush1.msra.mxu0 0.0
    %2549 = vmatprep.subr.mxu0 0.0
    %2550 = vmatpush1.msra.mxu0 0.0
    %2551 = vmatprep.subr.mxu0 0.0
    %2552 = vmatpush1.msra.mxu0 0.0
    %2553 = vmatprep.subr.mxu0 0.0
    %2554 = vmatpush1.msra.mxu0 0.0
    %2555 = vmatprep.mubr.f32.mxu0 0.0
    %2556 = vmatmul.mubr.f32.gmra.mrb[0].mxu0 %v2285
    %v2557 = vpop.f32.mrb[0].mxu0
    %v2558 = vadd.f32 0.0, %v2557
    %v2559 = vpop.f32.mrb[0].mxu0
    %2560 = vdwg.mxu0
    %v2561 = vadd.f32 %v2488, %v2558
    %2562 = vmatprep.subr.mxu0 0.0
    %2563 = vmatpush1.msra.mxu0 %v2335
    %2564 = vmatprep.subr.mxu0 0.0
    %2565 = vmatpush1.msra.mxu0 %v2336
    %2566 = vmatprep.subr.mxu0 0.0
    %2567 = vmatpush1.msra.mxu0 %v2337
    %2568 = vmatprep.subr.mxu0 0.0
    %2569 = vmatpush1.msra.mxu0 %v2338
    %2570 = vmatprep.subr.mxu0 0.0
    %2571 = vmatpush1.msra.mxu0 %v2339
    %2572 = vmatprep.subr.mxu0 0.0
    %2573 = vmatpush1.msra.mxu0 %v2340
    %2574 = vmatprep.subr.mxu0 0.0
    %2575 = vmatpush1.msra.mxu0 %v2341
    %2576 = vmatprep.subr.mxu0 0.0
    %2577 = vmatpush1.msra.mxu0 %v2342
    %2578 = vmatprep.subr.mxu0 0.0
    %2579 = vmatpush1.msra.mxu0 %v2343
    %2580 = vmatprep.subr.mxu0 0.0
    %2581 = vmatpush1.msra.mxu0 %v2344
    %2582 = vmatprep.subr.mxu0 0.0
    %2583 = vmatpush1.msra.mxu0 %v2345
    %2584 = vmatprep.subr.mxu0 0.0
    %2585 = vmatpush1.msra.mxu0 %v2346
    %2586 = vmatprep.subr.mxu0 0.0
    %2587 = vmatpush1.msra.mxu0 %v2347
    %2588 = vmatprep.subr.mxu0 0.0
    %2589 = vmatpush1.msra.mxu0 %v2348
    %2590 = vmatprep.subr.mxu0 0.0
    %2591 = vmatpush1.msra.mxu0 %v2349
    %2592 = vmatprep.subr.mxu0 0.0
    %2593 = vmatpush1.msra.mxu0 %v2350
    %2594 = vmatprep.subr.mxu0 0.0
    %2595 = vmatpush1.msra.mxu0 0.0
    %2596 = vmatprep.subr.mxu0 0.0
    %2597 = vmatpush1.msra.mxu0 0.0
    %2598 = vmatprep.subr.mxu0 0.0
    %2599 = vmatpush1.msra.mxu0 0.0
    %2600 = vmatprep.subr.mxu0 0.0
    %2601 = vmatpush1.msra.mxu0 0.0
    %2602 = vmatprep.subr.mxu0 0.0
    %2603 = vmatpush1.msra.mxu0 0.0
    %2604 = vmatprep.subr.mxu0 0.0
    %2605 = vmatpush1.msra.mxu0 0.0
    %2606 = vmatprep.subr.mxu0 0.0
    %2607 = vmatpush1.msra.mxu0 0.0
    %2608 = vmatprep.subr.mxu0 0.0
    %2609 = vmatpush1.msra.mxu0 0.0
    %2610 = vmatprep.subr.mxu0 0.0
    %2611 = vmatpush1.msra.mxu0 0.0
    %2612 = vmatprep.subr.mxu0 0.0
    %2613 = vmatpush1.msra.mxu0 0.0
    %2614 = vmatprep.subr.mxu0 0.0
    %2615 = vmatpush1.msra.mxu0 0.0
    %2616 = vmatprep.subr.mxu0 0.0
    %2617 = vmatpush1.msra.mxu0 0.0
    %2618 = vmatprep.subr.mxu0 0.0
    %2619 = vmatpush1.msra.mxu0 0.0
    %2620 = vmatprep.subr.mxu0 0.0
    %2621 = vmatpush1.msra.mxu0 0.0
    %2622 = vmatprep.subr.mxu0 0.0
    %2623 = vmatpush1.msra.mxu0 0.0
    %2624 = vmatprep.subr.mxu0 0.0
    %2625 = vmatpush1.msra.mxu0 0.0
    %2626 = vmatprep.mubr.f32.mxu0 0.0
    %2627 = vmatmul.mubr.f32.gmra.mrb[0].mxu0 %v2286
    %v2628 = vpop.f32.mrb[0].mxu0
    %v2629 = vadd.f32 0.0, %v2628
    %v2630 = vpop.f32.mrb[0].mxu0
    %2631 = vdwg.mxu0
    %v2632 = vadd.f32 %v2561, %v2629
    %v2633 = vld [vmem:[%s6] sm:$0x1]
    %v2635 = vlaneseq
    %v2636 = vshrl.u32 %v2635, 7
    %v2637 = vsub.s32 0, %v2636
    %v2638 = vrot.slane %v2633, %v2637
    %v2640 = vadd.f32 %v2632, %v2638
    %v2641 = vmax.f32 %v2640, 0.0
    %v2642 = vld [vmem:[%s7] sm:$0xff]
    %v2643 = vld [vmem:[%s7 + $0x8] sm:$0xff]
    %v2644 = vld [vmem:[%s7 + $0x10] sm:$0xff]
    %v2645 = vld [vmem:[%s7 + $0x18] sm:$0xff]
    %v2646 = vld [vmem:[%s7 + $0x20] sm:$0xff]
    %v2647 = vld [vmem:[%s7 + $0x28] sm:$0xff]
    %v2648 = vld [vmem:[%s7 + $0x30] sm:$0x3]
    %v2649 = vld [vmem:[%s8] sm:$0x1]
    %v2651 = vlaneseq
    %v2652 = vshrl.u32 %v2651, 7
    %v2653 = vsub.s32 0, %v2652
    %v2654 = vrot.slane %v2649, %v2653
    %vm2656 = vcmask 408576
    %v2658 = vsel %vm2656, %v2641, 0
    %vm2660 = vcmask 1041408
    %v2662 = vsel %vm2660, %v2648, 0
    %2664 = vmatprep.subr.mxu0 0.0
    %2665 = vmatpush1.msra.mxu0 %v2642
    %2666 = vmatprep.subr.mxu0 0.0
    %2667 = vmatpush1.msra.mxu0 %v2643
    %2668 = vmatprep.subr.mxu0 0.0
    %2669 = vmatpush1.msra.mxu0 %v2644
    %2670 = vmatprep.subr.mxu0 0.0
    %2671 = vmatpush1.msra.mxu0 %v2645
    %2672 = vmatprep.subr.mxu0 0.0
    %2673 = vmatpush1.msra.mxu0 %v2646
    %2674 = vmatprep.subr.mxu0 0.0
    %2675 = vmatpush1.msra.mxu0 %v2647
    %2676 = vmatprep.subr.mxu0 0.0
    %2677 = vmatpush1.msra.mxu0 %v2662
    %2678 = vmatprep.subr.mxu0 0.0
    %2679 = vmatpush1.msra.mxu0 0.0
    %2680 = vmatprep.subr.mxu0 0.0
    %2681 = vmatpush1.msra.mxu0 0.0
    %2682 = vmatprep.subr.mxu0 0.0
    %2683 = vmatpush1.msra.mxu0 0.0
    %2684 = vmatprep.subr.mxu0 0.0
    %2685 = vmatpush1.msra.mxu0 0.0
    %2686 = vmatprep.subr.mxu0 0.0
    %2687 = vmatpush1.msra.mxu0 0.0
    %2688 = vmatprep.subr.mxu0 0.0
    %2689 = vmatpush1.msra.mxu0 0.0
    %2690 = vmatprep.subr.mxu0 0.0
    %2691 = vmatpush1.msra.mxu0 0.0
    %2692 = vmatprep.subr.mxu0 0.0
    %2693 = vmatpush1.msra.mxu0 0.0
    %2694 = vmatprep.subr.mxu0 0.0
    %2695 = vmatpush1.msra.mxu0 0.0
    %2696 = vmatprep.subr.mxu0 0.0
    %2697 = vmatpush1.msra.mxu0 0.0
    %2698 = vmatprep.subr.mxu0 0.0
    %2699 = vmatpush1.msra.mxu0 0.0
    %2700 = vmatprep.subr.mxu0 0.0
    %2701 = vmatpush1.msra.mxu0 0.0
    %2702 = vmatprep.subr.mxu0 0.0
    %2703 = vmatpush1.msra.mxu0 0.0
    %2704 = vmatprep.subr.mxu0 0.0
    %2705 = vmatpush1.msra.mxu0 0.0
    %2706 = vmatprep.subr.mxu0 0.0
    %2707 = vmatpush1.msra.mxu0 0.0
    %2708 = vmatprep.subr.mxu0 0.0
    %2709 = vmatpush1.msra.mxu0 0.0
    %2710 = vmatprep.subr.mxu0 0.0
    %2711 = vmatpush1.msra.mxu0 0.0
    %2712 = vmatprep.subr.mxu0 0.0
    %2713 = vmatpush1.msra.mxu0 0.0
    %2714 = vmatprep.subr.mxu0 0.0
    %2715 = vmatpush1.msra.mxu0 0.0
    %2716 = vmatprep.subr.mxu0 0.0
    %2717 = vmatpush1.msra.mxu0 0.0
    %2718 = vmatprep.subr.mxu0 0.0
    %2719 = vmatpush1.msra.mxu0 0.0
    %2720 = vmatprep.subr.mxu0 0.0
    %2721 = vmatpush1.msra.mxu0 0.0
    %2722 = vmatprep.subr.mxu0 0.0
    %2723 = vmatpush1.msra.mxu0 0.0
    %2724 = vmatprep.subr.mxu0 0.0
    %2725 = vmatpush1.msra.mxu0 0.0
    %2726 = vmatprep.subr.mxu0 0.0
    %2727 = vmatpush1.msra.mxu0 0.0
    %2728 = vmatprep.mubr.f32.mxu0 0.0
    %2729 = vmatmul.mubr.f32.gmra.mrb[0].mxu0 %v2658
    %v2730 = vpop.f32.mrb[0].mxu0
    %v2731 = vadd.f32 %v2654, %v2730
    %v2732 = vpop.f32.mrb[0].mxu0
    %2733 = vdwg.mxu0
    %vm2734 = vcmask 80896
    %v2735 = vsel %vm2734, %v2731, -inf
    %2736 = vmax.xlane.f32.xlu0 %v2735
    %v2737 = vpop.xlane.xlu0 %2736
    %v2738 = vsub.f32 %v2731, %v2737
    %v2739 = vmul.f32 %v2738, 1.442695
    %v2740 = vpow.pop %v2739
    %v2741 = vsel %vm2734, %v2740, 0.0
    %2742 = vadd.xlane.f32.xlu0 %v2741
    %v2743 = vpop.xlane.xlu0 %2742
    %v2744 = vlog2.pop %v2743
    %v2745 = vmul.f32 %v2744, 0.6931472
    %v2746 = vsub.f32 %v2738, %v2745
    %2747 = vst.msk [vmem:[#allocation5] sm:$0xff] %vm2734, %v2746
    // Predicated region
    $region42: #{tpu_custom_call.1} parent=1 // pred_check
      _
    $region43: #{tpu_custom_call.1} parent=1 // pred_check_branch
      %2749 = sbr.rel (0) target = $region45
    $region44: #{tpu_custom_call.1} parent=1 // pred_region
      %s2751 = ssub.s32 128, 128
      %2752 = vsyncadd [#allocation4], %s2751
      %s2754 = sshll.u32 [#allocation5], 4
      %s2755 = int_to_ptr.vmem [resolvable:$true] %s2754
      %2757 = dma.vmem_to_hbm [thread:$0]  %s2755, 128, %s9, [#allocation4]
    $region45: #{tpu_custom_call.1} parent=1 // pred_fallthru
      _
    // Predicated region
    $region46: #{tpu_custom_call.1} parent=1 // pred_check
      _
    $region47: #{tpu_custom_call.1} parent=1 // pred_check_branch
      %2759 = sbr.rel (0) target = $region49
    $region48: #{tpu_custom_call.1} parent=1 // pred_region
      %2760 = dma.done [#allocation4], 128
    $region49: #{tpu_custom_call.1} parent=1 // pred_fallthru
      _
    %2761 = vsyncpa [#allocation3], 1
    %2762 = vsyncpa [#allocation4], 1

</llo_original>
